<compile_context>
chip_gen: v5e
topology: v5e:2x2
jax: 0.10.0
libtpu: 0.0.40
codegen_flags: <defaults>
</compile_context>

<pallas_src>
import functools
import math

import jax
import jax.numpy as jnp
from jax.experimental import pallas as pl
from jax.experimental.pallas import tpu as pltpu


def _sla_kernel(x_ref, wqkv_ref, wo_ref, b_ref, o_ref, *,
                scale, heads, dh, n, bf_tile):
    """One grid step: `bf_tile` (batch*frame) slabs of fused linear attention.

    x_ref    : (C, bf_tile*n)   bf16  input slabs packed along lanes
    wqkv_ref : (3*hidden, C)    bf16  full to_qkv weight (VMEM resident)
    wo_ref   : (heads, C, dh)   bf16  to_out weight, per-head slices (resident)
    b_ref    : (C, 1)           f32   to_out bias (resident)
    o_ref    : (C, bf_tile*n)   f32   output slabs, written once per step
    """
    hidden = heads * dh
    C = x_ref.shape[0]
    L = bf_tile * n

    xb = x_ref[...]                                                     # (C, L) bf16

    # --- single fused 1x1 qkv projection for all heads & slabs (MXU, f32 acc) ---
    qkv = jnp.dot(wqkv_ref[...], xb,
                  preferred_element_type=jnp.float32)                   # (3*hidden, L)

    q_all = qkv[0:hidden]                                               # (hidden, L)
    k_all = qkv[hidden:2 * hidden]
    v_all = qkv[2 * hidden:3 * hidden]

    # q.softmax(dim=-2): over dim_head within each head.  Independent per lane,
    # so it is done for every slab at once; the scale is folded in here.
    q3 = q_all.reshape(heads, dh, L)
    q3 = jnp.exp(q3 - q3.max(axis=1, keepdims=True))
    q3 = q3 / q3.sum(axis=1, keepdims=True) * scale
    q_all = q3.reshape(hidden, L).astype(jnp.bfloat16)

    bias = jnp.broadcast_to(b_ref[...], (C, n))                         # hoisted once

    # Unrolled loop over the slabs packed into this tile (static trip count).
    for b in range(bf_tile):
        sl = slice(b * n, (b + 1) * n)                                  # static, 128-aligned
        q = q_all[:, sl]                                                # (hidden, n) bf16
        k = k_all[:, sl]                                                # (hidden, n) f32
        v = v_all[:, sl]

        # k.softmax(dim=-1): over the n spatial positions of this slab.  Each
        # row is one (head, d) pair, so no head reshape is needed.
        k = jnp.exp(k - k.max(axis=1, keepdims=True))
        k = k / k.sum(axis=1, keepdims=True)
        kb = k.astype(jnp.bfloat16)
        vb = v.astype(jnp.bfloat16)

        # Reassociated epilogue: fold the per-head to_out slice into the tiny
        # (dh, dh) context so the spatial-sized matmul happens once with K=hidden.
        m_parts = []
        for h in range(heads):                                          # unrolled
            rows = slice(h * dh, (h + 1) * dh)
            # ct[e, d] = sum_n v[e, n] * k[d, n]   (== context^T)
            ct = jax.lax.dot_general(vb[rows], kb[rows],
                                     (((1,), (1,)), ((), ())),
                                     preferred_element_type=jnp.float32)   # (dh, dh)
            m_parts.append(jnp.dot(wo_ref[h], ct.astype(jnp.bfloat16),
                                   preferred_element_type=jnp.float32))    # (C, dh)
        m = jnp.concatenate(m_parts, axis=1).astype(jnp.bfloat16)       # (C, hidden)

        # ONE output projection per slab: (C, hidden) @ (hidden, n) + fused bias.
        o_ref[:, sl] = jnp.dot(m, q, preferred_element_type=jnp.float32) + bias


def _pick_bf_tile(BF, C, n):
    """Largest slab count per grid step that keeps >= min(4, BF) grid steps
    (software pipeline depth / v7x megacore sharding) and keeps the per-step
    x(bf16)+out(f32) blocks within a small VMEM budget."""
    budget = 4 << 20                      # bytes per slab-block, pre double-buffer
    min_steps = min(4, BF)
    best = 1
    for t in range(1, BF + 1):
        if BF % t:
            continue
        if BF // t < min_steps:
            continue
        if t * n * C * (2 + 4) > budget:
            continue
        if (t * n) % 128 != 0:
            continue
        best = t
    if (best * n) % 128 != 0:             # lane divisibility fallback: one full block
        best = BF
    return best


def spatial_linear_attention(x, w_qkv, w_out, b_out, heads):
    """x: (B, C, F, H, W); w_qkv: (3*hidden, C[,1,1]); w_out: (C, hidden[,1,1]); b_out: (C,)."""
    B, C, F_, H, W = x.shape
    n = H * W
    BF = B * F_
    three_hidden = w_qkv.shape[0]
    hidden = three_hidden // 3
    dh = hidden // heads
    assert hidden == heads * dh and dh % 8 == 0, "dim_head must be a multiple of 8"
    scale = dh ** (-0.5)

    bf_tile = _pick_bf_tile(BF, C, n)
    grid = BF // bf_tile
    L_tile = bf_tile * n

    # Layout prep (thin XLA glue, once per call).  bf16 cast happens BEFORE the
    # boundary transpose so the (b c f h w) -> (c, bf*n) repack moves half the bytes.
    x_r = (x.astype(jnp.bfloat16)
            .transpose(1, 0, 2, 3, 4)              # (C, B, F, H, W)
            .reshape(C, BF * n))                   # slabs packed along lanes
    wqkv = w_qkv.reshape(three_hidden, C).astype(jnp.bfloat16)           # (3*hidden, C)
    wo = (w_out.reshape(C, heads, dh)
               .transpose(1, 0, 2)
               .astype(jnp.bfloat16))                                    # (heads, C, dh)
    bo = b_out.reshape(C, 1).astype(jnp.float32)

    out = pl.pallas_call(
        functools.partial(_sla_kernel, scale=scale, heads=heads, dh=dh,
                          n=n, bf_tile=bf_tile),
        out_shape=jax.ShapeDtypeStruct((C, BF * n), jnp.float32),
        grid_spec=pltpu.PrefetchScalarGridSpec(
            num_scalar_prefetch=0,
            grid=(grid,),
            in_specs=[
                pl.BlockSpec((C, L_tile), lambda t: (0, t)),             # x slabs
                pl.BlockSpec((three_hidden, C), lambda t: (0, 0)),       # to_qkv W (resident)
                pl.BlockSpec((heads, C, dh), lambda t: (0, 0, 0)),       # to_out W (resident)
                pl.BlockSpec((C, 1), lambda t: (0, 0)),                  # to_out bias
            ],
            out_specs=pl.BlockSpec((C, L_tile), lambda t: (0, t)),
        ),
        compiler_params=pltpu.CompilerParams(
            dimension_semantics=("parallel",),
            vmem_limit_bytes=64 * 1024 * 1024),
    )(x_r, wqkv, wo, bo)

    # TODO(synk): for very large C*n (e.g. 512 x 128^2) additionally tile the
    # spatial axis inside a slab so blocks stay within v7x's 64 MiB VMEM.
    return out.reshape(C, B, F_, H, W).transpose(1, 0, 2, 3, 4)


def _reference(x, w_qkv, w_out, b_out, heads):
    """Pure-JAX (f32) mirror of the PyTorch forward, for correctness checking."""
    B, C, F_, H, W = x.shape
    hidden = w_qkv.shape[0] // 3
    dh = hidden // heads
    scale = dh ** (-0.5)
    n = H * W
    wq = w_qkv.reshape(3 * hidden, C)
    wo = w_out.reshape(C, hidden)
    xf = x.transpose(0, 2, 1, 3, 4).reshape(B * F_, C, n)
    qkv = jnp.einsum('oc,bcn->bon', wq, xf)
    q, k, v = jnp.split(qkv, 3, axis=1)
    q = q.reshape(B * F_, heads, dh, n)
    k = k.reshape(B * F_, heads, dh, n)
    v = v.reshape(B * F_, heads, dh, n)
    q = jax.nn.softmax(q, axis=-2) * scale
    k = jax.nn.softmax(k, axis=-1)
    context = jnp.einsum('bhdn,bhen->bhde', k, v)
    out = jnp.einsum('bhde,bhdn->bhen', context, q)
    out = out.reshape(B * F_, hidden, n)
    out = jnp.einsum('ce,ben->bcn', wo, out) + b_out[None, :, None]
    return out.reshape(B, F_, C, H, W).transpose(0, 2, 1, 3, 4)


if __name__ == "__main__":
    # Small but representative shapes: dim=32, heads=4, dim_head=32 (module
    # defaults), B=2, frames=4, spatial 16x16 -> n = 256 spatial tokens.
    B, C, F_, H, W = 2, 32, 4, 16, 16
    heads, dim_head = 4, 32
    hidden = heads * dim_head

    key = jax.random.PRNGKey(0)
    k1, k2, k3, k4 = jax.random.split(key, 4)
    x = jax.random.normal(k1, (B, C, F_, H, W), jnp.float32)
    w_qkv = jax.random.normal(k2, (hidden * 3, C, 1, 1), jnp.float32) / math.sqrt(C)
    w_out = jax.random.normal(k3, (C, hidden, 1, 1), jnp.float32) / math.sqrt(hidden)
    b_out = jax.random.normal(k4, (C,), jnp.float32) * 0.1

    fwd = jax.jit(functools.partial(spatial_linear_attention, heads=heads))
    out = fwd(x, w_qkv, w_out, b_out)
    jax.block_until_ready(out)

    assert out.shape == (B, C, F_, H, W), out.shape
    assert bool(jnp.all(jnp.isfinite(out)))

    ref = _reference(x, w_qkv, w_out, b_out, heads)
    max_err = float(jnp.max(jnp.abs(out - ref)))
    # bf16 MXU operands with f32 accumulation -> small, bounded drift vs f32 ref.
    assert bool(jnp.allclose(out, ref, rtol=2e-2, atol=5e-3)), f"max abs err {max_err}"

    print("KERNEL_OK")
</pallas_src>

<mosaic_0001>
module attributes {stable_mosaic.version = 11 : i64} {
  func.func @_sla_kernel(%arg0: i32, %arg1: memref<32x512xbf16, #tpu.memory_space<vmem>>, %arg2: memref<384x32xbf16, #tpu.memory_space<vmem>>, %arg3: memref<4x32x32xbf16, #tpu.memory_space<vmem>>, %arg4: memref<32x1xf32, #tpu.memory_space<vmem>>, %arg5: memref<32x512xf32, #tpu.memory_space<vmem>>) attributes {dimension_semantics = [#tpu.dimension_semantics<parallel>], iteration_bounds = array<i64: 4>, scalar_prefetch = 0 : i64, scratch_operands = 0 : i64, tpu.core_type = #tpu.core_type<tc>, window_params = [{transform_indices = @transform_0, window_bounds = array<i64: 32, 512>}, {pipeline_mode = #tpu.pipeline_mode<synchronous>, transform_indices = @transform_1, window_bounds = array<i64: 384, 32>}, {pipeline_mode = #tpu.pipeline_mode<synchronous>, transform_indices = @transform_2, window_bounds = array<i64: 4, 32, 32>}, {pipeline_mode = #tpu.pipeline_mode<synchronous>, transform_indices = @transform_3, window_bounds = array<i64: 32, 1>}, {transform_indices = @transform_4, window_bounds = array<i64: 32, 512>}]} {
    %c0 = arith.constant 0 : index
    %c0_0 = arith.constant 0 : index
    %0 = vector.load %arg1[%c0, %c0_0] : memref<32x512xbf16, #tpu.memory_space<vmem>>, vector<32x512xbf16>
    %c0_1 = arith.constant 0 : index
    %c0_2 = arith.constant 0 : index
    %1 = vector.load %arg2[%c0_1, %c0_2] : memref<384x32xbf16, #tpu.memory_space<vmem>>, vector<384x32xbf16>
    %cst = arith.constant dense<0.000000e+00> : vector<384x512xf32>
    %2 = tpu.matmul %1, %0, %cst {dimension_numbers = #tpu.dot_dimension_numbers<[1], [0], [0], [1], [0, 0, 1, 1], [], []>} : vector<384x32xbf16>, vector<32x512xbf16>, vector<384x512xf32> -> vector<384x512xf32>
    %3 = vector.extract_strided_slice %2 {offsets = [0, 0], sizes = [128, 512], strides = [1, 1]} : vector<384x512xf32> to vector<128x512xf32>
    %4 = vector.extract_strided_slice %2 {offsets = [128, 0], sizes = [128, 512], strides = [1, 1]} : vector<384x512xf32> to vector<128x512xf32>
    %5 = vector.extract_strided_slice %2 {offsets = [256, 0], sizes = [128, 512], strides = [1, 1]} : vector<384x512xf32> to vector<128x512xf32>
    %6 = vector.shape_cast %3 : vector<128x512xf32> to vector<4x32x512xf32>
    %cst_3 = arith.constant dense<0xFF800000> : vector<4x512xf32>
    %7 = vector.multi_reduction <maximumf>, %6, %cst_3 [1] : vector<4x32x512xf32> to vector<4x512xf32>
    %8 = vector.shape_cast %7 : vector<4x512xf32> to vector<4x1x512xf32>
    %9 = vector.broadcast %8 : vector<4x1x512xf32> to vector<4x32x512xf32>
    %10 = arith.subf %6, %9 : vector<4x32x512xf32>
    %11 = math.exp %10 : vector<4x32x512xf32>
    %cst_4 = arith.constant dense<0.000000e+00> : vector<4x512xf32>
    %12 = vector.multi_reduction <add>, %11, %cst_4 [1] : vector<4x32x512xf32> to vector<4x512xf32>
    %13 = vector.shape_cast %12 : vector<4x512xf32> to vector<4x1x512xf32>
    %14 = vector.broadcast %13 : vector<4x1x512xf32> to vector<4x32x512xf32>
    %15 = arith.divf %11, %14 : vector<4x32x512xf32>
    %cst_5 = arith.constant 0.176776692 : f32
    %16 = vector.broadcast %cst_5 : f32 to vector<4x32x512xf32>
    %17 = arith.mulf %15, %16 : vector<4x32x512xf32>
    %18 = vector.shape_cast %17 : vector<4x32x512xf32> to vector<128x512xf32>
    %19 = arith.truncf %18 : vector<128x512xf32> to vector<128x512xbf16>
    %c0_6 = arith.constant 0 : index
    %c0_7 = arith.constant 0 : index
    %20 = vector.load %arg4[%c0_6, %c0_7] : memref<32x1xf32, #tpu.memory_space<vmem>>, vector<32x1xf32>
    %21 = vector.shape_cast %20 : vector<32x1xf32> to vector<32x1xf32>
    %22 = vector.broadcast %21 : vector<32x1xf32> to vector<32x256xf32>
    %23 = vector.extract_strided_slice %19 {offsets = [0, 0], sizes = [128, 256], strides = [1, 1]} : vector<128x512xbf16> to vector<128x256xbf16>
    %24 = vector.extract_strided_slice %4 {offsets = [0, 0], sizes = [128, 256], strides = [1, 1]} : vector<128x512xf32> to vector<128x256xf32>
    %25 = vector.extract_strided_slice %5 {offsets = [0, 0], sizes = [128, 256], strides = [1, 1]} : vector<128x512xf32> to vector<128x256xf32>
    %cst_8 = arith.constant dense<0xFF800000> : vector<128xf32>
    %26 = vector.multi_reduction <maximumf>, %24, %cst_8 [1] : vector<128x256xf32> to vector<128xf32>
    %27 = vector.shape_cast %26 : vector<128xf32> to vector<128x1xf32>
    %28 = vector.broadcast %27 : vector<128x1xf32> to vector<128x256xf32>
    %29 = arith.subf %24, %28 : vector<128x256xf32>
    %30 = math.exp %29 : vector<128x256xf32>
    %cst_9 = arith.constant dense<0.000000e+00> : vector<128xf32>
    %31 = vector.multi_reduction <add>, %30, %cst_9 [1] : vector<128x256xf32> to vector<128xf32>
    %32 = vector.shape_cast %31 : vector<128xf32> to vector<128x1xf32>
    %33 = vector.broadcast %32 : vector<128x1xf32> to vector<128x256xf32>
    %34 = arith.divf %30, %33 : vector<128x256xf32>
    %35 = arith.truncf %34 : vector<128x256xf32> to vector<128x256xbf16>
    %36 = arith.truncf %25 : vector<128x256xf32> to vector<128x256xbf16>
    %37 = vector.extract_strided_slice %36 {offsets = [0, 0], sizes = [32, 256], strides = [1, 1]} : vector<128x256xbf16> to vector<32x256xbf16>
    %38 = vector.extract_strided_slice %35 {offsets = [0, 0], sizes = [32, 256], strides = [1, 1]} : vector<128x256xbf16> to vector<32x256xbf16>
    %cst_10 = arith.constant dense<0.000000e+00> : vector<32x32xf32>
    %39 = tpu.matmul %37, %38, %cst_10 {dimension_numbers = #tpu.dot_dimension_numbers<[1], [1], [0], [0], [0, 0, 1, 0], [], []>} : vector<32x256xbf16>, vector<32x256xbf16>, vector<32x32xf32> -> vector<32x32xf32>
    %c0_11 = arith.constant 0 : index
    %c0_12 = arith.constant 0 : index
    %c0_13 = arith.constant 0 : index
    %40 = vector.load %arg3[%c0_11, %c0_12, %c0_13] : memref<4x32x32xbf16, #tpu.memory_space<vmem>>, vector<1x32x32xbf16>
    %41 = vector.shape_cast %40 : vector<1x32x32xbf16> to vector<32x32xbf16>
    %42 = arith.truncf %39 : vector<32x32xf32> to vector<32x32xbf16>
    %cst_14 = arith.constant dense<0.000000e+00> : vector<32x32xf32>
    %43 = tpu.matmul %41, %42, %cst_14 {dimension_numbers = #tpu.dot_dimension_numbers<[1], [0], [0], [1], [0, 0, 1, 1], [], []>} : vector<32x32xbf16>, vector<32x32xbf16>, vector<32x32xf32> -> vector<32x32xf32>
    %44 = vector.extract_strided_slice %36 {offsets = [32, 0], sizes = [32, 256], strides = [1, 1]} : vector<128x256xbf16> to vector<32x256xbf16>
    %45 = vector.extract_strided_slice %35 {offsets = [32, 0], sizes = [32, 256], strides = [1, 1]} : vector<128x256xbf16> to vector<32x256xbf16>
    %cst_15 = arith.constant dense<0.000000e+00> : vector<32x32xf32>
    %46 = tpu.matmul %44, %45, %cst_15 {dimension_numbers = #tpu.dot_dimension_numbers<[1], [1], [0], [0], [0, 0, 1, 0], [], []>} : vector<32x256xbf16>, vector<32x256xbf16>, vector<32x32xf32> -> vector<32x32xf32>
    %c1 = arith.constant 1 : index
    %c0_16 = arith.constant 0 : index
    %c0_17 = arith.constant 0 : index
    %47 = vector.load %arg3[%c1, %c0_16, %c0_17] : memref<4x32x32xbf16, #tpu.memory_space<vmem>>, vector<1x32x32xbf16>
    %48 = vector.shape_cast %47 : vector<1x32x32xbf16> to vector<32x32xbf16>
    %49 = arith.truncf %46 : vector<32x32xf32> to vector<32x32xbf16>
    %cst_18 = arith.constant dense<0.000000e+00> : vector<32x32xf32>
    %50 = tpu.matmul %48, %49, %cst_18 {dimension_numbers = #tpu.dot_dimension_numbers<[1], [0], [0], [1], [0, 0, 1, 1], [], []>} : vector<32x32xbf16>, vector<32x32xbf16>, vector<32x32xf32> -> vector<32x32xf32>
    %51 = vector.extract_strided_slice %36 {offsets = [64, 0], sizes = [32, 256], strides = [1, 1]} : vector<128x256xbf16> to vector<32x256xbf16>
    %52 = vector.extract_strided_slice %35 {offsets = [64, 0], sizes = [32, 256], strides = [1, 1]} : vector<128x256xbf16> to vector<32x256xbf16>
    %cst_19 = arith.constant dense<0.000000e+00> : vector<32x32xf32>
    %53 = tpu.matmul %51, %52, %cst_19 {dimension_numbers = #tpu.dot_dimension_numbers<[1], [1], [0], [0], [0, 0, 1, 0], [], []>} : vector<32x256xbf16>, vector<32x256xbf16>, vector<32x32xf32> -> vector<32x32xf32>
    %c2 = arith.constant 2 : index
    %c0_20 = arith.constant 0 : index
    %c0_21 = arith.constant 0 : index
    %54 = vector.load %arg3[%c2, %c0_20, %c0_21] : memref<4x32x32xbf16, #tpu.memory_space<vmem>>, vector<1x32x32xbf16>
    %55 = vector.shape_cast %54 : vector<1x32x32xbf16> to vector<32x32xbf16>
    %56 = arith.truncf %53 : vector<32x32xf32> to vector<32x32xbf16>
    %cst_22 = arith.constant dense<0.000000e+00> : vector<32x32xf32>
    %57 = tpu.matmul %55, %56, %cst_22 {dimension_numbers = #tpu.dot_dimension_numbers<[1], [0], [0], [1], [0, 0, 1, 1], [], []>} : vector<32x32xbf16>, vector<32x32xbf16>, vector<32x32xf32> -> vector<32x32xf32>
    %58 = vector.extract_strided_slice %36 {offsets = [96, 0], sizes = [32, 256], strides = [1, 1]} : vector<128x256xbf16> to vector<32x256xbf16>
    %59 = vector.extract_strided_slice %35 {offsets = [96, 0], sizes = [32, 256], strides = [1, 1]} : vector<128x256xbf16> to vector<32x256xbf16>
    %cst_23 = arith.constant dense<0.000000e+00> : vector<32x32xf32>
    %60 = tpu.matmul %58, %59, %cst_23 {dimension_numbers = #tpu.dot_dimension_numbers<[1], [1], [0], [0], [0, 0, 1, 0], [], []>} : vector<32x256xbf16>, vector<32x256xbf16>, vector<32x32xf32> -> vector<32x32xf32>
    %c3 = arith.constant 3 : index
    %c0_24 = arith.constant 0 : index
    %c0_25 = arith.constant 0 : index
    %61 = vector.load %arg3[%c3, %c0_24, %c0_25] : memref<4x32x32xbf16, #tpu.memory_space<vmem>>, vector<1x32x32xbf16>
    %62 = vector.shape_cast %61 : vector<1x32x32xbf16> to vector<32x32xbf16>
    %63 = arith.truncf %60 : vector<32x32xf32> to vector<32x32xbf16>
    %cst_26 = arith.constant dense<0.000000e+00> : vector<32x32xf32>
    %64 = tpu.matmul %62, %63, %cst_26 {dimension_numbers = #tpu.dot_dimension_numbers<[1], [0], [0], [1], [0, 0, 1, 1], [], []>} : vector<32x32xbf16>, vector<32x32xbf16>, vector<32x32xf32> -> vector<32x32xf32>
    %65 = tpu.concatenate %43, %50, %57, %64 in 1 : vector<32x32xf32>, vector<32x32xf32>, vector<32x32xf32>, vector<32x32xf32> -> vector<32x128xf32>
    %66 = arith.truncf %65 : vector<32x128xf32> to vector<32x128xbf16>
    %cst_27 = arith.constant dense<0.000000e+00> : vector<32x256xf32>
    %67 = tpu.matmul %66, %23, %cst_27 {dimension_numbers = #tpu.dot_dimension_numbers<[1], [0], [0], [1], [0, 0, 1, 1], [], []>} : vector<32x128xbf16>, vector<128x256xbf16>, vector<32x256xf32> -> vector<32x256xf32>
    %68 = arith.addf %67, %22 : vector<32x256xf32>
    %c0_28 = arith.constant 0 : index
    %c0_29 = arith.constant 0 : index
    %69 = vector.load %arg5[%c0_28, %c0_29] : memref<32x512xf32, #tpu.memory_space<vmem>>, vector<32x256xf32>
    tpu.vector_store %arg5[%c0_28, %c0_29], %68 {strides = array<i32>} : memref<32x512xf32, #tpu.memory_space<vmem>>, vector<32x256xf32>,
    %70 = vector.extract_strided_slice %19 {offsets = [0, 256], sizes = [128, 256], strides = [1, 1]} : vector<128x512xbf16> to vector<128x256xbf16>
    %71 = vector.extract_strided_slice %4 {offsets = [0, 256], sizes = [128, 256], strides = [1, 1]} : vector<128x512xf32> to vector<128x256xf32>
    %72 = vector.extract_strided_slice %5 {offsets = [0, 256], sizes = [128, 256], strides = [1, 1]} : vector<128x512xf32> to vector<128x256xf32>
    %cst_30 = arith.constant dense<0xFF800000> : vector<128xf32>
    %73 = vector.multi_reduction <maximumf>, %71, %cst_30 [1] : vector<128x256xf32> to vector<128xf32>
    %74 = vector.shape_cast %73 : vector<128xf32> to vector<128x1xf32>
    %75 = vector.broadcast %74 : vector<128x1xf32> to vector<128x256xf32>
    %76 = arith.subf %71, %75 : vector<128x256xf32>
    %77 = math.exp %76 : vector<128x256xf32>
    %cst_31 = arith.constant dense<0.000000e+00> : vector<128xf32>
    %78 = vector.multi_reduction <add>, %77, %cst_31 [1] : vector<128x256xf32> to vector<128xf32>
    %79 = vector.shape_cast %78 : vector<128xf32> to vector<128x1xf32>
    %80 = vector.broadcast %79 : vector<128x1xf32> to vector<128x256xf32>
    %81 = arith.divf %77, %80 : vector<128x256xf32>
    %82 = arith.truncf %81 : vector<128x256xf32> to vector<128x256xbf16>
    %83 = arith.truncf %72 : vector<128x256xf32> to vector<128x256xbf16>
    %84 = vector.extract_strided_slice %83 {offsets = [0, 0], sizes = [32, 256], strides = [1, 1]} : vector<128x256xbf16> to vector<32x256xbf16>
    %85 = vector.extract_strided_slice %82 {offsets = [0, 0], sizes = [32, 256], strides = [1, 1]} : vector<128x256xbf16> to vector<32x256xbf16>
    %cst_32 = arith.constant dense<0.000000e+00> : vector<32x32xf32>
    %86 = tpu.matmul %84, %85, %cst_32 {dimension_numbers = #tpu.dot_dimension_numbers<[1], [1], [0], [0], [0, 0, 1, 0], [], []>} : vector<32x256xbf16>, vector<32x256xbf16>, vector<32x32xf32> -> vector<32x32xf32>
    %c0_33 = arith.constant 0 : index
    %c0_34 = arith.constant 0 : index
    %c0_35 = arith.constant 0 : index
    %87 = vector.load %arg3[%c0_33, %c0_34, %c0_35] : memref<4x32x32xbf16, #tpu.memory_space<vmem>>, vector<1x32x32xbf16>
    %88 = vector.shape_cast %87 : vector<1x32x32xbf16> to vector<32x32xbf16>
    %89 = arith.truncf %86 : vector<32x32xf32> to vector<32x32xbf16>
    %cst_36 = arith.constant dense<0.000000e+00> : vector<32x32xf32>
    %90 = tpu.matmul %88, %89, %cst_36 {dimension_numbers = #tpu.dot_dimension_numbers<[1], [0], [0], [1], [0, 0, 1, 1], [], []>} : vector<32x32xbf16>, vector<32x32xbf16>, vector<32x32xf32> -> vector<32x32xf32>
    %91 = vector.extract_strided_slice %83 {offsets = [32, 0], sizes = [32, 256], strides = [1, 1]} : vector<128x256xbf16> to vector<32x256xbf16>
    %92 = vector.extract_strided_slice %82 {offsets = [32, 0], sizes = [32, 256], strides = [1, 1]} : vector<128x256xbf16> to vector<32x256xbf16>
    %cst_37 = arith.constant dense<0.000000e+00> : vector<32x32xf32>
    %93 = tpu.matmul %91, %92, %cst_37 {dimension_numbers = #tpu.dot_dimension_numbers<[1], [1], [0], [0], [0, 0, 1, 0], [], []>} : vector<32x256xbf16>, vector<32x256xbf16>, vector<32x32xf32> -> vector<32x32xf32>
    %c1_38 = arith.constant 1 : index
    %c0_39 = arith.constant 0 : index
    %c0_40 = arith.constant 0 : index
    %94 = vector.load %arg3[%c1_38, %c0_39, %c0_40] : memref<4x32x32xbf16, #tpu.memory_space<vmem>>, vector<1x32x32xbf16>
    %95 = vector.shape_cast %94 : vector<1x32x32xbf16> to vector<32x32xbf16>
    %96 = arith.truncf %93 : vector<32x32xf32> to vector<32x32xbf16>
    %cst_41 = arith.constant dense<0.000000e+00> : vector<32x32xf32>
    %97 = tpu.matmul %95, %96, %cst_41 {dimension_numbers = #tpu.dot_dimension_numbers<[1], [0], [0], [1], [0, 0, 1, 1], [], []>} : vector<32x32xbf16>, vector<32x32xbf16>, vector<32x32xf32> -> vector<32x32xf32>
    %98 = vector.extract_strided_slice %83 {offsets = [64, 0], sizes = [32, 256], strides = [1, 1]} : vector<128x256xbf16> to vector<32x256xbf16>
    %99 = vector.extract_strided_slice %82 {offsets = [64, 0], sizes = [32, 256], strides = [1, 1]} : vector<128x256xbf16> to vector<32x256xbf16>
    %cst_42 = arith.constant dense<0.000000e+00> : vector<32x32xf32>
    %100 = tpu.matmul %98, %99, %cst_42 {dimension_numbers = #tpu.dot_dimension_numbers<[1], [1], [0], [0], [0, 0, 1, 0], [], []>} : vector<32x256xbf16>, vector<32x256xbf16>, vector<32x32xf32> -> vector<32x32xf32>
    %c2_43 = arith.constant 2 : index
    %c0_44 = arith.constant 0 : index
    %c0_45 = arith.constant 0 : index
    %101 = vector.load %arg3[%c2_43, %c0_44, %c0_45] : memref<4x32x32xbf16, #tpu.memory_space<vmem>>, vector<1x32x32xbf16>
    %102 = vector.shape_cast %101 : vector<1x32x32xbf16> to vector<32x32xbf16>
    %103 = arith.truncf %100 : vector<32x32xf32> to vector<32x32xbf16>
    %cst_46 = arith.constant dense<0.000000e+00> : vector<32x32xf32>
    %104 = tpu.matmul %102, %103, %cst_46 {dimension_numbers = #tpu.dot_dimension_numbers<[1], [0], [0], [1], [0, 0, 1, 1], [], []>} : vector<32x32xbf16>, vector<32x32xbf16>, vector<32x32xf32> -> vector<32x32xf32>
    %105 = vector.extract_strided_slice %83 {offsets = [96, 0], sizes = [32, 256], strides = [1, 1]} : vector<128x256xbf16> to vector<32x256xbf16>
    %106 = vector.extract_strided_slice %82 {offsets = [96, 0], sizes = [32, 256], strides = [1, 1]} : vector<128x256xbf16> to vector<32x256xbf16>
    %cst_47 = arith.constant dense<0.000000e+00> : vector<32x32xf32>
    %107 = tpu.matmul %105, %106, %cst_47 {dimension_numbers = #tpu.dot_dimension_numbers<[1], [1], [0], [0], [0, 0, 1, 0], [], []>} : vector<32x256xbf16>, vector<32x256xbf16>, vector<32x32xf32> -> vector<32x32xf32>
    %c3_48 = arith.constant 3 : index
    %c0_49 = arith.constant 0 : index
    %c0_50 = arith.constant 0 : index
    %108 = vector.load %arg3[%c3_48, %c0_49, %c0_50] : memref<4x32x32xbf16, #tpu.memory_space<vmem>>, vector<1x32x32xbf16>
    %109 = vector.shape_cast %108 : vector<1x32x32xbf16> to vector<32x32xbf16>
    %110 = arith.truncf %107 : vector<32x32xf32> to vector<32x32xbf16>
    %cst_51 = arith.constant dense<0.000000e+00> : vector<32x32xf32>
    %111 = tpu.matmul %109, %110, %cst_51 {dimension_numbers = #tpu.dot_dimension_numbers<[1], [0], [0], [1], [0, 0, 1, 1], [], []>} : vector<32x32xbf16>, vector<32x32xbf16>, vector<32x32xf32> -> vector<32x32xf32>
    %112 = tpu.concatenate %90, %97, %104, %111 in 1 : vector<32x32xf32>, vector<32x32xf32>, vector<32x32xf32>, vector<32x32xf32> -> vector<32x128xf32>
    %113 = arith.truncf %112 : vector<32x128xf32> to vector<32x128xbf16>
    %cst_52 = arith.constant dense<0.000000e+00> : vector<32x256xf32>
    %114 = tpu.matmul %113, %70, %cst_52 {dimension_numbers = #tpu.dot_dimension_numbers<[1], [0], [0], [1], [0, 0, 1, 1], [], []>} : vector<32x128xbf16>, vector<128x256xbf16>, vector<32x256xf32> -> vector<32x256xf32>
    %115 = arith.addf %114, %22 : vector<32x256xf32>
    %c0_53 = arith.constant 0 : index
    %c256 = arith.constant 256 : index
    %116 = vector.load %arg5[%c0_53, %c256] : memref<32x512xf32, #tpu.memory_space<vmem>>, vector<32x256xf32>
    tpu.vector_store %arg5[%c0_53, %c256], %115 {strides = array<i32>} : memref<32x512xf32, #tpu.memory_space<vmem>>, vector<32x256xf32>,
    return
  }
  func.func @transform_0(%arg0: i32) -> (i32, i32) {
    %c0_i32 = arith.constant 0 : i32
    %c0_i32_0 = arith.constant 0 : i32
    return %c0_i32, %arg0 : i32, i32
  }
  func.func @transform_1(%arg0: i32) -> (i32, i32) {
    %c0_i32 = arith.constant 0 : i32
    %c0_i32_0 = arith.constant 0 : i32
    %c0_i32_1 = arith.constant 0 : i32
    return %c0_i32, %c0_i32_0 : i32, i32
  }
  func.func @transform_2(%arg0: i32) -> (i32, i32, i32) {
    %c0_i32 = arith.constant 0 : i32
    %c0_i32_0 = arith.constant 0 : i32
    %c0_i32_1 = arith.constant 0 : i32
    %c0_i32_2 = arith.constant 0 : i32
    return %c0_i32, %c0_i32_0, %c0_i32_1 : i32, i32, i32
  }
  func.func @transform_3(%arg0: i32) -> (i32, i32) {
    %c0_i32 = arith.constant 0 : i32
    %c0_i32_0 = arith.constant 0 : i32
    %c0_i32_1 = arith.constant 0 : i32
    return %c0_i32, %c0_i32_0 : i32, i32
  }
  func.func @transform_4(%arg0: i32) -> (i32, i32) {
    %c0_i32 = arith.constant 0 : i32
    %c0_i32_0 = arith.constant 0 : i32
    return %c0_i32, %arg0 : i32, i32
  }
}

</mosaic_0001>

<llo_original>
// kernel: spatial_linear_attention.1
$region0: #{spatial_linear_attention.1}
  #allocation0 [shape = 'u32[]', space=smem, size = 0x4, offset = 0x4, fixed_abs, tag = 'smem constant byte address 0x4 - core index']
  #allocation1 [shape = 'u32[72,128]{1,0:T(1,128)}', space=vmem, size = 0x9000, scoped, tag = 'internal scratch']
  %s0 = inlined_call_operand.vmem [shape: bf16[32,2048], index: 0, kind: input, shape index: {}]
  %s1 = inlined_call_operand.vmem [shape: bf16[384,32], index: 1, kind: input, shape index: {}]
  %s2 = inlined_call_operand.vmem [shape: bf16[4,32,32], index: 2, kind: input, shape index: {}]
  %s3 = inlined_call_operand.vmem [shape: f32[32,1], index: 3, kind: input, shape index: {}]
  %s4 = inlined_call_operand.vmem [shape: f32[32,2048], index: 4, kind: output, shape index: {}]
  %s5 = sld [smem:[#allocation0]]
  $region91: #{spatial_linear_attention.1} parent=0
    _
  %s7 = ssub.s32 1, %s5
  %s8 = scalar_select 0, %s7, %s5
  $region1: #{spatial_linear_attention.1} parent=0
    #allocation2 [shape = 'u8[65536]{0}', space=vmem, size = 0x10000, scoped, tag = 'input window, operand 0']
    #allocation3 [shape = 'u8[131072]{0}', space=vmem, size = 0x20000, scoped, tag = 'output window, operand 0']
    loop: start=0, step=1, limit=6
    $region2: #{spatial_linear_attention.1} parent=1 // loop_pre_header
      _
    $region3: #{spatial_linear_attention.1} parent=1 // loop_header
      %s10 = sphi 0, %s14
      %p11 = scmp.ge.s32.totalorder %s10, 6
      %s20 = sphi 0, %s22
      %s23 = sphi 0, %s20
      %s24 = sphi 0, %s23
      %s40 = sphi 0, %s24
      %s44 = sphi 0, %s44
      %s46 = sphi 0, %s44
      %s47 = sphi 0, %s46
      %s61 = sphi 0, %s47
      %s65 = sphi 0, %s65
      %s67 = sphi 0, %s65
      %s68 = sphi 0, %s67
      %s82 = sphi 0, %s68
      %s86 = sphi 0, %s86
      %s88 = sphi 0, %s86
      %s89 = sphi 0, %s88
      %s103 = sphi 0, %s89
      %s109 = sphi 0, %s111
      %s112 = sphi 0, %s109
      %s113 = sphi 0, %s112
      %s129 = sphi 0, %s113
    $region4: #{spatial_linear_attention.1} parent=1 // loop_header_branch
      %13 = sbr.rel (%p11) target = $region8
    $region5: #{spatial_linear_attention.1} parent=1 // loop_body
      %s15 = ssub.s32 %s10, 1
      %s16 = ssub.s32 %s10, 2
      %s17 = sadd.s32 %s10, 1
      %s18 = ssub.s32 %s10, %s17
      %p19 = scmp.eq.s32.totalorder %s18, 0
      %s21 = sadd.s32 %s20, 1
      %s22 = scalar_select %p19, %s20, %s21
      %p25 = pneg %p19
      %p26 = scmp.eq.s32.totalorder %s10, 3
      %p27 = por %p25, %p26
      %p28 = scmp.ne.s32.totalorder %s20, %s23
      %p29 = scmp.eq.s32.totalorder %s10, 0
      %p30 = por %p28, %p29
      %p31 = scmp.ne.s32.totalorder %s20, %s23
      %p32 = scmp.eq.s32.totalorder %s15, 3
      %p33 = por %p31, %p32
      %p34 = scmp.ne.s32.totalorder %s23, %s24
      %p35 = scmp.eq.s32.totalorder %s15, 0
      %p36 = por %p34, %p35
      %p37 = scmp.ne.s32.totalorder %s23, %s24
      %p38 = scmp.eq.s32.totalorder %s16, 3
      %p39 = por %p37, %p38
      %p41 = scmp.ne.s32.totalorder %s24, %s40
      %p42 = scmp.eq.s32.totalorder %s16, 0
      %p43 = por %p41, %p42
      %s45 = sadd.s32 %s44, 1
      %p48 = scmp.eq.s32.totalorder %s10, 3
      %p49 = scmp.ne.s32.totalorder %s44, %s46
      %p50 = scmp.eq.s32.totalorder %s10, 0
      %p51 = por %p49, %p50
      %p52 = scmp.ne.s32.totalorder %s44, %s46
      %p53 = scmp.eq.s32.totalorder %s15, 3
      %p54 = por %p52, %p53
      %p55 = scmp.ne.s32.totalorder %s46, %s47
      %p56 = scmp.eq.s32.totalorder %s15, 0
      %p57 = por %p55, %p56
      %p58 = scmp.ne.s32.totalorder %s46, %s47
      %p59 = scmp.eq.s32.totalorder %s16, 3
      %p60 = por %p58, %p59
      %p62 = scmp.ne.s32.totalorder %s47, %s61
      %p63 = scmp.eq.s32.totalorder %s16, 0
      %p64 = por %p62, %p63
      %s66 = sadd.s32 %s65, 1
      %p69 = scmp.eq.s32.totalorder %s10, 3
      %p70 = scmp.ne.s32.totalorder %s65, %s67
      %p71 = scmp.eq.s32.totalorder %s10, 0
      %p72 = por %p70, %p71
      %p73 = scmp.ne.s32.totalorder %s65, %s67
      %p74 = scmp.eq.s32.totalorder %s15, 3
      %p75 = por %p73, %p74
      %p76 = scmp.ne.s32.totalorder %s67, %s68
      %p77 = scmp.eq.s32.totalorder %s15, 0
      %p78 = por %p76, %p77
      %p79 = scmp.ne.s32.totalorder %s67, %s68
      %p80 = scmp.eq.s32.totalorder %s16, 3
      %p81 = por %p79, %p80
      %p83 = scmp.ne.s32.totalorder %s68, %s82
      %p84 = scmp.eq.s32.totalorder %s16, 0
      %p85 = por %p83, %p84
      %s87 = sadd.s32 %s86, 1
      %p90 = scmp.eq.s32.totalorder %s10, 3
      %p91 = scmp.ne.s32.totalorder %s86, %s88
      %p92 = scmp.eq.s32.totalorder %s10, 0
      %p93 = por %p91, %p92
      %p94 = scmp.ne.s32.totalorder %s86, %s88
      %p95 = scmp.eq.s32.totalorder %s15, 3
      %p96 = por %p94, %p95
      %p97 = scmp.ne.s32.totalorder %s88, %s89
      %p98 = scmp.eq.s32.totalorder %s15, 0
      %p99 = por %p97, %p98
      %p100 = scmp.ne.s32.totalorder %s88, %s89
      %p101 = scmp.eq.s32.totalorder %s16, 3
      %p102 = por %p100, %p101
      %p104 = scmp.ne.s32.totalorder %s89, %s103
      %p105 = scmp.eq.s32.totalorder %s16, 0
      %p106 = por %p104, %p105
      %s107 = ssub.s32 %s10, %s17
      %p108 = scmp.eq.s32.totalorder %s107, 0
      %s110 = sadd.s32 %s109, 1
      %s111 = scalar_select %p108, %s109, %s110
      %p114 = pneg %p108
      %p115 = scmp.eq.s32.totalorder %s10, 3
      %p116 = por %p114, %p115
      %p117 = scmp.ne.s32.totalorder %s109, %s112
      %p118 = scmp.eq.s32.totalorder %s10, 0
      %p119 = por %p117, %p118
      %p120 = scmp.ne.s32.totalorder %s109, %s112
      %p121 = scmp.eq.s32.totalorder %s15, 3
      %p122 = por %p120, %p121
      %p123 = scmp.ne.s32.totalorder %s112, %s113
      %p124 = scmp.eq.s32.totalorder %s15, 0
      %p125 = por %p123, %p124
      %p126 = scmp.ne.s32.totalorder %s112, %s113
      %p127 = scmp.eq.s32.totalorder %s16, 3
      %p128 = por %p126, %p127
      %p130 = scmp.ne.s32.totalorder %s113, %s129
      %p131 = scmp.eq.s32.totalorder %s16, 0
      %p132 = por %p130, %p131
      %p133 = scmp.le.s32.totalorder 1, %s10
      %p134 = scmp.lt.s32.totalorder %s10, 5
      %p135 = pnand %p133, %p134
      %p136 = pneg %p135
      // Predicated region
      $region9: #{spatial_linear_attention.1} parent=5 // pred_check
        _
      $region10: #{spatial_linear_attention.1} parent=5 // pred_check_branch
        %138 = sbr.rel (%p135) target = $region12
      $region11: #{spatial_linear_attention.1} parent=5 // pred_region
        %s139 = ssub.s32 %s10, 1
        // Predicated region
        $region13: #{spatial_linear_attention.1} parent=11 // pred_check
          %p140 = pneg %p57
        $region14: #{spatial_linear_attention.1} parent=11 // pred_check_branch
          %142 = sbr.rel (%p140) target = $region16
        $region15: #{spatial_linear_attention.1} parent=11 // pred_region
          _
        $region16: #{spatial_linear_attention.1} parent=11 // pred_fallthru
          _
        // Predicated region
        $region17: #{spatial_linear_attention.1} parent=11 // pred_check
          %p143 = pneg %p78
        $region18: #{spatial_linear_attention.1} parent=11 // pred_check_branch
          %145 = sbr.rel (%p143) target = $region20
        $region19: #{spatial_linear_attention.1} parent=11 // pred_region
          _
        $region20: #{spatial_linear_attention.1} parent=11 // pred_fallthru
          _
        // Predicated region
        $region21: #{spatial_linear_attention.1} parent=11 // pred_check
          %p146 = pneg %p99
        $region22: #{spatial_linear_attention.1} parent=11 // pred_check_branch
          %148 = sbr.rel (%p146) target = $region24
        $region23: #{spatial_linear_attention.1} parent=11 // pred_region
          _
        $region24: #{spatial_linear_attention.1} parent=11 // pred_fallthru
          _
      $region12: #{spatial_linear_attention.1} parent=5 // pred_fallthru
        _
      %p149 = scmp.lt.s32.totalorder %s10, 4
      // Predicated region
      $region25: #{spatial_linear_attention.1} parent=5 // pred_check
        %p150 = pneg %p149
      $region26: #{spatial_linear_attention.1} parent=5 // pred_check_branch
        %152 = sbr.rel (%p150) target = $region28
      $region27: #{spatial_linear_attention.1} parent=5 // pred_region
        // Predicated region
        $region29: #{spatial_linear_attention.1} parent=27 // pred_check
          %p153 = pneg %p30
        $region30: #{spatial_linear_attention.1} parent=27 // pred_check_branch
          %155 = sbr.rel (%p153) target = $region32
        $region31: #{spatial_linear_attention.1} parent=27 // pred_region
          %s156 = sand.u32 %s20, 1
          %s157 = sand.u32 %s20, 1
          %s158 = smul.addr %s157, 64
          %s159 = scalar_lea.vmem [#allocation2], %s158
          %s160 = smul.u32 4, %s10
          %s161 = smul.addr %s160, 4
          %s162 = scalar_lea.vmem %s0, %s161
          // Predicated region
          $region33: #{spatial_linear_attention.1} parent=31 // pred_check
            _
          $region34: #{spatial_linear_attention.1} parent=31 // pred_check_branch
            %164 = sbr.rel (0) target = $region36
          $region35: #{spatial_linear_attention.1} parent=31 // pred_region
            // Predicated region
            $region37: #{spatial_linear_attention.1} parent=35 // pred_check
              _
            $region38: #{spatial_linear_attention.1} parent=35 // pred_check_branch
              %166 = sbr.rel (0) target = $region40
            $region39: #{spatial_linear_attention.1} parent=35 // pred_region
              loop: start=0, step=1, limit=1
              $region41: #{spatial_linear_attention.1} parent=39 // loop_pre_header
                _
              $region42: #{spatial_linear_attention.1} parent=39 // loop_header
                %s168 = sphi 0, %s172
                %p169 = scmp.ge.s32.totalorder %s168, 1
                %s173 = sphi %s162, %s162
                %s174 = sphi %s159, %s159
              $region43: #{spatial_linear_attention.1} parent=39 // loop_header_branch
                %171 = sbr.rel (%p169) target = $region47
              $region44: #{spatial_linear_attention.1} parent=39 // loop_body
                %v175 = vld [vmem:[%s173] sm:$0xff]
                %176 = vst [vmem:[%s174] sm:$0xff] %v175
                %v177 = vld [vmem:[%s173 + $0x8] sm:$0xff]
                %178 = vst [vmem:[%s174 + $0x8] sm:$0xff] %v177
                %v179 = vld [vmem:[%s173 + $0x40] sm:$0xff]
                %180 = vst [vmem:[%s174 + $0x10] sm:$0xff] %v179
                %v181 = vld [vmem:[%s173 + $0x48] sm:$0xff]
                %182 = vst [vmem:[%s174 + $0x18] sm:$0xff] %v181
                %v183 = vld [vmem:[%s173 + $0x80] sm:$0xff]
                %184 = vst [vmem:[%s174 + $0x20] sm:$0xff] %v183
                %v185 = vld [vmem:[%s173 + $0x88] sm:$0xff]
                %186 = vst [vmem:[%s174 + $0x28] sm:$0xff] %v185
                %v187 = vld [vmem:[%s173 + $0xc0] sm:$0xff]
                %188 = vst [vmem:[%s174 + $0x30] sm:$0xff] %v187
                %v189 = vld [vmem:[%s173 + $0xc8] sm:$0xff]
                %190 = vst [vmem:[%s174 + $0x38] sm:$0xff] %v189
              $region45: #{spatial_linear_attention.1} parent=39 // loop_footer
                %s172 = sadd.s32 1, %s168
              $region46: #{spatial_linear_attention.1} parent=39 // loop_footer_branch
                %167 = sbr.rel target = $region42
              $region47: #{spatial_linear_attention.1} parent=39 // loop_exit
                _
            $region40: #{spatial_linear_attention.1} parent=35 // pred_fallthru
              _
            // Predicated region
            $region48: #{spatial_linear_attention.1} parent=35 // pred_check
              _
            $region49: #{spatial_linear_attention.1} parent=35 // pred_check_branch
              %192 = sbr.rel target = $region51
            $region50: #{spatial_linear_attention.1} parent=35 // pred_region
              _
            $region51: #{spatial_linear_attention.1} parent=35 // pred_fallthru
              _
          $region36: #{spatial_linear_attention.1} parent=31 // pred_fallthru
            _
          %193 = vnop
        $region32: #{spatial_linear_attention.1} parent=27 // pred_fallthru
          _
      $region28: #{spatial_linear_attention.1} parent=5 // pred_fallthru
        _
      %p194 = scmp.le.s32.totalorder 1, %s10
      %p195 = scmp.lt.s32.totalorder %s10, 5
      %p196 = pnand %p194, %p195
      %p197 = pneg %p196
      // Predicated region
      $region52: #{spatial_linear_attention.1} parent=5 // pred_check
        _
      $region53: #{spatial_linear_attention.1} parent=5 // pred_check_branch
        %199 = sbr.rel (%p196) target = $region55
      $region54: #{spatial_linear_attention.1} parent=5 // pred_region
        %s200 = ssub.s32 %s10, 1
        %s201 = sand.u32 %s23, 1
        %s202 = sand.u32 %s23, 1
        %s203 = smul.addr %s202, 64
        %s204 = scalar_lea.vmem [#allocation2], %s203
        // Predicated region
        $region56: #{spatial_linear_attention.1} parent=54 // pred_check
          %p205 = pneg %p36
        $region57: #{spatial_linear_attention.1} parent=54 // pred_check_branch
          %207 = sbr.rel (%p205) target = $region59
        $region58: #{spatial_linear_attention.1} parent=54 // pred_region
          _
        $region59: #{spatial_linear_attention.1} parent=54 // pred_fallthru
          _
        %s208 = sand.u32 %s23, 1
        %s209 = sand.u32 %s23, 1
        %s210 = smul.addr %s209, 64
        %s211 = scalar_lea.vmem [#allocation2], %s210
        %p212 = pneg %p36
        %p213 = pneg %p33
        %p214 = pneg %p57
        %p215 = pneg %p54
        %p216 = pneg %p78
        %p217 = pneg %p75
        %p218 = pneg %p99
        %p219 = pneg %p96
        %p220 = pneg %p125
        %p221 = pneg %p122
        %s222 = sand.u32 %s112, 1
        %s223 = sand.u32 %s112, 1
        %s224 = smul.addr %s223, 128
        %s225 = scalar_lea.vmem [#allocation3], %s224
        %s226 = smul.u32 4, %s15
        %s227 = smul.u32 4, %s15
        %v229 = vld [vmem:[%s204] sm:$0xff]
        %v230 = vld [vmem:[%s204 + $0x8] sm:$0xff]
        %v231 = vld [vmem:[%s204 + $0x10] sm:$0xff]
        %v232 = vld [vmem:[%s204 + $0x18] sm:$0xff]
        %v233 = vld [vmem:[%s204 + $0x20] sm:$0xff]
        %v234 = vld [vmem:[%s204 + $0x28] sm:$0xff]
        %v235 = vld [vmem:[%s204 + $0x30] sm:$0xff]
        %v236 = vld [vmem:[%s204 + $0x38] sm:$0xff]
        %v237 = vld [vmem:[%s1] sm:$0xf]
        %v238 = vld [vmem:[%s1 + $0x4] sm:$0xf]
        %v239 = vld [vmem:[%s1 + $0x8] sm:$0xf]
        %v240 = vld [vmem:[%s1 + $0xc] sm:$0xf]
        %v241 = vld [vmem:[%s1 + $0x10] sm:$0xf]
        %v242 = vld [vmem:[%s1 + $0x14] sm:$0xf]
        %v243 = vld [vmem:[%s1 + $0x18] sm:$0xf]
        %v244 = vld [vmem:[%s1 + $0x1c] sm:$0xf]
        %v245 = vld [vmem:[%s1 + $0x20] sm:$0xf]
        %v246 = vld [vmem:[%s1 + $0x24] sm:$0xf]
        %v247 = vld [vmem:[%s1 + $0x28] sm:$0xf]
        %v248 = vld [vmem:[%s1 + $0x2c] sm:$0xf]
        %v249 = vld [vmem:[%s1 + $0x30] sm:$0xf]
        %v250 = vld [vmem:[%s1 + $0x34] sm:$0xf]
        %v251 = vld [vmem:[%s1 + $0x38] sm:$0xf]
        %v252 = vld [vmem:[%s1 + $0x3c] sm:$0xf]
        %v253 = vld [vmem:[%s1 + $0x40] sm:$0xf]
        %v254 = vld [vmem:[%s1 + $0x44] sm:$0xf]
        %v255 = vld [vmem:[%s1 + $0x48] sm:$0xf]
        %v256 = vld [vmem:[%s1 + $0x4c] sm:$0xf]
        %v257 = vld [vmem:[%s1 + $0x50] sm:$0xf]
        %v258 = vld [vmem:[%s1 + $0x54] sm:$0xf]
        %v259 = vld [vmem:[%s1 + $0x58] sm:$0xf]
        %v260 = vld [vmem:[%s1 + $0x5c] sm:$0xf]
        %v261 = vld [vmem:[%s1 + $0x60] sm:$0xf]
        %v262 = vld [vmem:[%s1 + $0x64] sm:$0xf]
        %v263 = vld [vmem:[%s1 + $0x68] sm:$0xf]
        %v264 = vld [vmem:[%s1 + $0x6c] sm:$0xf]
        %v265 = vld [vmem:[%s1 + $0x70] sm:$0xf]
        %v266 = vld [vmem:[%s1 + $0x74] sm:$0xf]
        %v267 = vld [vmem:[%s1 + $0x78] sm:$0xf]
        %v268 = vld [vmem:[%s1 + $0x7c] sm:$0xf]
        %v269 = vld [vmem:[%s1 + $0x80] sm:$0xf]
        %v270 = vld [vmem:[%s1 + $0x84] sm:$0xf]
        %v271 = vld [vmem:[%s1 + $0x88] sm:$0xf]
        %v272 = vld [vmem:[%s1 + $0x8c] sm:$0xf]
        %v273 = vld [vmem:[%s1 + $0x90] sm:$0xf]
        %v274 = vld [vmem:[%s1 + $0x94] sm:$0xf]
        %v275 = vld [vmem:[%s1 + $0x98] sm:$0xf]
        %v276 = vld [vmem:[%s1 + $0x9c] sm:$0xf]
        %v277 = vld [vmem:[%s1 + $0xa0] sm:$0xf]
        %v278 = vld [vmem:[%s1 + $0xa4] sm:$0xf]
        %v279 = vld [vmem:[%s1 + $0xa8] sm:$0xf]
        %v280 = vld [vmem:[%s1 + $0xac] sm:$0xf]
        %v281 = vld [vmem:[%s1 + $0xb0] sm:$0xf]
        %v282 = vld [vmem:[%s1 + $0xb4] sm:$0xf]
        %v283 = vld [vmem:[%s1 + $0xb8] sm:$0xf]
        %v284 = vld [vmem:[%s1 + $0xbc] sm:$0xf]
        %v333 = vunpack.c.l.b16 %v237
        %v334 = vunpack.c.l.b16 %v238
        %v335 = vunpack.c.l.b16 %v239
        %v336 = vunpack.c.l.b16 %v240
        %v337 = vunpack.c.l.b16 %v241
        %v338 = vunpack.c.l.b16 %v242
        %v339 = vunpack.c.l.b16 %v243
        %v340 = vunpack.c.l.b16 %v244
        %v341 = vunpack.c.l.b16 %v245
        %v342 = vunpack.c.l.b16 %v246
        %v343 = vunpack.c.l.b16 %v247
        %v344 = vunpack.c.l.b16 %v248
        %v345 = vunpack.c.l.b16 %v249
        %v346 = vunpack.c.l.b16 %v250
        %v347 = vunpack.c.l.b16 %v251
        %v348 = vunpack.c.l.b16 %v252
        %v349 = vunpack.c.l.b16 %v253
        %v350 = vunpack.c.l.b16 %v254
        %v351 = vunpack.c.l.b16 %v255
        %v352 = vunpack.c.l.b16 %v256
        %v353 = vunpack.c.l.b16 %v257
        %v354 = vunpack.c.l.b16 %v258
        %v355 = vunpack.c.l.b16 %v259
        %v356 = vunpack.c.l.b16 %v260
        %v357 = vunpack.c.l.b16 %v261
        %v358 = vunpack.c.l.b16 %v262
        %v359 = vunpack.c.l.b16 %v263
        %v360 = vunpack.c.l.b16 %v264
        %v361 = vunpack.c.l.b16 %v265
        %v362 = vunpack.c.l.b16 %v266
        %v363 = vunpack.c.l.b16 %v267
        %v364 = vunpack.c.l.b16 %v268
        %v365 = vunpack.c.l.b16 %v269
        %v366 = vunpack.c.l.b16 %v270
        %v367 = vunpack.c.l.b16 %v271
        %v368 = vunpack.c.l.b16 %v272
        %v369 = vunpack.c.l.b16 %v273
        %v370 = vunpack.c.l.b16 %v274
        %v371 = vunpack.c.l.b16 %v275
        %v372 = vunpack.c.l.b16 %v276
        %v373 = vunpack.c.l.b16 %v277
        %v374 = vunpack.c.l.b16 %v278
        %v375 = vunpack.c.l.b16 %v279
        %v376 = vunpack.c.l.b16 %v280
        %v377 = vunpack.c.l.b16 %v281
        %v378 = vunpack.c.l.b16 %v282
        %v379 = vunpack.c.l.b16 %v283
        %v380 = vunpack.c.l.b16 %v284
        %v381 = vpack.c.b16 %v334, %v333
        %v382 = vpack.c.b16 %v336, %v335
        %v383 = vpack.c.b16 %v338, %v337
        %v384 = vpack.c.b16 %v340, %v339
        %v385 = vpack.c.b16 %v342, %v341
        %v386 = vpack.c.b16 %v344, %v343
        %v387 = vpack.c.b16 %v346, %v345
        %v388 = vpack.c.b16 %v348, %v347
        %v389 = vpack.c.b16 %v350, %v349
        %v390 = vpack.c.b16 %v352, %v351
        %v391 = vpack.c.b16 %v354, %v353
        %v392 = vpack.c.b16 %v356, %v355
        %v393 = vpack.c.b16 %v358, %v357
        %v394 = vpack.c.b16 %v360, %v359
        %v395 = vpack.c.b16 %v362, %v361
        %v396 = vpack.c.b16 %v364, %v363
        %v397 = vpack.c.b16 %v366, %v365
        %v398 = vpack.c.b16 %v368, %v367
        %v399 = vpack.c.b16 %v370, %v369
        %v400 = vpack.c.b16 %v372, %v371
        %v401 = vpack.c.b16 %v374, %v373
        %v402 = vpack.c.b16 %v376, %v375
        %v403 = vpack.c.b16 %v378, %v377
        %v404 = vpack.c.b16 %v380, %v379
        %v413 = vunpack.c.l.b16 %v229
        %v414 = vunpack.c.h.b16 %v229
        %v415 = vunpack.c.l.b16 %v230
        %v416 = vunpack.c.h.b16 %v230
        %v417 = vunpack.c.l.b16 %v231
        %v418 = vunpack.c.h.b16 %v231
        %v419 = vunpack.c.l.b16 %v232
        %v420 = vunpack.c.h.b16 %v232
        %v421 = vunpack.c.l.b16 %v233
        %v422 = vunpack.c.h.b16 %v233
        %v423 = vunpack.c.l.b16 %v234
        %v424 = vunpack.c.h.b16 %v234
        %v425 = vunpack.c.l.b16 %v235
        %v426 = vunpack.c.h.b16 %v235
        %v427 = vunpack.c.l.b16 %v236
        %v428 = vunpack.c.h.b16 %v236
        %v429 = vpack.c.b16 %v417, %v413
        %v430 = vpack.c.b16 %v418, %v414
        %v431 = vpack.c.b16 %v419, %v415
        %v432 = vpack.c.b16 %v420, %v416
        %v433 = vpack.c.b16 %v425, %v421
        %v434 = vpack.c.b16 %v426, %v422
        %v435 = vpack.c.b16 %v427, %v423
        %v436 = vpack.c.b16 %v428, %v424
        %vm445 = vcmask 261120
        %v447 = vsel %vm445, %v381, 0
        %v450 = vsel %vm445, %v382, 0
        %v453 = vsel %vm445, %v383, 0
        %v456 = vsel %vm445, %v384, 0
        %v459 = vsel %vm445, %v385, 0
        %v462 = vsel %vm445, %v386, 0
        %v465 = vsel %vm445, %v387, 0
        %v468 = vsel %vm445, %v388, 0
        %v471 = vsel %vm445, %v389, 0
        %v474 = vsel %vm445, %v390, 0
        %v477 = vsel %vm445, %v391, 0
        %v480 = vsel %vm445, %v392, 0
        %v483 = vsel %vm445, %v393, 0
        %v486 = vsel %vm445, %v394, 0
        %v489 = vsel %vm445, %v395, 0
        %v492 = vsel %vm445, %v396, 0
        %v495 = vsel %vm445, %v397, 0
        %v498 = vsel %vm445, %v398, 0
        %v501 = vsel %vm445, %v399, 0
        %v504 = vsel %vm445, %v400, 0
        %v507 = vsel %vm445, %v401, 0
        %v510 = vsel %vm445, %v402, 0
        %v513 = vsel %vm445, %v403, 0
        %v516 = vsel %vm445, %v404, 0
        %518 = vmatpush.bf16.msra.mxu0 0
        %519 = vmatpush.bf16.msra.mxu0 0
        %520 = vmatpush.bf16.msra.mxu0 0
        %521 = vmatpush.bf16.msra.mxu0 0
        %522 = vmatpush.bf16.msra.mxu0 0
        %523 = vmatpush.bf16.msra.mxu0 0
        %524 = vmatpush.bf16.msra.mxu0 %v433
        %525 = vmatpush.bf16.msra.mxu0 %v429
        %526 = vmatmul.bf16.gmra.mxu0 %v447
        %v527 = vpop.f32.mrf.mxu0
        %v528 = vadd.f32 0.0, %v527
        %v529 = vpop.f32.mrf.mxu0
        %v530 = vadd.f32 0.0, %v529
        %531 = vmatmul.bf16.gmra.mxu0 %v450
        %v532 = vpop.f32.mrf.mxu0
        %v533 = vadd.f32 0.0, %v532
        %v534 = vpop.f32.mrf.mxu0
        %v535 = vadd.f32 0.0, %v534
        %536 = vmatmul.bf16.gmra.mxu0 %v453
        %v537 = vpop.f32.mrf.mxu0
        %v538 = vadd.f32 0.0, %v537
        %v539 = vpop.f32.mrf.mxu0
        %v540 = vadd.f32 0.0, %v539
        %541 = vmatmul.bf16.gmra.mxu0 %v456
        %v542 = vpop.f32.mrf.mxu0
        %v543 = vadd.f32 0.0, %v542
        %v544 = vpop.f32.mrf.mxu0
        %v545 = vadd.f32 0.0, %v544
        %546 = vmatmul.bf16.gmra.mxu0 %v459
        %v547 = vpop.f32.mrf.mxu0
        %v548 = vadd.f32 0.0, %v547
        %v549 = vpop.f32.mrf.mxu0
        %v550 = vadd.f32 0.0, %v549
        %551 = vmatmul.bf16.gmra.mxu0 %v462
        %v552 = vpop.f32.mrf.mxu0
        %v553 = vadd.f32 0.0, %v552
        %v554 = vpop.f32.mrf.mxu0
        %v555 = vadd.f32 0.0, %v554
        %556 = vmatmul.bf16.gmra.mxu0 %v465
        %v557 = vpop.f32.mrf.mxu0
        %v558 = vadd.f32 0.0, %v557
        %v559 = vpop.f32.mrf.mxu0
        %v560 = vadd.f32 0.0, %v559
        %561 = vmatmul.bf16.gmra.mxu0 %v468
        %v562 = vpop.f32.mrf.mxu0
        %v563 = vadd.f32 0.0, %v562
        %v564 = vpop.f32.mrf.mxu0
        %v565 = vadd.f32 0.0, %v564
        %566 = vmatmul.bf16.gmra.mxu0 %v471
        %v567 = vpop.f32.mrf.mxu0
        %v568 = vadd.f32 0.0, %v567
        %v569 = vpop.f32.mrf.mxu0
        %v570 = vadd.f32 0.0, %v569
        %571 = vmatmul.bf16.gmra.mxu0 %v474
        %v572 = vpop.f32.mrf.mxu0
        %v573 = vadd.f32 0.0, %v572
        %v574 = vpop.f32.mrf.mxu0
        %v575 = vadd.f32 0.0, %v574
        %576 = vmatmul.bf16.gmra.mxu0 %v477
        %v577 = vpop.f32.mrf.mxu0
        %v578 = vadd.f32 0.0, %v577
        %v579 = vpop.f32.mrf.mxu0
        %v580 = vadd.f32 0.0, %v579
        %581 = vmatmul.bf16.gmra.mxu0 %v480
        %v582 = vpop.f32.mrf.mxu0
        %v583 = vadd.f32 0.0, %v582
        %v584 = vpop.f32.mrf.mxu0
        %v585 = vadd.f32 0.0, %v584
        %586 = vmatmul.bf16.gmra.mxu0 %v483
        %v587 = vpop.f32.mrf.mxu0
        %v588 = vadd.f32 0.0, %v587
        %v589 = vpop.f32.mrf.mxu0
        %v590 = vadd.f32 0.0, %v589
        %591 = vmatmul.bf16.gmra.mxu0 %v486
        %v592 = vpop.f32.mrf.mxu0
        %v593 = vadd.f32 0.0, %v592
        %v594 = vpop.f32.mrf.mxu0
        %v595 = vadd.f32 0.0, %v594
        %596 = vmatmul.bf16.gmra.mxu0 %v489
        %v597 = vpop.f32.mrf.mxu0
        %v598 = vadd.f32 0.0, %v597
        %v599 = vpop.f32.mrf.mxu0
        %v600 = vadd.f32 0.0, %v599
        %601 = vmatmul.bf16.gmra.mxu0 %v492
        %v602 = vpop.f32.mrf.mxu0
        %v603 = vadd.f32 0.0, %v602
        %v604 = vpop.f32.mrf.mxu0
        %v605 = vadd.f32 0.0, %v604
        %606 = vmatmul.bf16.gmra.mxu0 %v495
        %v607 = vpop.f32.mrf.mxu0
        %v608 = vadd.f32 0.0, %v607
        %v609 = vpop.f32.mrf.mxu0
        %v610 = vadd.f32 0.0, %v609
        %611 = vmatmul.bf16.gmra.mxu0 %v498
        %v612 = vpop.f32.mrf.mxu0
        %v613 = vadd.f32 0.0, %v612
        %v614 = vpop.f32.mrf.mxu0
        %v615 = vadd.f32 0.0, %v614
        %616 = vmatmul.bf16.gmra.mxu0 %v501
        %v617 = vpop.f32.mrf.mxu0
        %v618 = vadd.f32 0.0, %v617
        %v619 = vpop.f32.mrf.mxu0
        %v620 = vadd.f32 0.0, %v619
        %621 = vmatmul.bf16.gmra.mxu0 %v504
        %v622 = vpop.f32.mrf.mxu0
        %v623 = vadd.f32 0.0, %v622
        %v624 = vpop.f32.mrf.mxu0
        %v625 = vadd.f32 0.0, %v624
        %626 = vmatmul.bf16.gmra.mxu0 %v507
        %v627 = vpop.f32.mrf.mxu0
        %v628 = vadd.f32 0.0, %v627
        %v629 = vpop.f32.mrf.mxu0
        %v630 = vadd.f32 0.0, %v629
        %631 = vmatmul.bf16.gmra.mxu0 %v510
        %v632 = vpop.f32.mrf.mxu0
        %v633 = vadd.f32 0.0, %v632
        %v634 = vpop.f32.mrf.mxu0
        %v635 = vadd.f32 0.0, %v634
        %636 = vmatmul.bf16.gmra.mxu0 %v513
        %v637 = vpop.f32.mrf.mxu0
        %v638 = vadd.f32 0.0, %v637
        %v639 = vpop.f32.mrf.mxu0
        %v640 = vadd.f32 0.0, %v639
        %641 = vmatmul.bf16.gmra.mxu0 %v516
        %v642 = vpop.f32.mrf.mxu0
        %v643 = vadd.f32 0.0, %v642
        %v644 = vpop.f32.mrf.mxu0
        %v645 = vadd.f32 0.0, %v644
        %646 = vdwg.mxu0
        %647 = vmatpush.bf16.msra.mxu0 0
        %648 = vmatpush.bf16.msra.mxu0 0
        %649 = vmatpush.bf16.msra.mxu0 0
        %650 = vmatpush.bf16.msra.mxu0 0
        %651 = vmatpush.bf16.msra.mxu0 0
        %652 = vmatpush.bf16.msra.mxu0 0
        %653 = vmatpush.bf16.msra.mxu0 %v434
        %654 = vmatpush.bf16.msra.mxu0 %v430
        %655 = vmatmul.bf16.gmra.mxu0 %v447
        %v656 = vpop.f32.mrf.mxu0
        %v657 = vadd.f32 0.0, %v656
        %v658 = vpop.f32.mrf.mxu0
        %v659 = vadd.f32 0.0, %v658
        %660 = vmatmul.bf16.gmra.mxu0 %v450
        %v661 = vpop.f32.mrf.mxu0
        %v662 = vadd.f32 0.0, %v661
        %v663 = vpop.f32.mrf.mxu0
        %v664 = vadd.f32 0.0, %v663
        %665 = vmatmul.bf16.gmra.mxu0 %v453
        %v666 = vpop.f32.mrf.mxu0
        %v667 = vadd.f32 0.0, %v666
        %v668 = vpop.f32.mrf.mxu0
        %v669 = vadd.f32 0.0, %v668
        %670 = vmatmul.bf16.gmra.mxu0 %v456
        %v671 = vpop.f32.mrf.mxu0
        %v672 = vadd.f32 0.0, %v671
        %v673 = vpop.f32.mrf.mxu0
        %v674 = vadd.f32 0.0, %v673
        %675 = vmatmul.bf16.gmra.mxu0 %v459
        %v676 = vpop.f32.mrf.mxu0
        %v677 = vadd.f32 0.0, %v676
        %v678 = vpop.f32.mrf.mxu0
        %v679 = vadd.f32 0.0, %v678
        %680 = vmatmul.bf16.gmra.mxu0 %v462
        %v681 = vpop.f32.mrf.mxu0
        %v682 = vadd.f32 0.0, %v681
        %v683 = vpop.f32.mrf.mxu0
        %v684 = vadd.f32 0.0, %v683
        %685 = vmatmul.bf16.gmra.mxu0 %v465
        %v686 = vpop.f32.mrf.mxu0
        %v687 = vadd.f32 0.0, %v686
        %v688 = vpop.f32.mrf.mxu0
        %v689 = vadd.f32 0.0, %v688
        %690 = vmatmul.bf16.gmra.mxu0 %v468
        %v691 = vpop.f32.mrf.mxu0
        %v692 = vadd.f32 0.0, %v691
        %v693 = vpop.f32.mrf.mxu0
        %v694 = vadd.f32 0.0, %v693
        %695 = vmatmul.bf16.gmra.mxu0 %v471
        %v696 = vpop.f32.mrf.mxu0
        %v697 = vadd.f32 0.0, %v696
        %v698 = vpop.f32.mrf.mxu0
        %v699 = vadd.f32 0.0, %v698
        %700 = vmatmul.bf16.gmra.mxu0 %v474
        %v701 = vpop.f32.mrf.mxu0
        %v702 = vadd.f32 0.0, %v701
        %v703 = vpop.f32.mrf.mxu0
        %v704 = vadd.f32 0.0, %v703
        %705 = vmatmul.bf16.gmra.mxu0 %v477
        %v706 = vpop.f32.mrf.mxu0
        %v707 = vadd.f32 0.0, %v706
        %v708 = vpop.f32.mrf.mxu0
        %v709 = vadd.f32 0.0, %v708
        %710 = vmatmul.bf16.gmra.mxu0 %v480
        %v711 = vpop.f32.mrf.mxu0
        %v712 = vadd.f32 0.0, %v711
        %v713 = vpop.f32.mrf.mxu0
        %v714 = vadd.f32 0.0, %v713
        %715 = vmatmul.bf16.gmra.mxu0 %v483
        %v716 = vpop.f32.mrf.mxu0
        %v717 = vadd.f32 0.0, %v716
        %v718 = vpop.f32.mrf.mxu0
        %v719 = vadd.f32 0.0, %v718
        %720 = vmatmul.bf16.gmra.mxu0 %v486
        %v721 = vpop.f32.mrf.mxu0
        %v722 = vadd.f32 0.0, %v721
        %v723 = vpop.f32.mrf.mxu0
        %v724 = vadd.f32 0.0, %v723
        %725 = vmatmul.bf16.gmra.mxu0 %v489
        %v726 = vpop.f32.mrf.mxu0
        %v727 = vadd.f32 0.0, %v726
        %v728 = vpop.f32.mrf.mxu0
        %v729 = vadd.f32 0.0, %v728
        %730 = vmatmul.bf16.gmra.mxu0 %v492
        %v731 = vpop.f32.mrf.mxu0
        %v732 = vadd.f32 0.0, %v731
        %v733 = vpop.f32.mrf.mxu0
        %v734 = vadd.f32 0.0, %v733
        %735 = vmatmul.bf16.gmra.mxu0 %v495
        %v736 = vpop.f32.mrf.mxu0
        %v737 = vadd.f32 0.0, %v736
        %v738 = vpop.f32.mrf.mxu0
        %v739 = vadd.f32 0.0, %v738
        %740 = vmatmul.bf16.gmra.mxu0 %v498
        %v741 = vpop.f32.mrf.mxu0
        %v742 = vadd.f32 0.0, %v741
        %v743 = vpop.f32.mrf.mxu0
        %v744 = vadd.f32 0.0, %v743
        %745 = vmatmul.bf16.gmra.mxu0 %v501
        %v746 = vpop.f32.mrf.mxu0
        %v747 = vadd.f32 0.0, %v746
        %v748 = vpop.f32.mrf.mxu0
        %v749 = vadd.f32 0.0, %v748
        %750 = vmatmul.bf16.gmra.mxu0 %v504
        %v751 = vpop.f32.mrf.mxu0
        %v752 = vadd.f32 0.0, %v751
        %v753 = vpop.f32.mrf.mxu0
        %v754 = vadd.f32 0.0, %v753
        %755 = vmatmul.bf16.gmra.mxu0 %v507
        %v756 = vpop.f32.mrf.mxu0
        %v757 = vadd.f32 0.0, %v756
        %v758 = vpop.f32.mrf.mxu0
        %v759 = vadd.f32 0.0, %v758
        %760 = vmatmul.bf16.gmra.mxu0 %v510
        %v761 = vpop.f32.mrf.mxu0
        %v762 = vadd.f32 0.0, %v761
        %v763 = vpop.f32.mrf.mxu0
        %v764 = vadd.f32 0.0, %v763
        %765 = vmatmul.bf16.gmra.mxu0 %v513
        %v766 = vpop.f32.mrf.mxu0
        %v767 = vadd.f32 0.0, %v766
        %v768 = vpop.f32.mrf.mxu0
        %v769 = vadd.f32 0.0, %v768
        %770 = vmatmul.bf16.gmra.mxu0 %v516
        %v771 = vpop.f32.mrf.mxu0
        %v772 = vadd.f32 0.0, %v771
        %v773 = vpop.f32.mrf.mxu0
        %v774 = vadd.f32 0.0, %v773
        %775 = vdwg.mxu0
        %776 = vmatpush.bf16.msra.mxu0 0
        %777 = vmatpush.bf16.msra.mxu0 0
        %778 = vmatpush.bf16.msra.mxu0 0
        %779 = vmatpush.bf16.msra.mxu0 0
        %780 = vmatpush.bf16.msra.mxu0 0
        %781 = vmatpush.bf16.msra.mxu0 0
        %782 = vmatpush.bf16.msra.mxu0 %v435
        %783 = vmatpush.bf16.msra.mxu0 %v431
        %784 = vmatmul.bf16.gmra.mxu0 %v447
        %v785 = vpop.f32.mrf.mxu0
        %v786 = vadd.f32 0.0, %v785
        %v787 = vpop.f32.mrf.mxu0
        %v788 = vadd.f32 0.0, %v787
        %789 = vmatmul.bf16.gmra.mxu0 %v450
        %v790 = vpop.f32.mrf.mxu0
        %v791 = vadd.f32 0.0, %v790
        %v792 = vpop.f32.mrf.mxu0
        %v793 = vadd.f32 0.0, %v792
        %794 = vmatmul.bf16.gmra.mxu0 %v453
        %v795 = vpop.f32.mrf.mxu0
        %v796 = vadd.f32 0.0, %v795
        %v797 = vpop.f32.mrf.mxu0
        %v798 = vadd.f32 0.0, %v797
        %799 = vmatmul.bf16.gmra.mxu0 %v456
        %v800 = vpop.f32.mrf.mxu0
        %v801 = vadd.f32 0.0, %v800
        %v802 = vpop.f32.mrf.mxu0
        %v803 = vadd.f32 0.0, %v802
        %804 = vmatmul.bf16.gmra.mxu0 %v459
        %v805 = vpop.f32.mrf.mxu0
        %v806 = vadd.f32 0.0, %v805
        %v807 = vpop.f32.mrf.mxu0
        %v808 = vadd.f32 0.0, %v807
        %809 = vmatmul.bf16.gmra.mxu0 %v462
        %v810 = vpop.f32.mrf.mxu0
        %v811 = vadd.f32 0.0, %v810
        %v812 = vpop.f32.mrf.mxu0
        %v813 = vadd.f32 0.0, %v812
        %814 = vmatmul.bf16.gmra.mxu0 %v465
        %v815 = vpop.f32.mrf.mxu0
        %v816 = vadd.f32 0.0, %v815
        %v817 = vpop.f32.mrf.mxu0
        %v818 = vadd.f32 0.0, %v817
        %819 = vmatmul.bf16.gmra.mxu0 %v468
        %v820 = vpop.f32.mrf.mxu0
        %v821 = vadd.f32 0.0, %v820
        %v822 = vpop.f32.mrf.mxu0
        %v823 = vadd.f32 0.0, %v822
        %824 = vmatmul.bf16.gmra.mxu0 %v471
        %v825 = vpop.f32.mrf.mxu0
        %v826 = vadd.f32 0.0, %v825
        %v827 = vpop.f32.mrf.mxu0
        %v828 = vadd.f32 0.0, %v827
        %829 = vmatmul.bf16.gmra.mxu0 %v474
        %v830 = vpop.f32.mrf.mxu0
        %v831 = vadd.f32 0.0, %v830
        %v832 = vpop.f32.mrf.mxu0
        %v833 = vadd.f32 0.0, %v832
        %834 = vmatmul.bf16.gmra.mxu0 %v477
        %v835 = vpop.f32.mrf.mxu0
        %v836 = vadd.f32 0.0, %v835
        %v837 = vpop.f32.mrf.mxu0
        %v838 = vadd.f32 0.0, %v837
        %839 = vmatmul.bf16.gmra.mxu0 %v480
        %v840 = vpop.f32.mrf.mxu0
        %v841 = vadd.f32 0.0, %v840
        %v842 = vpop.f32.mrf.mxu0
        %v843 = vadd.f32 0.0, %v842
        %844 = vmatmul.bf16.gmra.mxu0 %v483
        %v845 = vpop.f32.mrf.mxu0
        %v846 = vadd.f32 0.0, %v845
        %v847 = vpop.f32.mrf.mxu0
        %v848 = vadd.f32 0.0, %v847
        %849 = vmatmul.bf16.gmra.mxu0 %v486
        %v850 = vpop.f32.mrf.mxu0
        %v851 = vadd.f32 0.0, %v850
        %v852 = vpop.f32.mrf.mxu0
        %v853 = vadd.f32 0.0, %v852
        %854 = vmatmul.bf16.gmra.mxu0 %v489
        %v855 = vpop.f32.mrf.mxu0
        %v856 = vadd.f32 0.0, %v855
        %v857 = vpop.f32.mrf.mxu0
        %v858 = vadd.f32 0.0, %v857
        %859 = vmatmul.bf16.gmra.mxu0 %v492
        %v860 = vpop.f32.mrf.mxu0
        %v861 = vadd.f32 0.0, %v860
        %v862 = vpop.f32.mrf.mxu0
        %v863 = vadd.f32 0.0, %v862
        %864 = vmatmul.bf16.gmra.mxu0 %v495
        %v865 = vpop.f32.mrf.mxu0
        %v866 = vadd.f32 0.0, %v865
        %v867 = vpop.f32.mrf.mxu0
        %v868 = vadd.f32 0.0, %v867
        %869 = vmatmul.bf16.gmra.mxu0 %v498
        %v870 = vpop.f32.mrf.mxu0
        %v871 = vadd.f32 0.0, %v870
        %v872 = vpop.f32.mrf.mxu0
        %v873 = vadd.f32 0.0, %v872
        %874 = vmatmul.bf16.gmra.mxu0 %v501
        %v875 = vpop.f32.mrf.mxu0
        %v876 = vadd.f32 0.0, %v875
        %v877 = vpop.f32.mrf.mxu0
        %v878 = vadd.f32 0.0, %v877
        %879 = vmatmul.bf16.gmra.mxu0 %v504
        %v880 = vpop.f32.mrf.mxu0
        %v881 = vadd.f32 0.0, %v880
        %v882 = vpop.f32.mrf.mxu0
        %v883 = vadd.f32 0.0, %v882
        %884 = vmatmul.bf16.gmra.mxu0 %v507
        %v885 = vpop.f32.mrf.mxu0
        %v886 = vadd.f32 0.0, %v885
        %v887 = vpop.f32.mrf.mxu0
        %v888 = vadd.f32 0.0, %v887
        %889 = vmatmul.bf16.gmra.mxu0 %v510
        %v890 = vpop.f32.mrf.mxu0
        %v891 = vadd.f32 0.0, %v890
        %v892 = vpop.f32.mrf.mxu0
        %v893 = vadd.f32 0.0, %v892
        %894 = vmatmul.bf16.gmra.mxu0 %v513
        %v895 = vpop.f32.mrf.mxu0
        %v896 = vadd.f32 0.0, %v895
        %v897 = vpop.f32.mrf.mxu0
        %v898 = vadd.f32 0.0, %v897
        %899 = vmatmul.bf16.gmra.mxu0 %v516
        %v900 = vpop.f32.mrf.mxu0
        %v901 = vadd.f32 0.0, %v900
        %v902 = vpop.f32.mrf.mxu0
        %v903 = vadd.f32 0.0, %v902
        %904 = vdwg.mxu0
        %905 = vmatpush.bf16.msra.mxu0 0
        %906 = vmatpush.bf16.msra.mxu0 0
        %907 = vmatpush.bf16.msra.mxu0 0
        %908 = vmatpush.bf16.msra.mxu0 0
        %909 = vmatpush.bf16.msra.mxu0 0
        %910 = vmatpush.bf16.msra.mxu0 0
        %911 = vmatpush.bf16.msra.mxu0 %v436
        %912 = vmatpush.bf16.msra.mxu0 %v432
        %913 = vmatmul.bf16.gmra.mxu0 %v447
        %v914 = vpop.f32.mrf.mxu0
        %v915 = vadd.f32 0.0, %v914
        %v916 = vpop.f32.mrf.mxu0
        %v917 = vadd.f32 0.0, %v916
        %918 = vmatmul.bf16.gmra.mxu0 %v450
        %v919 = vpop.f32.mrf.mxu0
        %v920 = vadd.f32 0.0, %v919
        %v921 = vpop.f32.mrf.mxu0
        %v922 = vadd.f32 0.0, %v921
        %923 = vmatmul.bf16.gmra.mxu0 %v453
        %v924 = vpop.f32.mrf.mxu0
        %v925 = vadd.f32 0.0, %v924
        %v926 = vpop.f32.mrf.mxu0
        %v927 = vadd.f32 0.0, %v926
        %928 = vmatmul.bf16.gmra.mxu0 %v456
        %v929 = vpop.f32.mrf.mxu0
        %v930 = vadd.f32 0.0, %v929
        %v931 = vpop.f32.mrf.mxu0
        %v932 = vadd.f32 0.0, %v931
        %933 = vmatmul.bf16.gmra.mxu0 %v459
        %v934 = vpop.f32.mrf.mxu0
        %v935 = vadd.f32 0.0, %v934
        %v936 = vpop.f32.mrf.mxu0
        %v937 = vadd.f32 0.0, %v936
        %938 = vmatmul.bf16.gmra.mxu0 %v462
        %v939 = vpop.f32.mrf.mxu0
        %v940 = vadd.f32 0.0, %v939
        %v941 = vpop.f32.mrf.mxu0
        %v942 = vadd.f32 0.0, %v941
        %943 = vmatmul.bf16.gmra.mxu0 %v465
        %v944 = vpop.f32.mrf.mxu0
        %v945 = vadd.f32 0.0, %v944
        %v946 = vpop.f32.mrf.mxu0
        %v947 = vadd.f32 0.0, %v946
        %948 = vmatmul.bf16.gmra.mxu0 %v468
        %v949 = vpop.f32.mrf.mxu0
        %v950 = vadd.f32 0.0, %v949
        %v951 = vpop.f32.mrf.mxu0
        %v952 = vadd.f32 0.0, %v951
        %953 = vmatmul.bf16.gmra.mxu0 %v471
        %v954 = vpop.f32.mrf.mxu0
        %v955 = vadd.f32 0.0, %v954
        %v956 = vpop.f32.mrf.mxu0
        %v957 = vadd.f32 0.0, %v956
        %958 = vmatmul.bf16.gmra.mxu0 %v474
        %v959 = vpop.f32.mrf.mxu0
        %v960 = vadd.f32 0.0, %v959
        %v961 = vpop.f32.mrf.mxu0
        %v962 = vadd.f32 0.0, %v961
        %963 = vmatmul.bf16.gmra.mxu0 %v477
        %v964 = vpop.f32.mrf.mxu0
        %v965 = vadd.f32 0.0, %v964
        %v966 = vpop.f32.mrf.mxu0
        %v967 = vadd.f32 0.0, %v966
        %968 = vmatmul.bf16.gmra.mxu0 %v480
        %v969 = vpop.f32.mrf.mxu0
        %v970 = vadd.f32 0.0, %v969
        %v971 = vpop.f32.mrf.mxu0
        %v972 = vadd.f32 0.0, %v971
        %973 = vmatmul.bf16.gmra.mxu0 %v483
        %v974 = vpop.f32.mrf.mxu0
        %v975 = vadd.f32 0.0, %v974
        %v976 = vpop.f32.mrf.mxu0
        %v977 = vadd.f32 0.0, %v976
        %978 = vmatmul.bf16.gmra.mxu0 %v486
        %v979 = vpop.f32.mrf.mxu0
        %v980 = vadd.f32 0.0, %v979
        %v981 = vpop.f32.mrf.mxu0
        %v982 = vadd.f32 0.0, %v981
        %983 = vmatmul.bf16.gmra.mxu0 %v489
        %v984 = vpop.f32.mrf.mxu0
        %v985 = vadd.f32 0.0, %v984
        %v986 = vpop.f32.mrf.mxu0
        %v987 = vadd.f32 0.0, %v986
        %988 = vmatmul.bf16.gmra.mxu0 %v492
        %v989 = vpop.f32.mrf.mxu0
        %v990 = vadd.f32 0.0, %v989
        %v991 = vpop.f32.mrf.mxu0
        %v992 = vadd.f32 0.0, %v991
        %993 = vmatmul.bf16.gmra.mxu0 %v495
        %v994 = vpop.f32.mrf.mxu0
        %v995 = vadd.f32 0.0, %v994
        %v996 = vpop.f32.mrf.mxu0
        %v997 = vadd.f32 0.0, %v996
        %998 = vmatmul.bf16.gmra.mxu0 %v498
        %v999 = vpop.f32.mrf.mxu0
        %v1000 = vadd.f32 0.0, %v999
        %v1001 = vpop.f32.mrf.mxu0
        %v1002 = vadd.f32 0.0, %v1001
        %1003 = vmatmul.bf16.gmra.mxu0 %v501
        %v1004 = vpop.f32.mrf.mxu0
        %v1005 = vadd.f32 0.0, %v1004
        %v1006 = vpop.f32.mrf.mxu0
        %v1007 = vadd.f32 0.0, %v1006
        %1008 = vmatmul.bf16.gmra.mxu0 %v504
        %v1009 = vpop.f32.mrf.mxu0
        %v1010 = vadd.f32 0.0, %v1009
        %v1011 = vpop.f32.mrf.mxu0
        %v1012 = vadd.f32 0.0, %v1011
        %1013 = vmatmul.bf16.gmra.mxu0 %v507
        %v1014 = vpop.f32.mrf.mxu0
        %v1015 = vadd.f32 0.0, %v1014
        %v1016 = vpop.f32.mrf.mxu0
        %v1017 = vadd.f32 0.0, %v1016
        %1018 = vmatmul.bf16.gmra.mxu0 %v510
        %v1019 = vpop.f32.mrf.mxu0
        %v1020 = vadd.f32 0.0, %v1019
        %v1021 = vpop.f32.mrf.mxu0
        %v1022 = vadd.f32 0.0, %v1021
        %1023 = vmatmul.bf16.gmra.mxu0 %v513
        %v1024 = vpop.f32.mrf.mxu0
        %v1025 = vadd.f32 0.0, %v1024
        %v1026 = vpop.f32.mrf.mxu0
        %v1027 = vadd.f32 0.0, %v1026
        %1028 = vmatmul.bf16.gmra.mxu0 %v516
        %v1029 = vpop.f32.mrf.mxu0
        %v1030 = vadd.f32 0.0, %v1029
        %v1031 = vpop.f32.mrf.mxu0
        %v1032 = vadd.f32 0.0, %v1031
        %1033 = vdwg.mxu0
        %v1034 = vmax.f32 %v528, %v530
        %v1035 = vmax.f32 %v1034, %v533
        %v1036 = vmax.f32 %v1035, %v535
        %v1037 = vrot.slane %v1036, 4
        %v1038 = vmax.f32 %v1036, %v1037
        %v1039 = vrot.slane %v1038, 2
        %v1040 = vmax.f32 %v1038, %v1039
        %v1041 = vrot.slane %v1040, 1
        %v1042 = vmax.f32 %v1040, %v1041
        %v1043 = vmax.f32 %v657, %v659
        %v1044 = vmax.f32 %v1043, %v662
        %v1045 = vmax.f32 %v1044, %v664
        %v1046 = vrot.slane %v1045, 4
        %v1047 = vmax.f32 %v1045, %v1046
        %v1048 = vrot.slane %v1047, 2
        %v1049 = vmax.f32 %v1047, %v1048
        %v1050 = vrot.slane %v1049, 1
        %v1051 = vmax.f32 %v1049, %v1050
        %v1052 = vmax.f32 %v786, %v788
        %v1053 = vmax.f32 %v1052, %v791
        %v1054 = vmax.f32 %v1053, %v793
        %v1055 = vrot.slane %v1054, 4
        %v1056 = vmax.f32 %v1054, %v1055
        %v1057 = vrot.slane %v1056, 2
        %v1058 = vmax.f32 %v1056, %v1057
        %v1059 = vrot.slane %v1058, 1
        %v1060 = vmax.f32 %v1058, %v1059
        %v1061 = vmax.f32 %v915, %v917
        %v1062 = vmax.f32 %v1061, %v920
        %v1063 = vmax.f32 %v1062, %v922
        %v1064 = vrot.slane %v1063, 4
        %v1065 = vmax.f32 %v1063, %v1064
        %v1066 = vrot.slane %v1065, 2
        %v1067 = vmax.f32 %v1065, %v1066
        %v1068 = vrot.slane %v1067, 1
        %v1069 = vmax.f32 %v1067, %v1068
        %v1070 = vmax.f32 %v538, %v540
        %v1071 = vmax.f32 %v1070, %v543
        %v1072 = vmax.f32 %v1071, %v545
        %v1073 = vrot.slane %v1072, 4
        %v1074 = vmax.f32 %v1072, %v1073
        %v1075 = vrot.slane %v1074, 2
        %v1076 = vmax.f32 %v1074, %v1075
        %v1077 = vrot.slane %v1076, 1
        %v1078 = vmax.f32 %v1076, %v1077
        %v1079 = vmax.f32 %v667, %v669
        %v1080 = vmax.f32 %v1079, %v672
        %v1081 = vmax.f32 %v1080, %v674
        %v1082 = vrot.slane %v1081, 4
        %v1083 = vmax.f32 %v1081, %v1082
        %v1084 = vrot.slane %v1083, 2
        %v1085 = vmax.f32 %v1083, %v1084
        %v1086 = vrot.slane %v1085, 1
        %v1087 = vmax.f32 %v1085, %v1086
        %v1088 = vmax.f32 %v796, %v798
        %v1089 = vmax.f32 %v1088, %v801
        %v1090 = vmax.f32 %v1089, %v803
        %v1091 = vrot.slane %v1090, 4
        %v1092 = vmax.f32 %v1090, %v1091
        %v1093 = vrot.slane %v1092, 2
        %v1094 = vmax.f32 %v1092, %v1093
        %v1095 = vrot.slane %v1094, 1
        %v1096 = vmax.f32 %v1094, %v1095
        %v1097 = vmax.f32 %v925, %v927
        %v1098 = vmax.f32 %v1097, %v930
        %v1099 = vmax.f32 %v1098, %v932
        %v1100 = vrot.slane %v1099, 4
        %v1101 = vmax.f32 %v1099, %v1100
        %v1102 = vrot.slane %v1101, 2
        %v1103 = vmax.f32 %v1101, %v1102
        %v1104 = vrot.slane %v1103, 1
        %v1105 = vmax.f32 %v1103, %v1104
        %v1106 = vmax.f32 %v548, %v550
        %v1107 = vmax.f32 %v1106, %v553
        %v1108 = vmax.f32 %v1107, %v555
        %v1109 = vrot.slane %v1108, 4
        %v1110 = vmax.f32 %v1108, %v1109
        %v1111 = vrot.slane %v1110, 2
        %v1112 = vmax.f32 %v1110, %v1111
        %v1113 = vrot.slane %v1112, 1
        %v1114 = vmax.f32 %v1112, %v1113
        %v1115 = vmax.f32 %v677, %v679
        %v1116 = vmax.f32 %v1115, %v682
        %v1117 = vmax.f32 %v1116, %v684
        %v1118 = vrot.slane %v1117, 4
        %v1119 = vmax.f32 %v1117, %v1118
        %v1120 = vrot.slane %v1119, 2
        %v1121 = vmax.f32 %v1119, %v1120
        %v1122 = vrot.slane %v1121, 1
        %v1123 = vmax.f32 %v1121, %v1122
        %v1124 = vmax.f32 %v806, %v808
        %v1125 = vmax.f32 %v1124, %v811
        %v1126 = vmax.f32 %v1125, %v813
        %v1127 = vrot.slane %v1126, 4
        %v1128 = vmax.f32 %v1126, %v1127
        %v1129 = vrot.slane %v1128, 2
        %v1130 = vmax.f32 %v1128, %v1129
        %v1131 = vrot.slane %v1130, 1
        %v1132 = vmax.f32 %v1130, %v1131
        %v1133 = vmax.f32 %v935, %v937
        %v1134 = vmax.f32 %v1133, %v940
        %v1135 = vmax.f32 %v1134, %v942
        %v1136 = vrot.slane %v1135, 4
        %v1137 = vmax.f32 %v1135, %v1136
        %v1138 = vrot.slane %v1137, 2
        %v1139 = vmax.f32 %v1137, %v1138
        %v1140 = vrot.slane %v1139, 1
        %v1141 = vmax.f32 %v1139, %v1140
        %v1142 = vmax.f32 %v558, %v560
        %v1143 = vmax.f32 %v1142, %v563
        %v1144 = vmax.f32 %v1143, %v565
        %v1145 = vrot.slane %v1144, 4
        %v1146 = vmax.f32 %v1144, %v1145
        %v1147 = vrot.slane %v1146, 2
        %v1148 = vmax.f32 %v1146, %v1147
        %v1149 = vrot.slane %v1148, 1
        %v1150 = vmax.f32 %v1148, %v1149
        %v1151 = vmax.f32 %v687, %v689
        %v1152 = vmax.f32 %v1151, %v692
        %v1153 = vmax.f32 %v1152, %v694
        %v1154 = vrot.slane %v1153, 4
        %v1155 = vmax.f32 %v1153, %v1154
        %v1156 = vrot.slane %v1155, 2
        %v1157 = vmax.f32 %v1155, %v1156
        %v1158 = vrot.slane %v1157, 1
        %v1159 = vmax.f32 %v1157, %v1158
        %v1160 = vmax.f32 %v816, %v818
        %v1161 = vmax.f32 %v1160, %v821
        %v1162 = vmax.f32 %v1161, %v823
        %v1163 = vrot.slane %v1162, 4
        %v1164 = vmax.f32 %v1162, %v1163
        %v1165 = vrot.slane %v1164, 2
        %v1166 = vmax.f32 %v1164, %v1165
        %v1167 = vrot.slane %v1166, 1
        %v1168 = vmax.f32 %v1166, %v1167
        %v1169 = vmax.f32 %v945, %v947
        %v1170 = vmax.f32 %v1169, %v950
        %v1171 = vmax.f32 %v1170, %v952
        %v1172 = vrot.slane %v1171, 4
        %v1173 = vmax.f32 %v1171, %v1172
        %v1174 = vrot.slane %v1173, 2
        %v1175 = vmax.f32 %v1173, %v1174
        %v1176 = vrot.slane %v1175, 1
        %v1177 = vmax.f32 %v1175, %v1176
        %v1178 = vsub.f32 %v528, %v1042
        %v1179 = vsub.f32 %v657, %v1051
        %v1180 = vsub.f32 %v786, %v1060
        %v1181 = vsub.f32 %v915, %v1069
        %v1182 = vsub.f32 %v530, %v1042
        %v1183 = vsub.f32 %v659, %v1051
        %v1184 = vsub.f32 %v788, %v1060
        %v1185 = vsub.f32 %v917, %v1069
        %v1186 = vsub.f32 %v533, %v1042
        %v1187 = vsub.f32 %v662, %v1051
        %v1188 = vsub.f32 %v791, %v1060
        %v1189 = vsub.f32 %v920, %v1069
        %v1190 = vsub.f32 %v535, %v1042
        %v1191 = vsub.f32 %v664, %v1051
        %v1192 = vsub.f32 %v793, %v1060
        %v1193 = vsub.f32 %v922, %v1069
        %v1194 = vsub.f32 %v538, %v1078
        %v1195 = vsub.f32 %v667, %v1087
        %v1196 = vsub.f32 %v796, %v1096
        %v1197 = vsub.f32 %v925, %v1105
        %v1198 = vsub.f32 %v540, %v1078
        %v1199 = vsub.f32 %v669, %v1087
        %v1200 = vsub.f32 %v798, %v1096
        %v1201 = vsub.f32 %v927, %v1105
        %v1202 = vsub.f32 %v543, %v1078
        %v1203 = vsub.f32 %v672, %v1087
        %v1204 = vsub.f32 %v801, %v1096
        %v1205 = vsub.f32 %v930, %v1105
        %v1206 = vsub.f32 %v545, %v1078
        %v1207 = vsub.f32 %v674, %v1087
        %v1208 = vsub.f32 %v803, %v1096
        %v1209 = vsub.f32 %v932, %v1105
        %v1210 = vsub.f32 %v548, %v1114
        %v1211 = vsub.f32 %v677, %v1123
        %v1212 = vsub.f32 %v806, %v1132
        %v1213 = vsub.f32 %v935, %v1141
        %v1214 = vsub.f32 %v550, %v1114
        %v1215 = vsub.f32 %v679, %v1123
        %v1216 = vsub.f32 %v808, %v1132
        %v1217 = vsub.f32 %v937, %v1141
        %v1218 = vsub.f32 %v553, %v1114
        %v1219 = vsub.f32 %v682, %v1123
        %v1220 = vsub.f32 %v811, %v1132
        %v1221 = vsub.f32 %v940, %v1141
        %v1222 = vsub.f32 %v555, %v1114
        %v1223 = vsub.f32 %v684, %v1123
        %v1224 = vsub.f32 %v813, %v1132
        %v1225 = vsub.f32 %v942, %v1141
        %v1226 = vsub.f32 %v558, %v1150
        %v1227 = vsub.f32 %v687, %v1159
        %v1228 = vsub.f32 %v816, %v1168
        %v1229 = vsub.f32 %v945, %v1177
        %v1230 = vsub.f32 %v560, %v1150
        %v1231 = vsub.f32 %v689, %v1159
        %v1232 = vsub.f32 %v818, %v1168
        %v1233 = vsub.f32 %v947, %v1177
        %v1234 = vsub.f32 %v563, %v1150
        %v1235 = vsub.f32 %v692, %v1159
        %v1236 = vsub.f32 %v821, %v1168
        %v1237 = vsub.f32 %v950, %v1177
        %v1238 = vsub.f32 %v565, %v1150
        %v1239 = vsub.f32 %v694, %v1159
        %v1240 = vsub.f32 %v823, %v1168
        %v1241 = vsub.f32 %v952, %v1177
        %v1242 = vmul.f32 %v1178, 1.442695
        %v1243 = vpow.pop %v1242
        %v1244 = vmul.f32 %v1179, 1.442695
        %v1245 = vpow.pop %v1244
        %v1246 = vmul.f32 %v1180, 1.442695
        %v1247 = vpow.pop %v1246
        %v1248 = vmul.f32 %v1181, 1.442695
        %v1249 = vpow.pop %v1248
        %v1250 = vmul.f32 %v1182, 1.442695
        %v1251 = vpow.pop %v1250
        %v1252 = vmul.f32 %v1183, 1.442695
        %v1253 = vpow.pop %v1252
        %v1254 = vmul.f32 %v1184, 1.442695
        %v1255 = vpow.pop %v1254
        %v1256 = vmul.f32 %v1185, 1.442695
        %v1257 = vpow.pop %v1256
        %v1258 = vmul.f32 %v1186, 1.442695
        %v1259 = vpow.pop %v1258
        %v1260 = vmul.f32 %v1187, 1.442695
        %v1261 = vpow.pop %v1260
        %v1262 = vmul.f32 %v1188, 1.442695
        %v1263 = vpow.pop %v1262
        %v1264 = vmul.f32 %v1189, 1.442695
        %v1265 = vpow.pop %v1264
        %v1266 = vmul.f32 %v1190, 1.442695
        %v1267 = vpow.pop %v1266
        %v1268 = vmul.f32 %v1191, 1.442695
        %v1269 = vpow.pop %v1268
        %v1270 = vmul.f32 %v1192, 1.442695
        %v1271 = vpow.pop %v1270
        %v1272 = vmul.f32 %v1193, 1.442695
        %v1273 = vpow.pop %v1272
        %v1274 = vmul.f32 %v1194, 1.442695
        %v1275 = vpow.pop %v1274
        %v1276 = vmul.f32 %v1195, 1.442695
        %v1277 = vpow.pop %v1276
        %v1278 = vmul.f32 %v1196, 1.442695
        %v1279 = vpow.pop %v1278
        %v1280 = vmul.f32 %v1197, 1.442695
        %v1281 = vpow.pop %v1280
        %v1282 = vmul.f32 %v1198, 1.442695
        %v1283 = vpow.pop %v1282
        %v1284 = vmul.f32 %v1199, 1.442695
        %v1285 = vpow.pop %v1284
        %v1286 = vmul.f32 %v1200, 1.442695
        %v1287 = vpow.pop %v1286
        %v1288 = vmul.f32 %v1201, 1.442695
        %v1289 = vpow.pop %v1288
        %v1290 = vmul.f32 %v1202, 1.442695
        %v1291 = vpow.pop %v1290
        %v1292 = vmul.f32 %v1203, 1.442695
        %v1293 = vpow.pop %v1292
        %v1294 = vmul.f32 %v1204, 1.442695
        %v1295 = vpow.pop %v1294
        %v1296 = vmul.f32 %v1205, 1.442695
        %v1297 = vpow.pop %v1296
        %v1298 = vmul.f32 %v1206, 1.442695
        %v1299 = vpow.pop %v1298
        %v1300 = vmul.f32 %v1207, 1.442695
        %v1301 = vpow.pop %v1300
        %v1302 = vmul.f32 %v1208, 1.442695
        %v1303 = vpow.pop %v1302
        %v1304 = vmul.f32 %v1209, 1.442695
        %v1305 = vpow.pop %v1304
        %v1306 = vmul.f32 %v1210, 1.442695
        %v1307 = vpow.pop %v1306
        %v1308 = vmul.f32 %v1211, 1.442695
        %v1309 = vpow.pop %v1308
        %v1310 = vmul.f32 %v1212, 1.442695
        %v1311 = vpow.pop %v1310
        %v1312 = vmul.f32 %v1213, 1.442695
        %v1313 = vpow.pop %v1312
        %v1314 = vmul.f32 %v1214, 1.442695
        %v1315 = vpow.pop %v1314
        %v1316 = vmul.f32 %v1215, 1.442695
        %v1317 = vpow.pop %v1316
        %v1318 = vmul.f32 %v1216, 1.442695
        %v1319 = vpow.pop %v1318
        %v1320 = vmul.f32 %v1217, 1.442695
        %v1321 = vpow.pop %v1320
        %v1322 = vmul.f32 %v1218, 1.442695
        %v1323 = vpow.pop %v1322
        %v1324 = vmul.f32 %v1219, 1.442695
        %v1325 = vpow.pop %v1324
        %v1326 = vmul.f32 %v1220, 1.442695
        %v1327 = vpow.pop %v1326
        %v1328 = vmul.f32 %v1221, 1.442695
        %v1329 = vpow.pop %v1328
        %v1330 = vmul.f32 %v1222, 1.442695
        %v1331 = vpow.pop %v1330
        %v1332 = vmul.f32 %v1223, 1.442695
        %v1333 = vpow.pop %v1332
        %v1334 = vmul.f32 %v1224, 1.442695
        %v1335 = vpow.pop %v1334
        %v1336 = vmul.f32 %v1225, 1.442695
        %v1337 = vpow.pop %v1336
        %v1338 = vmul.f32 %v1226, 1.442695
        %v1339 = vpow.pop %v1338
        %v1340 = vmul.f32 %v1227, 1.442695
        %v1341 = vpow.pop %v1340
        %v1342 = vmul.f32 %v1228, 1.442695
        %v1343 = vpow.pop %v1342
        %v1344 = vmul.f32 %v1229, 1.442695
        %v1345 = vpow.pop %v1344
        %v1346 = vmul.f32 %v1230, 1.442695
        %v1347 = vpow.pop %v1346
        %v1348 = vmul.f32 %v1231, 1.442695
        %v1349 = vpow.pop %v1348
        %v1350 = vmul.f32 %v1232, 1.442695
        %v1351 = vpow.pop %v1350
        %v1352 = vmul.f32 %v1233, 1.442695
        %v1353 = vpow.pop %v1352
        %v1354 = vmul.f32 %v1234, 1.442695
        %v1355 = vpow.pop %v1354
        %v1356 = vmul.f32 %v1235, 1.442695
        %v1357 = vpow.pop %v1356
        %v1358 = vmul.f32 %v1236, 1.442695
        %v1359 = vpow.pop %v1358
        %v1360 = vmul.f32 %v1237, 1.442695
        %v1361 = vpow.pop %v1360
        %v1362 = vmul.f32 %v1238, 1.442695
        %v1363 = vpow.pop %v1362
        %v1364 = vmul.f32 %v1239, 1.442695
        %v1365 = vpow.pop %v1364
        %v1366 = vmul.f32 %v1240, 1.442695
        %v1367 = vpow.pop %v1366
        %v1368 = vmul.f32 %v1241, 1.442695
        %v1369 = vpow.pop %v1368
        %v1370 = vadd.f32 %v1243, %v1251
        %v1371 = vadd.f32 %v1370, %v1259
        %v1372 = vadd.f32 %v1371, %v1267
        %v1373 = vrot.slane %v1372, 4
        %v1374 = vadd.f32 %v1372, %v1373
        %v1375 = vrot.slane %v1374, 2
        %v1376 = vadd.f32 %v1374, %v1375
        %v1377 = vrot.slane %v1376, 1
        %v1378 = vadd.f32 %v1376, %v1377
        %v1379 = vadd.f32 %v1245, %v1253
        %v1380 = vadd.f32 %v1379, %v1261
        %v1381 = vadd.f32 %v1380, %v1269
        %v1382 = vrot.slane %v1381, 4
        %v1383 = vadd.f32 %v1381, %v1382
        %v1384 = vrot.slane %v1383, 2
        %v1385 = vadd.f32 %v1383, %v1384
        %v1386 = vrot.slane %v1385, 1
        %v1387 = vadd.f32 %v1385, %v1386
        %v1388 = vadd.f32 %v1247, %v1255
        %v1389 = vadd.f32 %v1388, %v1263
        %v1390 = vadd.f32 %v1389, %v1271
        %v1391 = vrot.slane %v1390, 4
        %v1392 = vadd.f32 %v1390, %v1391
        %v1393 = vrot.slane %v1392, 2
        %v1394 = vadd.f32 %v1392, %v1393
        %v1395 = vrot.slane %v1394, 1
        %v1396 = vadd.f32 %v1394, %v1395
        %v1397 = vadd.f32 %v1249, %v1257
        %v1398 = vadd.f32 %v1397, %v1265
        %v1399 = vadd.f32 %v1398, %v1273
        %v1400 = vrot.slane %v1399, 4
        %v1401 = vadd.f32 %v1399, %v1400
        %v1402 = vrot.slane %v1401, 2
        %v1403 = vadd.f32 %v1401, %v1402
        %v1404 = vrot.slane %v1403, 1
        %v1405 = vadd.f32 %v1403, %v1404
        %v1406 = vadd.f32 %v1275, %v1283
        %v1407 = vadd.f32 %v1406, %v1291
        %v1408 = vadd.f32 %v1407, %v1299
        %v1409 = vrot.slane %v1408, 4
        %v1410 = vadd.f32 %v1408, %v1409
        %v1411 = vrot.slane %v1410, 2
        %v1412 = vadd.f32 %v1410, %v1411
        %v1413 = vrot.slane %v1412, 1
        %v1414 = vadd.f32 %v1412, %v1413
        %v1415 = vadd.f32 %v1277, %v1285
        %v1416 = vadd.f32 %v1415, %v1293
        %v1417 = vadd.f32 %v1416, %v1301
        %v1418 = vrot.slane %v1417, 4
        %v1419 = vadd.f32 %v1417, %v1418
        %v1420 = vrot.slane %v1419, 2
        %v1421 = vadd.f32 %v1419, %v1420
        %v1422 = vrot.slane %v1421, 1
        %v1423 = vadd.f32 %v1421, %v1422
        %v1424 = vadd.f32 %v1279, %v1287
        %v1425 = vadd.f32 %v1424, %v1295
        %v1426 = vadd.f32 %v1425, %v1303
        %v1427 = vrot.slane %v1426, 4
        %v1428 = vadd.f32 %v1426, %v1427
        %v1429 = vrot.slane %v1428, 2
        %v1430 = vadd.f32 %v1428, %v1429
        %v1431 = vrot.slane %v1430, 1
        %v1432 = vadd.f32 %v1430, %v1431
        %v1433 = vadd.f32 %v1281, %v1289
        %v1434 = vadd.f32 %v1433, %v1297
        %v1435 = vadd.f32 %v1434, %v1305
        %v1436 = vrot.slane %v1435, 4
        %v1437 = vadd.f32 %v1435, %v1436
        %v1438 = vrot.slane %v1437, 2
        %v1439 = vadd.f32 %v1437, %v1438
        %v1440 = vrot.slane %v1439, 1
        %v1441 = vadd.f32 %v1439, %v1440
        %v1442 = vadd.f32 %v1307, %v1315
        %v1443 = vadd.f32 %v1442, %v1323
        %v1444 = vadd.f32 %v1443, %v1331
        %v1445 = vrot.slane %v1444, 4
        %v1446 = vadd.f32 %v1444, %v1445
        %v1447 = vrot.slane %v1446, 2
        %v1448 = vadd.f32 %v1446, %v1447
        %v1449 = vrot.slane %v1448, 1
        %v1450 = vadd.f32 %v1448, %v1449
        %v1451 = vadd.f32 %v1309, %v1317
        %v1452 = vadd.f32 %v1451, %v1325
        %v1453 = vadd.f32 %v1452, %v1333
        %v1454 = vrot.slane %v1453, 4
        %v1455 = vadd.f32 %v1453, %v1454
        %v1456 = vrot.slane %v1455, 2
        %v1457 = vadd.f32 %v1455, %v1456
        %v1458 = vrot.slane %v1457, 1
        %v1459 = vadd.f32 %v1457, %v1458
        %v1460 = vadd.f32 %v1311, %v1319
        %v1461 = vadd.f32 %v1460, %v1327
        %v1462 = vadd.f32 %v1461, %v1335
        %v1463 = vrot.slane %v1462, 4
        %v1464 = vadd.f32 %v1462, %v1463
        %v1465 = vrot.slane %v1464, 2
        %v1466 = vadd.f32 %v1464, %v1465
        %v1467 = vrot.slane %v1466, 1
        %v1468 = vadd.f32 %v1466, %v1467
        %v1469 = vadd.f32 %v1313, %v1321
        %v1470 = vadd.f32 %v1469, %v1329
        %v1471 = vadd.f32 %v1470, %v1337
        %v1472 = vrot.slane %v1471, 4
        %v1473 = vadd.f32 %v1471, %v1472
        %v1474 = vrot.slane %v1473, 2
        %v1475 = vadd.f32 %v1473, %v1474
        %v1476 = vrot.slane %v1475, 1
        %v1477 = vadd.f32 %v1475, %v1476
        %v1478 = vadd.f32 %v1339, %v1347
        %v1479 = vadd.f32 %v1478, %v1355
        %v1480 = vadd.f32 %v1479, %v1363
        %v1481 = vrot.slane %v1480, 4
        %v1482 = vadd.f32 %v1480, %v1481
        %v1483 = vrot.slane %v1482, 2
        %v1484 = vadd.f32 %v1482, %v1483
        %v1485 = vrot.slane %v1484, 1
        %v1486 = vadd.f32 %v1484, %v1485
        %v1487 = vadd.f32 %v1341, %v1349
        %v1488 = vadd.f32 %v1487, %v1357
        %v1489 = vadd.f32 %v1488, %v1365
        %v1490 = vrot.slane %v1489, 4
        %v1491 = vadd.f32 %v1489, %v1490
        %v1492 = vrot.slane %v1491, 2
        %v1493 = vadd.f32 %v1491, %v1492
        %v1494 = vrot.slane %v1493, 1
        %v1495 = vadd.f32 %v1493, %v1494
        %v1496 = vadd.f32 %v1343, %v1351
        %v1497 = vadd.f32 %v1496, %v1359
        %v1498 = vadd.f32 %v1497, %v1367
        %v1499 = vrot.slane %v1498, 4
        %v1500 = vadd.f32 %v1498, %v1499
        %v1501 = vrot.slane %v1500, 2
        %v1502 = vadd.f32 %v1500, %v1501
        %v1503 = vrot.slane %v1502, 1
        %v1504 = vadd.f32 %v1502, %v1503
        %v1505 = vadd.f32 %v1345, %v1353
        %v1506 = vadd.f32 %v1505, %v1361
        %v1507 = vadd.f32 %v1506, %v1369
        %v1508 = vrot.slane %v1507, 4
        %v1509 = vadd.f32 %v1507, %v1508
        %v1510 = vrot.slane %v1509, 2
        %v1511 = vadd.f32 %v1509, %v1510
        %v1512 = vrot.slane %v1511, 1
        %v1513 = vadd.f32 %v1511, %v1512
        %v1514 = vrcp.pop %v1378
        %v1515 = vmul.f32 %v1378, %v1514
        %v1516 = vsub.f32 1.0, %v1515
        %v1517 = vmul.f32 %v1514, %v1516
        %v1518 = vadd.f32 %v1514, %v1517
        %vm1519 = vweird.f32 %v1378
        %vm1520 = vweird.f32 %v1514
        %vm1521 = vmor %vm1519, %vm1520
        %v1522 = vsel %vm1521, %v1514, %v1518
        %v1523 = vand.u32 2147483647, %v1378
        %vm1524 = vcmp.eq.f32.partialorder %v1523, 8.507059e+37
        %v1525 = vand.u32 %v1378, 2147483648
        %v1526 = vor.u32 1.1754944e-38, %v1525
        %v1527 = vsel %vm1524, %v1526, %v1522
        %v1528 = vmul.f32 %v1243, %v1527
        %v1529 = vrcp.pop %v1387
        %v1530 = vmul.f32 %v1387, %v1529
        %v1531 = vsub.f32 1.0, %v1530
        %v1532 = vmul.f32 %v1529, %v1531
        %v1533 = vadd.f32 %v1529, %v1532
        %vm1534 = vweird.f32 %v1387
        %vm1535 = vweird.f32 %v1529
        %vm1536 = vmor %vm1534, %vm1535
        %v1537 = vsel %vm1536, %v1529, %v1533
        %v1538 = vand.u32 2147483647, %v1387
        %vm1539 = vcmp.eq.f32.partialorder %v1538, 8.507059e+37
        %v1540 = vand.u32 %v1387, 2147483648
        %v1541 = vor.u32 1.1754944e-38, %v1540
        %v1542 = vsel %vm1539, %v1541, %v1537
        %v1543 = vmul.f32 %v1245, %v1542
        %v1544 = vrcp.pop %v1396
        %v1545 = vmul.f32 %v1396, %v1544
        %v1546 = vsub.f32 1.0, %v1545
        %v1547 = vmul.f32 %v1544, %v1546
        %v1548 = vadd.f32 %v1544, %v1547
        %vm1549 = vweird.f32 %v1396
        %vm1550 = vweird.f32 %v1544
        %vm1551 = vmor %vm1549, %vm1550
        %v1552 = vsel %vm1551, %v1544, %v1548
        %v1553 = vand.u32 2147483647, %v1396
        %vm1554 = vcmp.eq.f32.partialorder %v1553, 8.507059e+37
        %v1555 = vand.u32 %v1396, 2147483648
        %v1556 = vor.u32 1.1754944e-38, %v1555
        %v1557 = vsel %vm1554, %v1556, %v1552
        %v1558 = vmul.f32 %v1247, %v1557
        %v1559 = vrcp.pop %v1405
        %v1560 = vmul.f32 %v1405, %v1559
        %v1561 = vsub.f32 1.0, %v1560
        %v1562 = vmul.f32 %v1559, %v1561
        %v1563 = vadd.f32 %v1559, %v1562
        %vm1564 = vweird.f32 %v1405
        %vm1565 = vweird.f32 %v1559
        %vm1566 = vmor %vm1564, %vm1565
        %v1567 = vsel %vm1566, %v1559, %v1563
        %v1568 = vand.u32 2147483647, %v1405
        %vm1569 = vcmp.eq.f32.partialorder %v1568, 8.507059e+37
        %v1570 = vand.u32 %v1405, 2147483648
        %v1571 = vor.u32 1.1754944e-38, %v1570
        %v1572 = vsel %vm1569, %v1571, %v1567
        %v1573 = vmul.f32 %v1249, %v1572
        %v1574 = vmul.f32 %v1251, %v1527
        %v1575 = vmul.f32 %v1253, %v1542
        %v1576 = vmul.f32 %v1255, %v1557
        %v1577 = vmul.f32 %v1257, %v1572
        %v1578 = vmul.f32 %v1259, %v1527
        %v1579 = vmul.f32 %v1261, %v1542
        %v1580 = vmul.f32 %v1263, %v1557
        %v1581 = vmul.f32 %v1265, %v1572
        %v1582 = vmul.f32 %v1267, %v1527
        %v1583 = vmul.f32 %v1269, %v1542
        %v1584 = vmul.f32 %v1271, %v1557
        %v1585 = vmul.f32 %v1273, %v1572
        %v1586 = vrcp.pop %v1414
        %v1587 = vmul.f32 %v1414, %v1586
        %v1588 = vsub.f32 1.0, %v1587
        %v1589 = vmul.f32 %v1586, %v1588
        %v1590 = vadd.f32 %v1586, %v1589
        %vm1591 = vweird.f32 %v1414
        %vm1592 = vweird.f32 %v1586
        %vm1593 = vmor %vm1591, %vm1592
        %v1594 = vsel %vm1593, %v1586, %v1590
        %v1595 = vand.u32 2147483647, %v1414
        %vm1596 = vcmp.eq.f32.partialorder %v1595, 8.507059e+37
        %v1597 = vand.u32 %v1414, 2147483648
        %v1598 = vor.u32 1.1754944e-38, %v1597
        %v1599 = vsel %vm1596, %v1598, %v1594
        %v1600 = vmul.f32 %v1275, %v1599
        %v1601 = vrcp.pop %v1423
        %v1602 = vmul.f32 %v1423, %v1601
        %v1603 = vsub.f32 1.0, %v1602
        %v1604 = vmul.f32 %v1601, %v1603
        %v1605 = vadd.f32 %v1601, %v1604
        %vm1606 = vweird.f32 %v1423
        %vm1607 = vweird.f32 %v1601
        %vm1608 = vmor %vm1606, %vm1607
        %v1609 = vsel %vm1608, %v1601, %v1605
        %v1610 = vand.u32 2147483647, %v1423
        %vm1611 = vcmp.eq.f32.partialorder %v1610, 8.507059e+37
        %v1612 = vand.u32 %v1423, 2147483648
        %v1613 = vor.u32 1.1754944e-38, %v1612
        %v1614 = vsel %vm1611, %v1613, %v1609
        %v1615 = vmul.f32 %v1277, %v1614
        %v1616 = vrcp.pop %v1432
        %v1617 = vmul.f32 %v1432, %v1616
        %v1618 = vsub.f32 1.0, %v1617
        %v1619 = vmul.f32 %v1616, %v1618
        %v1620 = vadd.f32 %v1616, %v1619
        %vm1621 = vweird.f32 %v1432
        %vm1622 = vweird.f32 %v1616
        %vm1623 = vmor %vm1621, %vm1622
        %v1624 = vsel %vm1623, %v1616, %v1620
        %v1625 = vand.u32 2147483647, %v1432
        %vm1626 = vcmp.eq.f32.partialorder %v1625, 8.507059e+37
        %v1627 = vand.u32 %v1432, 2147483648
        %v1628 = vor.u32 1.1754944e-38, %v1627
        %v1629 = vsel %vm1626, %v1628, %v1624
        %v1630 = vmul.f32 %v1279, %v1629
        %v1631 = vrcp.pop %v1441
        %v1632 = vmul.f32 %v1441, %v1631
        %v1633 = vsub.f32 1.0, %v1632
        %v1634 = vmul.f32 %v1631, %v1633
        %v1635 = vadd.f32 %v1631, %v1634
        %vm1636 = vweird.f32 %v1441
        %vm1637 = vweird.f32 %v1631
        %vm1638 = vmor %vm1636, %vm1637
        %v1639 = vsel %vm1638, %v1631, %v1635
        %v1640 = vand.u32 2147483647, %v1441
        %vm1641 = vcmp.eq.f32.partialorder %v1640, 8.507059e+37
        %v1642 = vand.u32 %v1441, 2147483648
        %v1643 = vor.u32 1.1754944e-38, %v1642
        %v1644 = vsel %vm1641, %v1643, %v1639
        %v1645 = vmul.f32 %v1281, %v1644
        %v1646 = vmul.f32 %v1283, %v1599
        %v1647 = vmul.f32 %v1285, %v1614
        %v1648 = vmul.f32 %v1287, %v1629
        %v1649 = vmul.f32 %v1289, %v1644
        %v1650 = vmul.f32 %v1291, %v1599
        %v1651 = vmul.f32 %v1293, %v1614
        %v1652 = vmul.f32 %v1295, %v1629
        %v1653 = vmul.f32 %v1297, %v1644
        %v1654 = vmul.f32 %v1299, %v1599
        %v1655 = vmul.f32 %v1301, %v1614
        %v1656 = vmul.f32 %v1303, %v1629
        %v1657 = vmul.f32 %v1305, %v1644
        %v1658 = vrcp.pop %v1450
        %v1659 = vmul.f32 %v1450, %v1658
        %v1660 = vsub.f32 1.0, %v1659
        %v1661 = vmul.f32 %v1658, %v1660
        %v1662 = vadd.f32 %v1658, %v1661
        %vm1663 = vweird.f32 %v1450
        %vm1664 = vweird.f32 %v1658
        %vm1665 = vmor %vm1663, %vm1664
        %v1666 = vsel %vm1665, %v1658, %v1662
        %v1667 = vand.u32 2147483647, %v1450
        %vm1668 = vcmp.eq.f32.partialorder %v1667, 8.507059e+37
        %v1669 = vand.u32 %v1450, 2147483648
        %v1670 = vor.u32 1.1754944e-38, %v1669
        %v1671 = vsel %vm1668, %v1670, %v1666
        %v1672 = vmul.f32 %v1307, %v1671
        %v1673 = vrcp.pop %v1459
        %v1674 = vmul.f32 %v1459, %v1673
        %v1675 = vsub.f32 1.0, %v1674
        %v1676 = vmul.f32 %v1673, %v1675
        %v1677 = vadd.f32 %v1673, %v1676
        %vm1678 = vweird.f32 %v1459
        %vm1679 = vweird.f32 %v1673
        %vm1680 = vmor %vm1678, %vm1679
        %v1681 = vsel %vm1680, %v1673, %v1677
        %v1682 = vand.u32 2147483647, %v1459
        %vm1683 = vcmp.eq.f32.partialorder %v1682, 8.507059e+37
        %v1684 = vand.u32 %v1459, 2147483648
        %v1685 = vor.u32 1.1754944e-38, %v1684
        %v1686 = vsel %vm1683, %v1685, %v1681
        %v1687 = vmul.f32 %v1309, %v1686
        %v1688 = vrcp.pop %v1468
        %v1689 = vmul.f32 %v1468, %v1688
        %v1690 = vsub.f32 1.0, %v1689
        %v1691 = vmul.f32 %v1688, %v1690
        %v1692 = vadd.f32 %v1688, %v1691
        %vm1693 = vweird.f32 %v1468
        %vm1694 = vweird.f32 %v1688
        %vm1695 = vmor %vm1693, %vm1694
        %v1696 = vsel %vm1695, %v1688, %v1692
        %v1697 = vand.u32 2147483647, %v1468
        %vm1698 = vcmp.eq.f32.partialorder %v1697, 8.507059e+37
        %v1699 = vand.u32 %v1468, 2147483648
        %v1700 = vor.u32 1.1754944e-38, %v1699
        %v1701 = vsel %vm1698, %v1700, %v1696
        %v1702 = vmul.f32 %v1311, %v1701
        %v1703 = vrcp.pop %v1477
        %v1704 = vmul.f32 %v1477, %v1703
        %v1705 = vsub.f32 1.0, %v1704
        %v1706 = vmul.f32 %v1703, %v1705
        %v1707 = vadd.f32 %v1703, %v1706
        %vm1708 = vweird.f32 %v1477
        %vm1709 = vweird.f32 %v1703
        %vm1710 = vmor %vm1708, %vm1709
        %v1711 = vsel %vm1710, %v1703, %v1707
        %v1712 = vand.u32 2147483647, %v1477
        %vm1713 = vcmp.eq.f32.partialorder %v1712, 8.507059e+37
        %v1714 = vand.u32 %v1477, 2147483648
        %v1715 = vor.u32 1.1754944e-38, %v1714
        %v1716 = vsel %vm1713, %v1715, %v1711
        %v1717 = vmul.f32 %v1313, %v1716
        %v1718 = vmul.f32 %v1315, %v1671
        %v1719 = vmul.f32 %v1317, %v1686
        %v1720 = vmul.f32 %v1319, %v1701
        %v1721 = vmul.f32 %v1321, %v1716
        %v1722 = vmul.f32 %v1323, %v1671
        %v1723 = vmul.f32 %v1325, %v1686
        %v1724 = vmul.f32 %v1327, %v1701
        %v1725 = vmul.f32 %v1329, %v1716
        %v1726 = vmul.f32 %v1331, %v1671
        %v1727 = vmul.f32 %v1333, %v1686
        %v1728 = vmul.f32 %v1335, %v1701
        %v1729 = vmul.f32 %v1337, %v1716
        %v1730 = vrcp.pop %v1486
        %v1731 = vmul.f32 %v1486, %v1730
        %v1732 = vsub.f32 1.0, %v1731
        %v1733 = vmul.f32 %v1730, %v1732
        %v1734 = vadd.f32 %v1730, %v1733
        %vm1735 = vweird.f32 %v1486
        %vm1736 = vweird.f32 %v1730
        %vm1737 = vmor %vm1735, %vm1736
        %v1738 = vsel %vm1737, %v1730, %v1734
        %v1739 = vand.u32 2147483647, %v1486
        %vm1740 = vcmp.eq.f32.partialorder %v1739, 8.507059e+37
        %v1741 = vand.u32 %v1486, 2147483648
        %v1742 = vor.u32 1.1754944e-38, %v1741
        %v1743 = vsel %vm1740, %v1742, %v1738
        %v1744 = vmul.f32 %v1339, %v1743
        %v1745 = vrcp.pop %v1495
        %v1746 = vmul.f32 %v1495, %v1745
        %v1747 = vsub.f32 1.0, %v1746
        %v1748 = vmul.f32 %v1745, %v1747
        %v1749 = vadd.f32 %v1745, %v1748
        %vm1750 = vweird.f32 %v1495
        %vm1751 = vweird.f32 %v1745
        %vm1752 = vmor %vm1750, %vm1751
        %v1753 = vsel %vm1752, %v1745, %v1749
        %v1754 = vand.u32 2147483647, %v1495
        %vm1755 = vcmp.eq.f32.partialorder %v1754, 8.507059e+37
        %v1756 = vand.u32 %v1495, 2147483648
        %v1757 = vor.u32 1.1754944e-38, %v1756
        %v1758 = vsel %vm1755, %v1757, %v1753
        %v1759 = vmul.f32 %v1341, %v1758
        %v1760 = vrcp.pop %v1504
        %v1761 = vmul.f32 %v1504, %v1760
        %v1762 = vsub.f32 1.0, %v1761
        %v1763 = vmul.f32 %v1760, %v1762
        %v1764 = vadd.f32 %v1760, %v1763
        %vm1765 = vweird.f32 %v1504
        %vm1766 = vweird.f32 %v1760
        %vm1767 = vmor %vm1765, %vm1766
        %v1768 = vsel %vm1767, %v1760, %v1764
        %v1769 = vand.u32 2147483647, %v1504
        %vm1770 = vcmp.eq.f32.partialorder %v1769, 8.507059e+37
        %v1771 = vand.u32 %v1504, 2147483648
        %v1772 = vor.u32 1.1754944e-38, %v1771
        %v1773 = vsel %vm1770, %v1772, %v1768
        %v1774 = vmul.f32 %v1343, %v1773
        %v1775 = vrcp.pop %v1513
        %v1776 = vmul.f32 %v1513, %v1775
        %v1777 = vsub.f32 1.0, %v1776
        %v1778 = vmul.f32 %v1775, %v1777
        %v1779 = vadd.f32 %v1775, %v1778
        %vm1780 = vweird.f32 %v1513
        %vm1781 = vweird.f32 %v1775
        %vm1782 = vmor %vm1780, %vm1781
        %v1783 = vsel %vm1782, %v1775, %v1779
        %v1784 = vand.u32 2147483647, %v1513
        %vm1785 = vcmp.eq.f32.partialorder %v1784, 8.507059e+37
        %v1786 = vand.u32 %v1513, 2147483648
        %v1787 = vor.u32 1.1754944e-38, %v1786
        %v1788 = vsel %vm1785, %v1787, %v1783
        %v1789 = vmul.f32 %v1345, %v1788
        %v1790 = vmul.f32 %v1347, %v1743
        %v1791 = vmul.f32 %v1349, %v1758
        %v1792 = vmul.f32 %v1351, %v1773
        %v1793 = vmul.f32 %v1353, %v1788
        %v1794 = vmul.f32 %v1355, %v1743
        %v1795 = vmul.f32 %v1357, %v1758
        %v1796 = vmul.f32 %v1359, %v1773
        %v1797 = vmul.f32 %v1361, %v1788
        %v1798 = vmul.f32 %v1363, %v1743
        %v1799 = vmul.f32 %v1365, %v1758
        %v1800 = vmul.f32 %v1367, %v1773
        %v1801 = vmul.f32 %v1369, %v1788
        %v1802 = vmul.f32 %v1528, 0.17677669
        %v1803 = vmul.f32 %v1543, 0.17677669
        %v1804 = vmul.f32 %v1558, 0.17677669
        %v1805 = vmul.f32 %v1573, 0.17677669
        %v1806 = vmul.f32 %v1574, 0.17677669
        %v1807 = vmul.f32 %v1575, 0.17677669
        %v1808 = vmul.f32 %v1576, 0.17677669
        %v1809 = vmul.f32 %v1577, 0.17677669
        %v1810 = vmul.f32 %v1578, 0.17677669
        %v1811 = vmul.f32 %v1579, 0.17677669
        %v1812 = vmul.f32 %v1580, 0.17677669
        %v1813 = vmul.f32 %v1581, 0.17677669
        %v1814 = vmul.f32 %v1582, 0.17677669
        %v1815 = vmul.f32 %v1583, 0.17677669
        %v1816 = vmul.f32 %v1584, 0.17677669
        %v1817 = vmul.f32 %v1585, 0.17677669
        %v1818 = vmul.f32 %v1600, 0.17677669
        %v1819 = vmul.f32 %v1615, 0.17677669
        %v1820 = vmul.f32 %v1630, 0.17677669
        %v1821 = vmul.f32 %v1645, 0.17677669
        %v1822 = vmul.f32 %v1646, 0.17677669
        %v1823 = vmul.f32 %v1647, 0.17677669
        %v1824 = vmul.f32 %v1648, 0.17677669
        %v1825 = vmul.f32 %v1649, 0.17677669
        %v1826 = vmul.f32 %v1650, 0.17677669
        %v1827 = vmul.f32 %v1651, 0.17677669
        %v1828 = vmul.f32 %v1652, 0.17677669
        %v1829 = vmul.f32 %v1653, 0.17677669
        %v1830 = vmul.f32 %v1654, 0.17677669
        %v1831 = vmul.f32 %v1655, 0.17677669
        %v1832 = vmul.f32 %v1656, 0.17677669
        %v1833 = vmul.f32 %v1657, 0.17677669
        %v1834 = vmul.f32 %v1672, 0.17677669
        %v1835 = vmul.f32 %v1687, 0.17677669
        %v1836 = vmul.f32 %v1702, 0.17677669
        %v1837 = vmul.f32 %v1717, 0.17677669
        %v1838 = vmul.f32 %v1718, 0.17677669
        %v1839 = vmul.f32 %v1719, 0.17677669
        %v1840 = vmul.f32 %v1720, 0.17677669
        %v1841 = vmul.f32 %v1721, 0.17677669
        %v1842 = vmul.f32 %v1722, 0.17677669
        %v1843 = vmul.f32 %v1723, 0.17677669
        %v1844 = vmul.f32 %v1724, 0.17677669
        %v1845 = vmul.f32 %v1725, 0.17677669
        %v1846 = vmul.f32 %v1726, 0.17677669
        %v1847 = vmul.f32 %v1727, 0.17677669
        %v1848 = vmul.f32 %v1728, 0.17677669
        %v1849 = vmul.f32 %v1729, 0.17677669
        %v1850 = vmul.f32 %v1744, 0.17677669
        %v1851 = vmul.f32 %v1759, 0.17677669
        %v1852 = vmul.f32 %v1774, 0.17677669
        %v1853 = vmul.f32 %v1789, 0.17677669
        %v1854 = vmul.f32 %v1790, 0.17677669
        %v1855 = vmul.f32 %v1791, 0.17677669
        %v1856 = vmul.f32 %v1792, 0.17677669
        %v1857 = vmul.f32 %v1793, 0.17677669
        %v1858 = vmul.f32 %v1794, 0.17677669
        %v1859 = vmul.f32 %v1795, 0.17677669
        %v1860 = vmul.f32 %v1796, 0.17677669
        %v1861 = vmul.f32 %v1797, 0.17677669
        %v1862 = vmul.f32 %v1798, 0.17677669
        %v1863 = vmul.f32 %v1799, 0.17677669
        %v1864 = vmul.f32 %v1800, 0.17677669
        %v1865 = vmul.f32 %v1801, 0.17677669
        %v1866 = vpack.c.bf16 %v1803, %v1802
        %v1867 = vpack.c.bf16 %v1805, %v1804
        %v1868 = vpack.c.bf16 %v1807, %v1806
        %v1869 = vpack.c.bf16 %v1809, %v1808
        %v1870 = vpack.c.bf16 %v1811, %v1810
        %v1871 = vpack.c.bf16 %v1813, %v1812
        %v1872 = vpack.c.bf16 %v1815, %v1814
        %v1873 = vpack.c.bf16 %v1817, %v1816
        %v1874 = vpack.c.bf16 %v1819, %v1818
        %v1875 = vpack.c.bf16 %v1821, %v1820
        %v1876 = vpack.c.bf16 %v1823, %v1822
        %v1877 = vpack.c.bf16 %v1825, %v1824
        %v1878 = vpack.c.bf16 %v1827, %v1826
        %v1879 = vpack.c.bf16 %v1829, %v1828
        %v1880 = vpack.c.bf16 %v1831, %v1830
        %v1881 = vpack.c.bf16 %v1833, %v1832
        %v1882 = vpack.c.bf16 %v1835, %v1834
        %v1883 = vpack.c.bf16 %v1837, %v1836
        %v1884 = vpack.c.bf16 %v1839, %v1838
        %v1885 = vpack.c.bf16 %v1841, %v1840
        %v1886 = vpack.c.bf16 %v1843, %v1842
        %v1887 = vpack.c.bf16 %v1845, %v1844
        %v1888 = vpack.c.bf16 %v1847, %v1846
        %v1889 = vpack.c.bf16 %v1849, %v1848
        %v1890 = vpack.c.bf16 %v1851, %v1850
        %v1891 = vpack.c.bf16 %v1853, %v1852
        %v1892 = vpack.c.bf16 %v1855, %v1854
        %v1893 = vpack.c.bf16 %v1857, %v1856
        %v1894 = vpack.c.bf16 %v1859, %v1858
        %v1895 = vpack.c.bf16 %v1861, %v1860
        %v1896 = vpack.c.bf16 %v1863, %v1862
        %v1897 = vpack.c.bf16 %v1865, %v1864
        %v1898 = vld [vmem:[%s3] sm:$0xff]
        %v1899 = vld [vmem:[%s3 + $0x8] sm:$0xff]
        %v1900 = vld [vmem:[%s3 + $0x10] sm:$0xff]
        %v1901 = vld [vmem:[%s3 + $0x18] sm:$0xff]
        %1903 = vset.pattern.permute.xlu0 0
        %1904 = vperm.xlu0 %1903, %v1898
        %v1905 = vpop.permute.xlu0 %1904
        %1908 = vset.pattern.permute.xlu0 0
        %1909 = vperm.xlu0 %1908, %v1899
        %v1910 = vpop.permute.xlu0 %1909
        %1913 = vset.pattern.permute.xlu0 0
        %1914 = vperm.xlu0 %1913, %v1900
        %v1915 = vpop.permute.xlu0 %1914
        %1918 = vset.pattern.permute.xlu0 0
        %1919 = vperm.xlu0 %1918, %v1901
        %v1920 = vpop.permute.xlu0 %1919
        %v1922 = vmax.f32 %v568, %v697
        %1923 = vmax.xlane.f32.xlu0 %v1922
        %v1924 = vpop.xlane.xlu0 %1923
        %v1925 = vmax.f32 %v570, %v699
        %1926 = vmax.xlane.f32.xlu0 %v1925
        %v1927 = vpop.xlane.xlu0 %1926
        %v1928 = vmax.f32 %v573, %v702
        %1929 = vmax.xlane.f32.xlu0 %v1928
        %v1930 = vpop.xlane.xlu0 %1929
        %v1931 = vmax.f32 %v575, %v704
        %1932 = vmax.xlane.f32.xlu0 %v1931
        %v1933 = vpop.xlane.xlu0 %1932
        %v1934 = vmax.f32 %v578, %v707
        %1935 = vmax.xlane.f32.xlu0 %v1934
        %v1936 = vpop.xlane.xlu0 %1935
        %v1937 = vmax.f32 %v580, %v709
        %1938 = vmax.xlane.f32.xlu0 %v1937
        %v1939 = vpop.xlane.xlu0 %1938
        %v1940 = vmax.f32 %v583, %v712
        %1941 = vmax.xlane.f32.xlu0 %v1940
        %v1942 = vpop.xlane.xlu0 %1941
        %v1943 = vmax.f32 %v585, %v714
        %1944 = vmax.xlane.f32.xlu0 %v1943
        %v1945 = vpop.xlane.xlu0 %1944
        %v1946 = vmax.f32 %v588, %v717
        %1947 = vmax.xlane.f32.xlu0 %v1946
        %v1948 = vpop.xlane.xlu0 %1947
        %v1949 = vmax.f32 %v590, %v719
        %1950 = vmax.xlane.f32.xlu0 %v1949
        %v1951 = vpop.xlane.xlu0 %1950
        %v1952 = vmax.f32 %v593, %v722
        %1953 = vmax.xlane.f32.xlu0 %v1952
        %v1954 = vpop.xlane.xlu0 %1953
        %v1955 = vmax.f32 %v595, %v724
        %1956 = vmax.xlane.f32.xlu0 %v1955
        %v1957 = vpop.xlane.xlu0 %1956
        %v1958 = vmax.f32 %v598, %v727
        %1959 = vmax.xlane.f32.xlu0 %v1958
        %v1960 = vpop.xlane.xlu0 %1959
        %v1961 = vmax.f32 %v600, %v729
        %1962 = vmax.xlane.f32.xlu0 %v1961
        %v1963 = vpop.xlane.xlu0 %1962
        %v1964 = vmax.f32 %v603, %v732
        %1965 = vmax.xlane.f32.xlu0 %v1964
        %v1966 = vpop.xlane.xlu0 %1965
        %v1967 = vmax.f32 %v605, %v734
        %1968 = vmax.xlane.f32.xlu0 %v1967
        %v1969 = vpop.xlane.xlu0 %1968
        %v1970 = vsub.f32 %v568, %v1924
        %v1971 = vsub.f32 %v697, %v1924
        %v1972 = vsub.f32 %v570, %v1927
        %v1973 = vsub.f32 %v699, %v1927
        %v1974 = vsub.f32 %v573, %v1930
        %v1975 = vsub.f32 %v702, %v1930
        %v1976 = vsub.f32 %v575, %v1933
        %v1977 = vsub.f32 %v704, %v1933
        %v1978 = vsub.f32 %v578, %v1936
        %v1979 = vsub.f32 %v707, %v1936
        %v1980 = vsub.f32 %v580, %v1939
        %v1981 = vsub.f32 %v709, %v1939
        %v1982 = vsub.f32 %v583, %v1942
        %v1983 = vsub.f32 %v712, %v1942
        %v1984 = vsub.f32 %v585, %v1945
        %v1985 = vsub.f32 %v714, %v1945
        %v1986 = vsub.f32 %v588, %v1948
        %v1987 = vsub.f32 %v717, %v1948
        %v1988 = vsub.f32 %v590, %v1951
        %v1989 = vsub.f32 %v719, %v1951
        %v1990 = vsub.f32 %v593, %v1954
        %v1991 = vsub.f32 %v722, %v1954
        %v1992 = vsub.f32 %v595, %v1957
        %v1993 = vsub.f32 %v724, %v1957
        %v1994 = vsub.f32 %v598, %v1960
        %v1995 = vsub.f32 %v727, %v1960
        %v1996 = vsub.f32 %v600, %v1963
        %v1997 = vsub.f32 %v729, %v1963
        %v1998 = vsub.f32 %v603, %v1966
        %v1999 = vsub.f32 %v732, %v1966
        %v2000 = vsub.f32 %v605, %v1969
        %v2001 = vsub.f32 %v734, %v1969
        %v2002 = vmul.f32 %v1970, 1.442695
        %v2003 = vpow.pop %v2002
        %v2004 = vmul.f32 %v1971, 1.442695
        %v2005 = vpow.pop %v2004
        %v2006 = vmul.f32 %v1972, 1.442695
        %v2007 = vpow.pop %v2006
        %v2008 = vmul.f32 %v1973, 1.442695
        %v2009 = vpow.pop %v2008
        %v2010 = vmul.f32 %v1974, 1.442695
        %v2011 = vpow.pop %v2010
        %v2012 = vmul.f32 %v1975, 1.442695
        %v2013 = vpow.pop %v2012
        %v2014 = vmul.f32 %v1976, 1.442695
        %v2015 = vpow.pop %v2014
        %v2016 = vmul.f32 %v1977, 1.442695
        %v2017 = vpow.pop %v2016
        %v2018 = vmul.f32 %v1978, 1.442695
        %v2019 = vpow.pop %v2018
        %v2020 = vmul.f32 %v1979, 1.442695
        %v2021 = vpow.pop %v2020
        %v2022 = vmul.f32 %v1980, 1.442695
        %v2023 = vpow.pop %v2022
        %v2024 = vmul.f32 %v1981, 1.442695
        %v2025 = vpow.pop %v2024
        %v2026 = vmul.f32 %v1982, 1.442695
        %v2027 = vpow.pop %v2026
        %v2028 = vmul.f32 %v1983, 1.442695
        %v2029 = vpow.pop %v2028
        %v2030 = vmul.f32 %v1984, 1.442695
        %v2031 = vpow.pop %v2030
        %v2032 = vmul.f32 %v1985, 1.442695
        %v2033 = vpow.pop %v2032
        %v2034 = vmul.f32 %v1986, 1.442695
        %v2035 = vpow.pop %v2034
        %v2036 = vmul.f32 %v1987, 1.442695
        %v2037 = vpow.pop %v2036
        %v2038 = vmul.f32 %v1988, 1.442695
        %v2039 = vpow.pop %v2038
        %v2040 = vmul.f32 %v1989, 1.442695
        %v2041 = vpow.pop %v2040
        %v2042 = vmul.f32 %v1990, 1.442695
        %v2043 = vpow.pop %v2042
        %v2044 = vmul.f32 %v1991, 1.442695
        %v2045 = vpow.pop %v2044
        %v2046 = vmul.f32 %v1992, 1.442695
        %v2047 = vpow.pop %v2046
        %v2048 = vmul.f32 %v1993, 1.442695
        %v2049 = vpow.pop %v2048
        %v2050 = vmul.f32 %v1994, 1.442695
        %v2051 = vpow.pop %v2050
        %v2052 = vmul.f32 %v1995, 1.442695
        %v2053 = vpow.pop %v2052
        %v2054 = vmul.f32 %v1996, 1.442695
        %v2055 = vpow.pop %v2054
        %v2056 = vmul.f32 %v1997, 1.442695
        %v2057 = vpow.pop %v2056
        %v2058 = vmul.f32 %v1998, 1.442695
        %v2059 = vpow.pop %v2058
        %v2060 = vmul.f32 %v1999, 1.442695
        %v2061 = vpow.pop %v2060
        %v2062 = vmul.f32 %v2000, 1.442695
        %v2063 = vpow.pop %v2062
        %v2064 = vmul.f32 %v2001, 1.442695
        %v2065 = vpow.pop %v2064
        %v2066 = vadd.f32 %v2003, %v2005
        %2067 = vadd.xlane.f32.xlu0 %v2066
        %v2068 = vpop.xlane.xlu0 %2067
        %v2069 = vadd.f32 %v2007, %v2009
        %2070 = vadd.xlane.f32.xlu0 %v2069
        %v2071 = vpop.xlane.xlu0 %2070
        %v2072 = vadd.f32 %v2011, %v2013
        %2073 = vadd.xlane.f32.xlu0 %v2072
        %v2074 = vpop.xlane.xlu0 %2073
        %v2075 = vadd.f32 %v2015, %v2017
        %2076 = vadd.xlane.f32.xlu0 %v2075
        %v2077 = vpop.xlane.xlu0 %2076
        %v2078 = vadd.f32 %v2019, %v2021
        %2079 = vadd.xlane.f32.xlu0 %v2078
        %v2080 = vpop.xlane.xlu0 %2079
        %v2081 = vadd.f32 %v2023, %v2025
        %2082 = vadd.xlane.f32.xlu0 %v2081
        %v2083 = vpop.xlane.xlu0 %2082
        %v2084 = vadd.f32 %v2027, %v2029
        %2085 = vadd.xlane.f32.xlu0 %v2084
        %v2086 = vpop.xlane.xlu0 %2085
        %v2087 = vadd.f32 %v2031, %v2033
        %2088 = vadd.xlane.f32.xlu0 %v2087
        %v2089 = vpop.xlane.xlu0 %2088
        %v2090 = vadd.f32 %v2035, %v2037
        %2091 = vadd.xlane.f32.xlu0 %v2090
        %v2092 = vpop.xlane.xlu0 %2091
        %v2093 = vadd.f32 %v2039, %v2041
        %2094 = vadd.xlane.f32.xlu0 %v2093
        %v2095 = vpop.xlane.xlu0 %2094
        %v2096 = vadd.f32 %v2043, %v2045
        %2097 = vadd.xlane.f32.xlu0 %v2096
        %v2098 = vpop.xlane.xlu0 %2097
        %v2099 = vadd.f32 %v2047, %v2049
        %2100 = vadd.xlane.f32.xlu0 %v2099
        %v2101 = vpop.xlane.xlu0 %2100
        %v2102 = vadd.f32 %v2051, %v2053
        %2103 = vadd.xlane.f32.xlu0 %v2102
        %v2104 = vpop.xlane.xlu0 %2103
        %v2105 = vadd.f32 %v2055, %v2057
        %2106 = vadd.xlane.f32.xlu0 %v2105
        %v2107 = vpop.xlane.xlu0 %2106
        %v2108 = vadd.f32 %v2059, %v2061
        %2109 = vadd.xlane.f32.xlu0 %v2108
        %v2110 = vpop.xlane.xlu0 %2109
        %v2111 = vadd.f32 %v2063, %v2065
        %2112 = vadd.xlane.f32.xlu0 %v2111
        %v2113 = vpop.xlane.xlu0 %2112
        %v2114 = vrcp.pop %v2068
        %v2115 = vmul.f32 %v2068, %v2114
        %v2116 = vsub.f32 1.0, %v2115
        %v2117 = vmul.f32 %v2114, %v2116
        %v2118 = vadd.f32 %v2114, %v2117
        %vm2119 = vweird.f32 %v2068
        %vm2120 = vweird.f32 %v2114
        %vm2121 = vmor %vm2119, %vm2120
        %v2122 = vsel %vm2121, %v2114, %v2118
        %v2123 = vand.u32 2147483647, %v2068
        %vm2124 = vcmp.eq.f32.partialorder %v2123, 8.507059e+37
        %v2125 = vand.u32 %v2068, 2147483648
        %v2126 = vor.u32 1.1754944e-38, %v2125
        %v2127 = vsel %vm2124, %v2126, %v2122
        %v2128 = vmul.f32 %v2003, %v2127
        %v2129 = vmul.f32 %v2005, %v2127
        %v2130 = vrcp.pop %v2071
        %v2131 = vmul.f32 %v2071, %v2130
        %v2132 = vsub.f32 1.0, %v2131
        %v2133 = vmul.f32 %v2130, %v2132
        %v2134 = vadd.f32 %v2130, %v2133
        %vm2135 = vweird.f32 %v2071
        %vm2136 = vweird.f32 %v2130
        %vm2137 = vmor %vm2135, %vm2136
        %v2138 = vsel %vm2137, %v2130, %v2134
        %v2139 = vand.u32 2147483647, %v2071
        %vm2140 = vcmp.eq.f32.partialorder %v2139, 8.507059e+37
        %v2141 = vand.u32 %v2071, 2147483648
        %v2142 = vor.u32 1.1754944e-38, %v2141
        %v2143 = vsel %vm2140, %v2142, %v2138
        %v2144 = vmul.f32 %v2007, %v2143
        %v2145 = vmul.f32 %v2009, %v2143
        %v2146 = vrcp.pop %v2074
        %v2147 = vmul.f32 %v2074, %v2146
        %v2148 = vsub.f32 1.0, %v2147
        %v2149 = vmul.f32 %v2146, %v2148
        %v2150 = vadd.f32 %v2146, %v2149
        %vm2151 = vweird.f32 %v2074
        %vm2152 = vweird.f32 %v2146
        %vm2153 = vmor %vm2151, %vm2152
        %v2154 = vsel %vm2153, %v2146, %v2150
        %v2155 = vand.u32 2147483647, %v2074
        %vm2156 = vcmp.eq.f32.partialorder %v2155, 8.507059e+37
        %v2157 = vand.u32 %v2074, 2147483648
        %v2158 = vor.u32 1.1754944e-38, %v2157
        %v2159 = vsel %vm2156, %v2158, %v2154
        %v2160 = vmul.f32 %v2011, %v2159
        %v2161 = vmul.f32 %v2013, %v2159
        %v2162 = vrcp.pop %v2077
        %v2163 = vmul.f32 %v2077, %v2162
        %v2164 = vsub.f32 1.0, %v2163
        %v2165 = vmul.f32 %v2162, %v2164
        %v2166 = vadd.f32 %v2162, %v2165
        %vm2167 = vweird.f32 %v2077
        %vm2168 = vweird.f32 %v2162
        %vm2169 = vmor %vm2167, %vm2168
        %v2170 = vsel %vm2169, %v2162, %v2166
        %v2171 = vand.u32 2147483647, %v2077
        %vm2172 = vcmp.eq.f32.partialorder %v2171, 8.507059e+37
        %v2173 = vand.u32 %v2077, 2147483648
        %v2174 = vor.u32 1.1754944e-38, %v2173
        %v2175 = vsel %vm2172, %v2174, %v2170
        %v2176 = vmul.f32 %v2015, %v2175
        %v2177 = vmul.f32 %v2017, %v2175
        %v2178 = vrcp.pop %v2080
        %v2179 = vmul.f32 %v2080, %v2178
        %v2180 = vsub.f32 1.0, %v2179
        %v2181 = vmul.f32 %v2178, %v2180
        %v2182 = vadd.f32 %v2178, %v2181
        %vm2183 = vweird.f32 %v2080
        %vm2184 = vweird.f32 %v2178
        %vm2185 = vmor %vm2183, %vm2184
        %v2186 = vsel %vm2185, %v2178, %v2182
        %v2187 = vand.u32 2147483647, %v2080
        %vm2188 = vcmp.eq.f32.partialorder %v2187, 8.507059e+37
        %v2189 = vand.u32 %v2080, 2147483648
        %v2190 = vor.u32 1.1754944e-38, %v2189
        %v2191 = vsel %vm2188, %v2190, %v2186
        %v2192 = vmul.f32 %v2019, %v2191
        %v2193 = vmul.f32 %v2021, %v2191
        %v2194 = vrcp.pop %v2083
        %v2195 = vmul.f32 %v2083, %v2194
        %v2196 = vsub.f32 1.0, %v2195
        %v2197 = vmul.f32 %v2194, %v2196
        %v2198 = vadd.f32 %v2194, %v2197
        %vm2199 = vweird.f32 %v2083
        %vm2200 = vweird.f32 %v2194
        %vm2201 = vmor %vm2199, %vm2200
        %v2202 = vsel %vm2201, %v2194, %v2198
        %v2203 = vand.u32 2147483647, %v2083
        %vm2204 = vcmp.eq.f32.partialorder %v2203, 8.507059e+37
        %v2205 = vand.u32 %v2083, 2147483648
        %v2206 = vor.u32 1.1754944e-38, %v2205
        %v2207 = vsel %vm2204, %v2206, %v2202
        %v2208 = vmul.f32 %v2023, %v2207
        %v2209 = vmul.f32 %v2025, %v2207
        %v2210 = vrcp.pop %v2086
        %v2211 = vmul.f32 %v2086, %v2210
        %v2212 = vsub.f32 1.0, %v2211
        %v2213 = vmul.f32 %v2210, %v2212
        %v2214 = vadd.f32 %v2210, %v2213
        %vm2215 = vweird.f32 %v2086
        %vm2216 = vweird.f32 %v2210
        %vm2217 = vmor %vm2215, %vm2216
        %v2218 = vsel %vm2217, %v2210, %v2214
        %v2219 = vand.u32 2147483647, %v2086
        %vm2220 = vcmp.eq.f32.partialorder %v2219, 8.507059e+37
        %v2221 = vand.u32 %v2086, 2147483648
        %v2222 = vor.u32 1.1754944e-38, %v2221
        %v2223 = vsel %vm2220, %v2222, %v2218
        %v2224 = vmul.f32 %v2027, %v2223
        %v2225 = vmul.f32 %v2029, %v2223
        %v2226 = vrcp.pop %v2089
        %v2227 = vmul.f32 %v2089, %v2226
        %v2228 = vsub.f32 1.0, %v2227
        %v2229 = vmul.f32 %v2226, %v2228
        %v2230 = vadd.f32 %v2226, %v2229
        %vm2231 = vweird.f32 %v2089
        %vm2232 = vweird.f32 %v2226
        %vm2233 = vmor %vm2231, %vm2232
        %v2234 = vsel %vm2233, %v2226, %v2230
        %v2235 = vand.u32 2147483647, %v2089
        %vm2236 = vcmp.eq.f32.partialorder %v2235, 8.507059e+37
        %v2237 = vand.u32 %v2089, 2147483648
        %v2238 = vor.u32 1.1754944e-38, %v2237
        %v2239 = vsel %vm2236, %v2238, %v2234
        %v2240 = vmul.f32 %v2031, %v2239
        %v2241 = vmul.f32 %v2033, %v2239
        %v2242 = vrcp.pop %v2092
        %v2243 = vmul.f32 %v2092, %v2242
        %v2244 = vsub.f32 1.0, %v2243
        %v2245 = vmul.f32 %v2242, %v2244
        %v2246 = vadd.f32 %v2242, %v2245
        %vm2247 = vweird.f32 %v2092
        %vm2248 = vweird.f32 %v2242
        %vm2249 = vmor %vm2247, %vm2248
        %v2250 = vsel %vm2249, %v2242, %v2246
        %v2251 = vand.u32 2147483647, %v2092
        %vm2252 = vcmp.eq.f32.partialorder %v2251, 8.507059e+37
        %v2253 = vand.u32 %v2092, 2147483648
        %v2254 = vor.u32 1.1754944e-38, %v2253
        %v2255 = vsel %vm2252, %v2254, %v2250
        %v2256 = vmul.f32 %v2035, %v2255
        %v2257 = vmul.f32 %v2037, %v2255
        %v2258 = vrcp.pop %v2095
        %v2259 = vmul.f32 %v2095, %v2258
        %v2260 = vsub.f32 1.0, %v2259
        %v2261 = vmul.f32 %v2258, %v2260
        %v2262 = vadd.f32 %v2258, %v2261
        %vm2263 = vweird.f32 %v2095
        %vm2264 = vweird.f32 %v2258
        %vm2265 = vmor %vm2263, %vm2264
        %v2266 = vsel %vm2265, %v2258, %v2262
        %v2267 = vand.u32 2147483647, %v2095
        %vm2268 = vcmp.eq.f32.partialorder %v2267, 8.507059e+37
        %v2269 = vand.u32 %v2095, 2147483648
        %v2270 = vor.u32 1.1754944e-38, %v2269
        %v2271 = vsel %vm2268, %v2270, %v2266
        %v2272 = vmul.f32 %v2039, %v2271
        %v2273 = vmul.f32 %v2041, %v2271
        %v2274 = vrcp.pop %v2098
        %v2275 = vmul.f32 %v2098, %v2274
        %v2276 = vsub.f32 1.0, %v2275
        %v2277 = vmul.f32 %v2274, %v2276
        %v2278 = vadd.f32 %v2274, %v2277
        %vm2279 = vweird.f32 %v2098
        %vm2280 = vweird.f32 %v2274
        %vm2281 = vmor %vm2279, %vm2280
        %v2282 = vsel %vm2281, %v2274, %v2278
        %v2283 = vand.u32 2147483647, %v2098
        %vm2284 = vcmp.eq.f32.partialorder %v2283, 8.507059e+37
        %v2285 = vand.u32 %v2098, 2147483648
        %v2286 = vor.u32 1.1754944e-38, %v2285
        %v2287 = vsel %vm2284, %v2286, %v2282
        %v2288 = vmul.f32 %v2043, %v2287
        %v2289 = vmul.f32 %v2045, %v2287
        %v2290 = vrcp.pop %v2101
        %v2291 = vmul.f32 %v2101, %v2290
        %v2292 = vsub.f32 1.0, %v2291
        %v2293 = vmul.f32 %v2290, %v2292
        %v2294 = vadd.f32 %v2290, %v2293
        %vm2295 = vweird.f32 %v2101
        %vm2296 = vweird.f32 %v2290
        %vm2297 = vmor %vm2295, %vm2296
        %v2298 = vsel %vm2297, %v2290, %v2294
        %v2299 = vand.u32 2147483647, %v2101
        %vm2300 = vcmp.eq.f32.partialorder %v2299, 8.507059e+37
        %v2301 = vand.u32 %v2101, 2147483648
        %v2302 = vor.u32 1.1754944e-38, %v2301
        %v2303 = vsel %vm2300, %v2302, %v2298
        %v2304 = vmul.f32 %v2047, %v2303
        %v2305 = vmul.f32 %v2049, %v2303
        %v2306 = vrcp.pop %v2104
        %v2307 = vmul.f32 %v2104, %v2306
        %v2308 = vsub.f32 1.0, %v2307
        %v2309 = vmul.f32 %v2306, %v2308
        %v2310 = vadd.f32 %v2306, %v2309
        %vm2311 = vweird.f32 %v2104
        %vm2312 = vweird.f32 %v2306
        %vm2313 = vmor %vm2311, %vm2312
        %v2314 = vsel %vm2313, %v2306, %v2310
        %v2315 = vand.u32 2147483647, %v2104
        %vm2316 = vcmp.eq.f32.partialorder %v2315, 8.507059e+37
        %v2317 = vand.u32 %v2104, 2147483648
        %v2318 = vor.u32 1.1754944e-38, %v2317
        %v2319 = vsel %vm2316, %v2318, %v2314
        %v2320 = vmul.f32 %v2051, %v2319
        %v2321 = vmul.f32 %v2053, %v2319
        %v2322 = vrcp.pop %v2107
        %v2323 = vmul.f32 %v2107, %v2322
        %v2324 = vsub.f32 1.0, %v2323
        %v2325 = vmul.f32 %v2322, %v2324
        %v2326 = vadd.f32 %v2322, %v2325
        %vm2327 = vweird.f32 %v2107
        %vm2328 = vweird.f32 %v2322
        %vm2329 = vmor %vm2327, %vm2328
        %v2330 = vsel %vm2329, %v2322, %v2326
        %v2331 = vand.u32 2147483647, %v2107
        %vm2332 = vcmp.eq.f32.partialorder %v2331, 8.507059e+37
        %v2333 = vand.u32 %v2107, 2147483648
        %v2334 = vor.u32 1.1754944e-38, %v2333
        %v2335 = vsel %vm2332, %v2334, %v2330
        %v2336 = vmul.f32 %v2055, %v2335
        %v2337 = vmul.f32 %v2057, %v2335
        %v2338 = vrcp.pop %v2110
        %v2339 = vmul.f32 %v2110, %v2338
        %v2340 = vsub.f32 1.0, %v2339
        %v2341 = vmul.f32 %v2338, %v2340
        %v2342 = vadd.f32 %v2338, %v2341
        %vm2343 = vweird.f32 %v2110
        %vm2344 = vweird.f32 %v2338
        %vm2345 = vmor %vm2343, %vm2344
        %v2346 = vsel %vm2345, %v2338, %v2342
        %v2347 = vand.u32 2147483647, %v2110
        %vm2348 = vcmp.eq.f32.partialorder %v2347, 8.507059e+37
        %v2349 = vand.u32 %v2110, 2147483648
        %v2350 = vor.u32 1.1754944e-38, %v2349
        %v2351 = vsel %vm2348, %v2350, %v2346
        %v2352 = vmul.f32 %v2059, %v2351
        %v2353 = vmul.f32 %v2061, %v2351
        %v2354 = vrcp.pop %v2113
        %v2355 = vmul.f32 %v2113, %v2354
        %v2356 = vsub.f32 1.0, %v2355
        %v2357 = vmul.f32 %v2354, %v2356
        %v2358 = vadd.f32 %v2354, %v2357
        %vm2359 = vweird.f32 %v2113
        %vm2360 = vweird.f32 %v2354
        %vm2361 = vmor %vm2359, %vm2360
        %v2362 = vsel %vm2361, %v2354, %v2358
        %v2363 = vand.u32 2147483647, %v2113
        %vm2364 = vcmp.eq.f32.partialorder %v2363, 8.507059e+37
        %v2365 = vand.u32 %v2113, 2147483648
        %v2366 = vor.u32 1.1754944e-38, %v2365
        %v2367 = vsel %vm2364, %v2366, %v2362
        %v2368 = vmul.f32 %v2063, %v2367
        %v2369 = vmul.f32 %v2065, %v2367
        %v2370 = vpack.c.bf16 %v2129, %v2128
        %v2371 = vpack.c.bf16 %v2145, %v2144
        %v2372 = vpack.c.bf16 %v2161, %v2160
        %v2373 = vpack.c.bf16 %v2177, %v2176
        %v2374 = vpack.c.bf16 %v2193, %v2192
        %v2375 = vpack.c.bf16 %v2209, %v2208
        %v2376 = vpack.c.bf16 %v2225, %v2224
        %v2377 = vpack.c.bf16 %v2241, %v2240
        %v2378 = vpack.c.bf16 %v2257, %v2256
        %v2379 = vpack.c.bf16 %v2273, %v2272
        %v2380 = vpack.c.bf16 %v2289, %v2288
        %v2381 = vpack.c.bf16 %v2305, %v2304
        %v2382 = vpack.c.bf16 %v2321, %v2320
        %v2383 = vpack.c.bf16 %v2337, %v2336
        %v2384 = vpack.c.bf16 %v2353, %v2352
        %v2385 = vpack.c.bf16 %v2369, %v2368
        %v2386 = vpack.c.bf16 %v737, %v608
        %v2387 = vpack.c.bf16 %v739, %v610
        %v2388 = vpack.c.bf16 %v742, %v613
        %v2389 = vpack.c.bf16 %v744, %v615
        %v2390 = vpack.c.bf16 %v747, %v618
        %v2391 = vpack.c.bf16 %v749, %v620
        %v2392 = vpack.c.bf16 %v752, %v623
        %v2393 = vpack.c.bf16 %v754, %v625
        %v2394 = vpack.c.bf16 %v757, %v628
        %v2395 = vpack.c.bf16 %v759, %v630
        %v2396 = vpack.c.bf16 %v762, %v633
        %v2397 = vpack.c.bf16 %v764, %v635
        %v2398 = vpack.c.bf16 %v767, %v638
        %v2399 = vpack.c.bf16 %v769, %v640
        %v2400 = vpack.c.bf16 %v772, %v643
        %v2401 = vpack.c.bf16 %v774, %v645
        %v2406 = vunpack.c.l.b16 %v2386
        %v2407 = vunpack.c.h.b16 %v2386
        %v2408 = vunpack.c.l.b16 %v2387
        %v2409 = vunpack.c.h.b16 %v2387
        %v2410 = vunpack.c.l.b16 %v2388
        %v2411 = vunpack.c.h.b16 %v2388
        %v2412 = vunpack.c.l.b16 %v2389
        %v2413 = vunpack.c.h.b16 %v2389
        %v2414 = vpack.c.b16 %v2408, %v2406
        %v2415 = vpack.c.b16 %v2409, %v2407
        %v2416 = vpack.c.b16 %v2412, %v2410
        %v2417 = vpack.c.b16 %v2413, %v2411
        %v2426 = vunpack.c.l.b16 %v2370
        %v2427 = vunpack.c.h.b16 %v2370
        %v2428 = vunpack.c.l.b16 %v2371
        %v2429 = vunpack.c.h.b16 %v2371
        %v2430 = vunpack.c.l.b16 %v2372
        %v2431 = vunpack.c.h.b16 %v2372
        %v2432 = vunpack.c.l.b16 %v2373
        %v2433 = vunpack.c.h.b16 %v2373
        %v2434 = vpack.c.b16 %v2428, %v2426
        %v2435 = vpack.c.b16 %v2429, %v2427
        %v2436 = vpack.c.b16 %v2432, %v2430
        %v2437 = vpack.c.b16 %v2433, %v2431
        %2442 = vmatpush.bf16.xpose.msra.mxu0 0
        %2443 = vmatpush.bf16.xpose.msra.mxu0 0
        %2444 = vmatpush.bf16.xpose.msra.mxu0 0
        %2445 = vmatpush.bf16.xpose.msra.mxu0 0
        %2446 = vmatpush.bf16.xpose.msra.mxu0 0
        %2447 = vmatpush.bf16.xpose.msra.mxu0 0
        %2448 = vmatpush.bf16.xpose.msra.mxu0 %v2436
        %2449 = vmatpush.bf16.xpose.msra.mxu0 %v2434
        %2450 = vmatmul.bf16.gmra.mxu0 %v2414
        %v2451 = vpop.f32.mrf.mxu0
        %v2452 = vadd.f32 0.0, %v2451
        %v2453 = vpop.f32.mrf.mxu0
        %v2454 = vadd.f32 0.0, %v2453
        %2455 = vmatmul.bf16.gmra.mxu0 %v2416
        %v2456 = vpop.f32.mrf.mxu0
        %v2457 = vadd.f32 0.0, %v2456
        %v2458 = vpop.f32.mrf.mxu0
        %v2459 = vadd.f32 0.0, %v2458
        %2460 = vdwg.mxu0
        %2461 = vmatpush.bf16.xpose.msra.mxu0 0
        %2462 = vmatpush.bf16.xpose.msra.mxu0 0
        %2463 = vmatpush.bf16.xpose.msra.mxu0 0
        %2464 = vmatpush.bf16.xpose.msra.mxu0 0
        %2465 = vmatpush.bf16.xpose.msra.mxu0 0
        %2466 = vmatpush.bf16.xpose.msra.mxu0 0
        %2467 = vmatpush.bf16.xpose.msra.mxu0 %v2437
        %2468 = vmatpush.bf16.xpose.msra.mxu0 %v2435
        %2469 = vmatmul.bf16.gmra.mxu0 %v2415
        %v2470 = vpop.f32.mrf.mxu0
        %v2471 = vadd.f32 %v2452, %v2470
        %v2472 = vpop.f32.mrf.mxu0
        %v2473 = vadd.f32 %v2454, %v2472
        %2474 = vmatmul.bf16.gmra.mxu0 %v2417
        %v2475 = vpop.f32.mrf.mxu0
        %v2476 = vadd.f32 %v2457, %v2475
        %v2477 = vpop.f32.mrf.mxu0
        %v2478 = vadd.f32 %v2459, %v2477
        %2479 = vdwg.mxu0
        %v2480 = vld [vmem:[%s2] sm:$0xf]
        %v2481 = vld [vmem:[%s2 + $0x4] sm:$0xf]
        %v2482 = vld [vmem:[%s2 + $0x8] sm:$0xf]
        %v2483 = vld [vmem:[%s2 + $0xc] sm:$0xf]
        %v2484 = vpack.c.bf16 %v2473, %v2471
        %v2485 = vpack.c.bf16 %v2478, %v2476
        %v2490 = vunpack.c.l.b16 %v2480
        %v2491 = vunpack.c.l.b16 %v2481
        %v2492 = vunpack.c.l.b16 %v2482
        %v2493 = vunpack.c.l.b16 %v2483
        %v2494 = vpack.c.b16 %v2491, %v2490
        %v2495 = vpack.c.b16 %v2493, %v2492
        %v2497 = vsel %vm445, %v2494, 0
        %v2500 = vsel %vm445, %v2495, 0
        %2502 = vmatpush.bf16.msra.mxu0 0
        %2503 = vmatpush.bf16.msra.mxu0 0
        %2504 = vmatpush.bf16.msra.mxu0 0
        %2505 = vmatpush.bf16.msra.mxu0 0
        %2506 = vmatpush.bf16.msra.mxu0 0
        %2507 = vmatpush.bf16.msra.mxu0 0
        %2508 = vmatpush.bf16.msra.mxu0 %v2485
        %2509 = vmatpush.bf16.msra.mxu0 %v2484
        %2510 = vmatmul.bf16.gmra.mxu0 %v2497
        %v2511 = vpop.f32.mrf.mxu0
        %v2512 = vadd.f32 0.0, %v2511
        %v2513 = vpop.f32.mrf.mxu0
        %v2514 = vadd.f32 0.0, %v2513
        %2515 = vmatmul.bf16.gmra.mxu0 %v2500
        %v2516 = vpop.f32.mrf.mxu0
        %v2517 = vadd.f32 0.0, %v2516
        %v2518 = vpop.f32.mrf.mxu0
        %v2519 = vadd.f32 0.0, %v2518
        %2520 = vdwg.mxu0
        %v2525 = vunpack.c.l.b16 %v2390
        %v2526 = vunpack.c.h.b16 %v2390
        %v2527 = vunpack.c.l.b16 %v2391
        %v2528 = vunpack.c.h.b16 %v2391
        %v2529 = vunpack.c.l.b16 %v2392
        %v2530 = vunpack.c.h.b16 %v2392
        %v2531 = vunpack.c.l.b16 %v2393
        %v2532 = vunpack.c.h.b16 %v2393
        %v2533 = vpack.c.b16 %v2527, %v2525
        %v2534 = vpack.c.b16 %v2528, %v2526
        %v2535 = vpack.c.b16 %v2531, %v2529
        %v2536 = vpack.c.b16 %v2532, %v2530
        %v2545 = vunpack.c.l.b16 %v2374
        %v2546 = vunpack.c.h.b16 %v2374
        %v2547 = vunpack.c.l.b16 %v2375
        %v2548 = vunpack.c.h.b16 %v2375
        %v2549 = vunpack.c.l.b16 %v2376
        %v2550 = vunpack.c.h.b16 %v2376
        %v2551 = vunpack.c.l.b16 %v2377
        %v2552 = vunpack.c.h.b16 %v2377
        %v2553 = vpack.c.b16 %v2547, %v2545
        %v2554 = vpack.c.b16 %v2548, %v2546
        %v2555 = vpack.c.b16 %v2551, %v2549
        %v2556 = vpack.c.b16 %v2552, %v2550
        %2561 = vmatpush.bf16.xpose.msra.mxu0 0
        %2562 = vmatpush.bf16.xpose.msra.mxu0 0
        %2563 = vmatpush.bf16.xpose.msra.mxu0 0
        %2564 = vmatpush.bf16.xpose.msra.mxu0 0
        %2565 = vmatpush.bf16.xpose.msra.mxu0 0
        %2566 = vmatpush.bf16.xpose.msra.mxu0 0
        %2567 = vmatpush.bf16.xpose.msra.mxu0 %v2555
        %2568 = vmatpush.bf16.xpose.msra.mxu0 %v2553
        %2569 = vmatmul.bf16.gmra.mxu0 %v2533
        %v2570 = vpop.f32.mrf.mxu0
        %v2571 = vadd.f32 0.0, %v2570
        %v2572 = vpop.f32.mrf.mxu0
        %v2573 = vadd.f32 0.0, %v2572
        %2574 = vmatmul.bf16.gmra.mxu0 %v2535
        %v2575 = vpop.f32.mrf.mxu0
        %v2576 = vadd.f32 0.0, %v2575
        %v2577 = vpop.f32.mrf.mxu0
        %v2578 = vadd.f32 0.0, %v2577
        %2579 = vdwg.mxu0
        %2580 = vmatpush.bf16.xpose.msra.mxu0 0
        %2581 = vmatpush.bf16.xpose.msra.mxu0 0
        %2582 = vmatpush.bf16.xpose.msra.mxu0 0
        %2583 = vmatpush.bf16.xpose.msra.mxu0 0
        %2584 = vmatpush.bf16.xpose.msra.mxu0 0
        %2585 = vmatpush.bf16.xpose.msra.mxu0 0
        %2586 = vmatpush.bf16.xpose.msra.mxu0 %v2556
        %2587 = vmatpush.bf16.xpose.msra.mxu0 %v2554
        %2588 = vmatmul.bf16.gmra.mxu0 %v2534
        %v2589 = vpop.f32.mrf.mxu0
        %v2590 = vadd.f32 %v2571, %v2589
        %v2591 = vpop.f32.mrf.mxu0
        %v2592 = vadd.f32 %v2573, %v2591
        %2593 = vmatmul.bf16.gmra.mxu0 %v2536
        %v2594 = vpop.f32.mrf.mxu0
        %v2595 = vadd.f32 %v2576, %v2594
        %v2596 = vpop.f32.mrf.mxu0
        %v2597 = vadd.f32 %v2578, %v2596
        %2598 = vdwg.mxu0
        %s2599 = scalar_lea.vmem %s2, 16
        %v2600 = vld [vmem:[%s2599] sm:$0xf]
        %v2601 = vld [vmem:[%s2599 + $0x4] sm:$0xf]
        %v2602 = vld [vmem:[%s2599 + $0x8] sm:$0xf]
        %v2603 = vld [vmem:[%s2599 + $0xc] sm:$0xf]
        %v2604 = vpack.c.bf16 %v2592, %v2590
        %v2605 = vpack.c.bf16 %v2597, %v2595
        %v2610 = vunpack.c.l.b16 %v2600
        %v2611 = vunpack.c.l.b16 %v2601
        %v2612 = vunpack.c.l.b16 %v2602
        %v2613 = vunpack.c.l.b16 %v2603
        %v2614 = vpack.c.b16 %v2611, %v2610
        %v2615 = vpack.c.b16 %v2613, %v2612
        %v2617 = vsel %vm445, %v2614, 0
        %v2620 = vsel %vm445, %v2615, 0
        %2622 = vmatpush.bf16.msra.mxu0 0
        %2623 = vmatpush.bf16.msra.mxu0 0
        %2624 = vmatpush.bf16.msra.mxu0 0
        %2625 = vmatpush.bf16.msra.mxu0 0
        %2626 = vmatpush.bf16.msra.mxu0 0
        %2627 = vmatpush.bf16.msra.mxu0 0
        %2628 = vmatpush.bf16.msra.mxu0 %v2605
        %2629 = vmatpush.bf16.msra.mxu0 %v2604
        %2630 = vmatmul.bf16.gmra.mxu0 %v2617
        %v2631 = vpop.f32.mrf.mxu0
        %v2632 = vadd.f32 0.0, %v2631
        %v2633 = vpop.f32.mrf.mxu0
        %v2634 = vadd.f32 0.0, %v2633
        %2635 = vmatmul.bf16.gmra.mxu0 %v2620
        %v2636 = vpop.f32.mrf.mxu0
        %v2637 = vadd.f32 0.0, %v2636
        %v2638 = vpop.f32.mrf.mxu0
        %v2639 = vadd.f32 0.0, %v2638
        %2640 = vdwg.mxu0
        %v2645 = vunpack.c.l.b16 %v2394
        %v2646 = vunpack.c.h.b16 %v2394
        %v2647 = vunpack.c.l.b16 %v2395
        %v2648 = vunpack.c.h.b16 %v2395
        %v2649 = vunpack.c.l.b16 %v2396
        %v2650 = vunpack.c.h.b16 %v2396
        %v2651 = vunpack.c.l.b16 %v2397
        %v2652 = vunpack.c.h.b16 %v2397
        %v2653 = vpack.c.b16 %v2647, %v2645
        %v2654 = vpack.c.b16 %v2648, %v2646
        %v2655 = vpack.c.b16 %v2651, %v2649
        %v2656 = vpack.c.b16 %v2652, %v2650
        %v2665 = vunpack.c.l.b16 %v2378
        %v2666 = vunpack.c.h.b16 %v2378
        %v2667 = vunpack.c.l.b16 %v2379
        %v2668 = vunpack.c.h.b16 %v2379
        %v2669 = vunpack.c.l.b16 %v2380
        %v2670 = vunpack.c.h.b16 %v2380
        %v2671 = vunpack.c.l.b16 %v2381
        %v2672 = vunpack.c.h.b16 %v2381
        %v2673 = vpack.c.b16 %v2667, %v2665
        %v2674 = vpack.c.b16 %v2668, %v2666
        %v2675 = vpack.c.b16 %v2671, %v2669
        %v2676 = vpack.c.b16 %v2672, %v2670
        %2681 = vmatpush.bf16.xpose.msra.mxu0 0
        %2682 = vmatpush.bf16.xpose.msra.mxu0 0
        %2683 = vmatpush.bf16.xpose.msra.mxu0 0
        %2684 = vmatpush.bf16.xpose.msra.mxu0 0
        %2685 = vmatpush.bf16.xpose.msra.mxu0 0
        %2686 = vmatpush.bf16.xpose.msra.mxu0 0
        %2687 = vmatpush.bf16.xpose.msra.mxu0 %v2675
        %2688 = vmatpush.bf16.xpose.msra.mxu0 %v2673
        %2689 = vmatmul.bf16.gmra.mxu0 %v2653
        %v2690 = vpop.f32.mrf.mxu0
        %v2691 = vadd.f32 0.0, %v2690
        %v2692 = vpop.f32.mrf.mxu0
        %v2693 = vadd.f32 0.0, %v2692
        %2694 = vmatmul.bf16.gmra.mxu0 %v2655
        %v2695 = vpop.f32.mrf.mxu0
        %v2696 = vadd.f32 0.0, %v2695
        %v2697 = vpop.f32.mrf.mxu0
        %v2698 = vadd.f32 0.0, %v2697
        %2699 = vdwg.mxu0
        %2700 = vmatpush.bf16.xpose.msra.mxu0 0
        %2701 = vmatpush.bf16.xpose.msra.mxu0 0
        %2702 = vmatpush.bf16.xpose.msra.mxu0 0
        %2703 = vmatpush.bf16.xpose.msra.mxu0 0
        %2704 = vmatpush.bf16.xpose.msra.mxu0 0
        %2705 = vmatpush.bf16.xpose.msra.mxu0 0
        %2706 = vmatpush.bf16.xpose.msra.mxu0 %v2676
        %2707 = vmatpush.bf16.xpose.msra.mxu0 %v2674
        %2708 = vmatmul.bf16.gmra.mxu0 %v2654
        %v2709 = vpop.f32.mrf.mxu0
        %v2710 = vadd.f32 %v2691, %v2709
        %v2711 = vpop.f32.mrf.mxu0
        %v2712 = vadd.f32 %v2693, %v2711
        %2713 = vmatmul.bf16.gmra.mxu0 %v2656
        %v2714 = vpop.f32.mrf.mxu0
        %v2715 = vadd.f32 %v2696, %v2714
        %v2716 = vpop.f32.mrf.mxu0
        %v2717 = vadd.f32 %v2698, %v2716
        %2718 = vdwg.mxu0
        %s2719 = scalar_lea.vmem %s2, 32
        %v2720 = vld [vmem:[%s2719] sm:$0xf]
        %v2721 = vld [vmem:[%s2719 + $0x4] sm:$0xf]
        %v2722 = vld [vmem:[%s2719 + $0x8] sm:$0xf]
        %v2723 = vld [vmem:[%s2719 + $0xc] sm:$0xf]
        %v2724 = vpack.c.bf16 %v2712, %v2710
        %v2725 = vpack.c.bf16 %v2717, %v2715
        %v2730 = vunpack.c.l.b16 %v2720
        %v2731 = vunpack.c.l.b16 %v2721
        %v2732 = vunpack.c.l.b16 %v2722
        %v2733 = vunpack.c.l.b16 %v2723
        %v2734 = vpack.c.b16 %v2731, %v2730
        %v2735 = vpack.c.b16 %v2733, %v2732
        %v2737 = vsel %vm445, %v2734, 0
        %v2740 = vsel %vm445, %v2735, 0
        %2742 = vmatpush.bf16.msra.mxu0 0
        %2743 = vmatpush.bf16.msra.mxu0 0
        %2744 = vmatpush.bf16.msra.mxu0 0
        %2745 = vmatpush.bf16.msra.mxu0 0
        %2746 = vmatpush.bf16.msra.mxu0 0
        %2747 = vmatpush.bf16.msra.mxu0 0
        %2748 = vmatpush.bf16.msra.mxu0 %v2725
        %2749 = vmatpush.bf16.msra.mxu0 %v2724
        %2750 = vmatmul.bf16.gmra.mxu0 %v2737
        %v2751 = vpop.f32.mrf.mxu0
        %v2752 = vadd.f32 0.0, %v2751
        %v2753 = vpop.f32.mrf.mxu0
        %v2754 = vadd.f32 0.0, %v2753
        %2755 = vmatmul.bf16.gmra.mxu0 %v2740
        %v2756 = vpop.f32.mrf.mxu0
        %v2757 = vadd.f32 0.0, %v2756
        %v2758 = vpop.f32.mrf.mxu0
        %v2759 = vadd.f32 0.0, %v2758
        %2760 = vdwg.mxu0
        %v2765 = vunpack.c.l.b16 %v2398
        %v2766 = vunpack.c.h.b16 %v2398
        %v2767 = vunpack.c.l.b16 %v2399
        %v2768 = vunpack.c.h.b16 %v2399
        %v2769 = vunpack.c.l.b16 %v2400
        %v2770 = vunpack.c.h.b16 %v2400
        %v2771 = vunpack.c.l.b16 %v2401
        %v2772 = vunpack.c.h.b16 %v2401
        %v2773 = vpack.c.b16 %v2767, %v2765
        %v2774 = vpack.c.b16 %v2768, %v2766
        %v2775 = vpack.c.b16 %v2771, %v2769
        %v2776 = vpack.c.b16 %v2772, %v2770
        %v2785 = vunpack.c.l.b16 %v2382
        %v2786 = vunpack.c.h.b16 %v2382
        %v2787 = vunpack.c.l.b16 %v2383
        %v2788 = vunpack.c.h.b16 %v2383
        %v2789 = vunpack.c.l.b16 %v2384
        %v2790 = vunpack.c.h.b16 %v2384
        %v2791 = vunpack.c.l.b16 %v2385
        %v2792 = vunpack.c.h.b16 %v2385
        %v2793 = vpack.c.b16 %v2787, %v2785
        %v2794 = vpack.c.b16 %v2788, %v2786
        %v2795 = vpack.c.b16 %v2791, %v2789
        %v2796 = vpack.c.b16 %v2792, %v2790
        %2801 = vmatpush.bf16.xpose.msra.mxu0 0
        %2802 = vmatpush.bf16.xpose.msra.mxu0 0
        %2803 = vmatpush.bf16.xpose.msra.mxu0 0
        %2804 = vmatpush.bf16.xpose.msra.mxu0 0
        %2805 = vmatpush.bf16.xpose.msra.mxu0 0
        %2806 = vmatpush.bf16.xpose.msra.mxu0 0
        %2807 = vmatpush.bf16.xpose.msra.mxu0 %v2795
        %2808 = vmatpush.bf16.xpose.msra.mxu0 %v2793
        %2809 = vmatmul.bf16.gmra.mxu0 %v2773
        %v2810 = vpop.f32.mrf.mxu0
        %v2811 = vadd.f32 0.0, %v2810
        %v2812 = vpop.f32.mrf.mxu0
        %v2813 = vadd.f32 0.0, %v2812
        %2814 = vmatmul.bf16.gmra.mxu0 %v2775
        %v2815 = vpop.f32.mrf.mxu0
        %v2816 = vadd.f32 0.0, %v2815
        %v2817 = vpop.f32.mrf.mxu0
        %v2818 = vadd.f32 0.0, %v2817
        %2819 = vdwg.mxu0
        %2820 = vmatpush.bf16.xpose.msra.mxu0 0
        %2821 = vmatpush.bf16.xpose.msra.mxu0 0
        %2822 = vmatpush.bf16.xpose.msra.mxu0 0
        %2823 = vmatpush.bf16.xpose.msra.mxu0 0
        %2824 = vmatpush.bf16.xpose.msra.mxu0 0
        %2825 = vmatpush.bf16.xpose.msra.mxu0 0
        %2826 = vmatpush.bf16.xpose.msra.mxu0 %v2796
        %2827 = vmatpush.bf16.xpose.msra.mxu0 %v2794
        %2828 = vmatmul.bf16.gmra.mxu0 %v2774
        %v2829 = vpop.f32.mrf.mxu0
        %v2830 = vadd.f32 %v2811, %v2829
        %v2831 = vpop.f32.mrf.mxu0
        %v2832 = vadd.f32 %v2813, %v2831
        %2833 = vmatmul.bf16.gmra.mxu0 %v2776
        %v2834 = vpop.f32.mrf.mxu0
        %v2835 = vadd.f32 %v2816, %v2834
        %v2836 = vpop.f32.mrf.mxu0
        %v2837 = vadd.f32 %v2818, %v2836
        %2838 = vdwg.mxu0
        %s2839 = scalar_lea.vmem %s2, 48
        %v2840 = vld [vmem:[%s2839] sm:$0xf]
        %v2841 = vld [vmem:[%s2839 + $0x4] sm:$0xf]
        %v2842 = vld [vmem:[%s2839 + $0x8] sm:$0xf]
        %v2843 = vld [vmem:[%s2839 + $0xc] sm:$0xf]
        %v2844 = vpack.c.bf16 %v2832, %v2830
        %v2845 = vpack.c.bf16 %v2837, %v2835
        %v2850 = vunpack.c.l.b16 %v2840
        %v2851 = vunpack.c.l.b16 %v2841
        %v2852 = vunpack.c.l.b16 %v2842
        %v2853 = vunpack.c.l.b16 %v2843
        %v2854 = vpack.c.b16 %v2851, %v2850
        %v2855 = vpack.c.b16 %v2853, %v2852
        %v2857 = vsel %vm445, %v2854, 0
        %v2860 = vsel %vm445, %v2855, 0
        %2862 = vmatpush.bf16.msra.mxu0 0
        %2863 = vmatpush.bf16.msra.mxu0 0
        %2864 = vmatpush.bf16.msra.mxu0 0
        %2865 = vmatpush.bf16.msra.mxu0 0
        %2866 = vmatpush.bf16.msra.mxu0 0
        %2867 = vmatpush.bf16.msra.mxu0 0
        %2868 = vmatpush.bf16.msra.mxu0 %v2845
        %2869 = vmatpush.bf16.msra.mxu0 %v2844
        %2870 = vmatmul.bf16.gmra.mxu0 %v2857
        %v2871 = vpop.f32.mrf.mxu0
        %v2872 = vadd.f32 0.0, %v2871
        %v2873 = vpop.f32.mrf.mxu0
        %v2874 = vadd.f32 0.0, %v2873
        %2875 = vmatmul.bf16.gmra.mxu0 %v2860
        %v2876 = vpop.f32.mrf.mxu0
        %v2877 = vadd.f32 0.0, %v2876
        %v2878 = vpop.f32.mrf.mxu0
        %v2879 = vadd.f32 0.0, %v2878
        %2880 = vdwg.mxu0
        %2885 = vrot.lane.b32.xlu0 %v2632, 32
        %v2886 = vpop.permute.xlu0 %2885
        %2887 = vrot.lane.b32.xlu0 %v2634, 32
        %v2888 = vpop.permute.xlu0 %2887
        %2889 = vrot.lane.b32.xlu0 %v2637, 32
        %v2890 = vpop.permute.xlu0 %2889
        %2891 = vrot.lane.b32.xlu0 %v2639, 32
        %v2892 = vpop.permute.xlu0 %2891
        %2901 = vrot.lane.b32.xlu0 %v2752, 64
        %v2902 = vpop.permute.xlu0 %2901
        %2903 = vrot.lane.b32.xlu0 %v2754, 64
        %v2904 = vpop.permute.xlu0 %2903
        %2905 = vrot.lane.b32.xlu0 %v2757, 64
        %v2906 = vpop.permute.xlu0 %2905
        %2907 = vrot.lane.b32.xlu0 %v2759, 64
        %v2908 = vpop.permute.xlu0 %2907
        %2917 = vrot.lane.b32.xlu0 %v2872, 96
        %v2918 = vpop.permute.xlu0 %2917
        %2919 = vrot.lane.b32.xlu0 %v2874, 96
        %v2920 = vpop.permute.xlu0 %2919
        %2921 = vrot.lane.b32.xlu0 %v2877, 96
        %v2922 = vpop.permute.xlu0 %2921
        %2923 = vrot.lane.b32.xlu0 %v2879, 96
        %v2924 = vpop.permute.xlu0 %2923
        %v2929 = vsel %vm445, %v2512, %v2886
        %v2930 = vsel %vm445, %v2514, %v2888
        %v2931 = vsel %vm445, %v2517, %v2890
        %v2932 = vsel %vm445, %v2519, %v2892
        %vm2933 = vcmask 523264
        %v2934 = vsel %vm2933, %v2929, %v2902
        %v2935 = vsel %vm2933, %v2930, %v2904
        %v2936 = vsel %vm2933, %v2931, %v2906
        %v2937 = vsel %vm2933, %v2932, %v2908
        %vm2938 = vcmask 785408
        %v2939 = vsel %vm2938, %v2934, %v2918
        %v2940 = vsel %vm2938, %v2935, %v2920
        %v2941 = vsel %vm2938, %v2936, %v2922
        %v2942 = vsel %vm2938, %v2937, %v2924
        %v2943 = vpack.c.bf16 %v2940, %v2939
        %v2944 = vpack.c.bf16 %v2942, %v2941
        %v2961 = vunpack.c.l.b16 %v1866
        %v2962 = vunpack.c.h.b16 %v1866
        %v2963 = vunpack.c.l.b16 %v1868
        %v2964 = vunpack.c.h.b16 %v1868
        %v2965 = vunpack.c.l.b16 %v1870
        %v2966 = vunpack.c.h.b16 %v1870
        %v2967 = vunpack.c.l.b16 %v1872
        %v2968 = vunpack.c.h.b16 %v1872
        %v2969 = vunpack.c.l.b16 %v1874
        %v2970 = vunpack.c.h.b16 %v1874
        %v2971 = vunpack.c.l.b16 %v1876
        %v2972 = vunpack.c.h.b16 %v1876
        %v2973 = vunpack.c.l.b16 %v1878
        %v2974 = vunpack.c.h.b16 %v1878
        %v2975 = vunpack.c.l.b16 %v1880
        %v2976 = vunpack.c.h.b16 %v1880
        %v2977 = vunpack.c.l.b16 %v1882
        %v2978 = vunpack.c.h.b16 %v1882
        %v2979 = vunpack.c.l.b16 %v1884
        %v2980 = vunpack.c.h.b16 %v1884
        %v2981 = vunpack.c.l.b16 %v1886
        %v2982 = vunpack.c.h.b16 %v1886
        %v2983 = vunpack.c.l.b16 %v1888
        %v2984 = vunpack.c.h.b16 %v1888
        %v2985 = vunpack.c.l.b16 %v1890
        %v2986 = vunpack.c.h.b16 %v1890
        %v2987 = vunpack.c.l.b16 %v1892
        %v2988 = vunpack.c.h.b16 %v1892
        %v2989 = vunpack.c.l.b16 %v1894
        %v2990 = vunpack.c.h.b16 %v1894
        %v2991 = vunpack.c.l.b16 %v1896
        %v2992 = vunpack.c.h.b16 %v1896
        %v2993 = vpack.c.b16 %v2963, %v2961
        %v2994 = vpack.c.b16 %v2964, %v2962
        %v2995 = vpack.c.b16 %v2967, %v2965
        %v2996 = vpack.c.b16 %v2968, %v2966
        %v2997 = vpack.c.b16 %v2971, %v2969
        %v2998 = vpack.c.b16 %v2972, %v2970
        %v2999 = vpack.c.b16 %v2975, %v2973
        %v3000 = vpack.c.b16 %v2976, %v2974
        %v3001 = vpack.c.b16 %v2979, %v2977
        %v3002 = vpack.c.b16 %v2980, %v2978
        %v3003 = vpack.c.b16 %v2983, %v2981
        %v3004 = vpack.c.b16 %v2984, %v2982
        %v3005 = vpack.c.b16 %v2987, %v2985
        %v3006 = vpack.c.b16 %v2988, %v2986
        %v3007 = vpack.c.b16 %v2991, %v2989
        %v3008 = vpack.c.b16 %v2992, %v2990
        %3025 = vmatpush.bf16.msra.mxu0 %v3007
        %3026 = vmatpush.bf16.msra.mxu0 %v3005
        %3027 = vmatpush.bf16.msra.mxu0 %v3003
        %3028 = vmatpush.bf16.msra.mxu0 %v3001
        %3029 = vmatpush.bf16.msra.mxu0 %v2999
        %3030 = vmatpush.bf16.msra.mxu0 %v2997
        %3031 = vmatpush.bf16.msra.mxu0 %v2995
        %3032 = vmatpush.bf16.msra.mxu0 %v2993
        %3033 = vmatmul.bf16.gmra.mxu0 %v2943
        %v3034 = vpop.f32.mrf.mxu0
        %v3035 = vadd.f32 %v1905, %v3034
        %v3036 = vpop.f32.mrf.mxu0
        %v3037 = vadd.f32 %v1910, %v3036
        %3038 = vmatmul.bf16.gmra.mxu0 %v2944
        %v3039 = vpop.f32.mrf.mxu0
        %v3040 = vadd.f32 %v1915, %v3039
        %v3041 = vpop.f32.mrf.mxu0
        %v3042 = vadd.f32 %v1920, %v3041
        %3043 = vdwg.mxu0
        %3044 = vmatpush.bf16.msra.mxu0 %v3008
        %3045 = vmatpush.bf16.msra.mxu0 %v3006
        %3046 = vmatpush.bf16.msra.mxu0 %v3004
        %3047 = vmatpush.bf16.msra.mxu0 %v3002
        %3048 = vmatpush.bf16.msra.mxu0 %v3000
        %3049 = vmatpush.bf16.msra.mxu0 %v2998
        %3050 = vmatpush.bf16.msra.mxu0 %v2996
        %3051 = vmatpush.bf16.msra.mxu0 %v2994
        %3052 = vmatmul.bf16.gmra.mxu0 %v2943
        %v3053 = vpop.f32.mrf.mxu0
        %v3054 = vadd.f32 %v1905, %v3053
        %v3055 = vpop.f32.mrf.mxu0
        %v3056 = vadd.f32 %v1910, %v3055
        %3057 = vmatmul.bf16.gmra.mxu0 %v2944
        %v3058 = vpop.f32.mrf.mxu0
        %v3059 = vadd.f32 %v1915, %v3058
        %v3060 = vpop.f32.mrf.mxu0
        %v3061 = vadd.f32 %v1920, %v3060
        %3062 = vdwg.mxu0
        %3063 = vst [vmem:[%s225] sm:$0xff] %v3035
        %3064 = vst [vmem:[%s225 + $0x8] sm:$0xff] %v3054
        %3065 = vst [vmem:[%s225 + $0x20] sm:$0xff] %v3037
        %3066 = vst [vmem:[%s225 + $0x28] sm:$0xff] %v3056
        %3067 = vst [vmem:[%s225 + $0x40] sm:$0xff] %v3040
        %3068 = vst [vmem:[%s225 + $0x48] sm:$0xff] %v3059
        %3069 = vst [vmem:[%s225 + $0x60] sm:$0xff] %v3042
        %3070 = vst [vmem:[%s225 + $0x68] sm:$0xff] %v3061
        %v3071 = vmax.f32 %v826, %v955
        %3072 = vmax.xlane.f32.xlu0 %v3071
        %v3073 = vpop.xlane.xlu0 %3072
        %v3074 = vmax.f32 %v828, %v957
        %3075 = vmax.xlane.f32.xlu0 %v3074
        %v3076 = vpop.xlane.xlu0 %3075
        %v3077 = vmax.f32 %v831, %v960
        %3078 = vmax.xlane.f32.xlu0 %v3077
        %v3079 = vpop.xlane.xlu0 %3078
        %v3080 = vmax.f32 %v833, %v962
        %3081 = vmax.xlane.f32.xlu0 %v3080
        %v3082 = vpop.xlane.xlu0 %3081
        %v3083 = vmax.f32 %v836, %v965
        %3084 = vmax.xlane.f32.xlu0 %v3083
        %v3085 = vpop.xlane.xlu0 %3084
        %v3086 = vmax.f32 %v838, %v967
        %3087 = vmax.xlane.f32.xlu0 %v3086
        %v3088 = vpop.xlane.xlu0 %3087
        %v3089 = vmax.f32 %v841, %v970
        %3090 = vmax.xlane.f32.xlu0 %v3089
        %v3091 = vpop.xlane.xlu0 %3090
        %v3092 = vmax.f32 %v843, %v972
        %3093 = vmax.xlane.f32.xlu0 %v3092
        %v3094 = vpop.xlane.xlu0 %3093
        %v3095 = vmax.f32 %v846, %v975
        %3096 = vmax.xlane.f32.xlu0 %v3095
        %v3097 = vpop.xlane.xlu0 %3096
        %v3098 = vmax.f32 %v848, %v977
        %3099 = vmax.xlane.f32.xlu0 %v3098
        %v3100 = vpop.xlane.xlu0 %3099
        %v3101 = vmax.f32 %v851, %v980
        %3102 = vmax.xlane.f32.xlu0 %v3101
        %v3103 = vpop.xlane.xlu0 %3102
        %v3104 = vmax.f32 %v853, %v982
        %3105 = vmax.xlane.f32.xlu0 %v3104
        %v3106 = vpop.xlane.xlu0 %3105
        %v3107 = vmax.f32 %v856, %v985
        %3108 = vmax.xlane.f32.xlu0 %v3107
        %v3109 = vpop.xlane.xlu0 %3108
        %v3110 = vmax.f32 %v858, %v987
        %3111 = vmax.xlane.f32.xlu0 %v3110
        %v3112 = vpop.xlane.xlu0 %3111
        %v3113 = vmax.f32 %v861, %v990
        %3114 = vmax.xlane.f32.xlu0 %v3113
        %v3115 = vpop.xlane.xlu0 %3114
        %v3116 = vmax.f32 %v863, %v992
        %3117 = vmax.xlane.f32.xlu0 %v3116
        %v3118 = vpop.xlane.xlu0 %3117
        %v3119 = vsub.f32 %v826, %v3073
        %v3120 = vsub.f32 %v955, %v3073
        %v3121 = vsub.f32 %v828, %v3076
        %v3122 = vsub.f32 %v957, %v3076
        %v3123 = vsub.f32 %v831, %v3079
        %v3124 = vsub.f32 %v960, %v3079
        %v3125 = vsub.f32 %v833, %v3082
        %v3126 = vsub.f32 %v962, %v3082
        %v3127 = vsub.f32 %v836, %v3085
        %v3128 = vsub.f32 %v965, %v3085
        %v3129 = vsub.f32 %v838, %v3088
        %v3130 = vsub.f32 %v967, %v3088
        %v3131 = vsub.f32 %v841, %v3091
        %v3132 = vsub.f32 %v970, %v3091
        %v3133 = vsub.f32 %v843, %v3094
        %v3134 = vsub.f32 %v972, %v3094
        %v3135 = vsub.f32 %v846, %v3097
        %v3136 = vsub.f32 %v975, %v3097
        %v3137 = vsub.f32 %v848, %v3100
        %v3138 = vsub.f32 %v977, %v3100
        %v3139 = vsub.f32 %v851, %v3103
        %v3140 = vsub.f32 %v980, %v3103
        %v3141 = vsub.f32 %v853, %v3106
        %v3142 = vsub.f32 %v982, %v3106
        %v3143 = vsub.f32 %v856, %v3109
        %v3144 = vsub.f32 %v985, %v3109
        %v3145 = vsub.f32 %v858, %v3112
        %v3146 = vsub.f32 %v987, %v3112
        %v3147 = vsub.f32 %v861, %v3115
        %v3148 = vsub.f32 %v990, %v3115
        %v3149 = vsub.f32 %v863, %v3118
        %v3150 = vsub.f32 %v992, %v3118
        %v3151 = vmul.f32 %v3119, 1.442695
        %v3152 = vpow.pop %v3151
        %v3153 = vmul.f32 %v3120, 1.442695
        %v3154 = vpow.pop %v3153
        %v3155 = vmul.f32 %v3121, 1.442695
        %v3156 = vpow.pop %v3155
        %v3157 = vmul.f32 %v3122, 1.442695
        %v3158 = vpow.pop %v3157
        %v3159 = vmul.f32 %v3123, 1.442695
        %v3160 = vpow.pop %v3159
        %v3161 = vmul.f32 %v3124, 1.442695
        %v3162 = vpow.pop %v3161
        %v3163 = vmul.f32 %v3125, 1.442695
        %v3164 = vpow.pop %v3163
        %v3165 = vmul.f32 %v3126, 1.442695
        %v3166 = vpow.pop %v3165
        %v3167 = vmul.f32 %v3127, 1.442695
        %v3168 = vpow.pop %v3167
        %v3169 = vmul.f32 %v3128, 1.442695
        %v3170 = vpow.pop %v3169
        %v3171 = vmul.f32 %v3129, 1.442695
        %v3172 = vpow.pop %v3171
        %v3173 = vmul.f32 %v3130, 1.442695
        %v3174 = vpow.pop %v3173
        %v3175 = vmul.f32 %v3131, 1.442695
        %v3176 = vpow.pop %v3175
        %v3177 = vmul.f32 %v3132, 1.442695
        %v3178 = vpow.pop %v3177
        %v3179 = vmul.f32 %v3133, 1.442695
        %v3180 = vpow.pop %v3179
        %v3181 = vmul.f32 %v3134, 1.442695
        %v3182 = vpow.pop %v3181
        %v3183 = vmul.f32 %v3135, 1.442695
        %v3184 = vpow.pop %v3183
        %v3185 = vmul.f32 %v3136, 1.442695
        %v3186 = vpow.pop %v3185
        %v3187 = vmul.f32 %v3137, 1.442695
        %v3188 = vpow.pop %v3187
        %v3189 = vmul.f32 %v3138, 1.442695
        %v3190 = vpow.pop %v3189
        %v3191 = vmul.f32 %v3139, 1.442695
        %v3192 = vpow.pop %v3191
        %v3193 = vmul.f32 %v3140, 1.442695
        %v3194 = vpow.pop %v3193
        %v3195 = vmul.f32 %v3141, 1.442695
        %v3196 = vpow.pop %v3195
        %v3197 = vmul.f32 %v3142, 1.442695
        %v3198 = vpow.pop %v3197
        %v3199 = vmul.f32 %v3143, 1.442695
        %v3200 = vpow.pop %v3199
        %v3201 = vmul.f32 %v3144, 1.442695
        %v3202 = vpow.pop %v3201
        %v3203 = vmul.f32 %v3145, 1.442695
        %v3204 = vpow.pop %v3203
        %v3205 = vmul.f32 %v3146, 1.442695
        %v3206 = vpow.pop %v3205
        %v3207 = vmul.f32 %v3147, 1.442695
        %v3208 = vpow.pop %v3207
        %v3209 = vmul.f32 %v3148, 1.442695
        %v3210 = vpow.pop %v3209
        %v3211 = vmul.f32 %v3149, 1.442695
        %v3212 = vpow.pop %v3211
        %v3213 = vmul.f32 %v3150, 1.442695
        %v3214 = vpow.pop %v3213
        %v3215 = vadd.f32 %v3152, %v3154
        %3216 = vadd.xlane.f32.xlu0 %v3215
        %v3217 = vpop.xlane.xlu0 %3216
        %v3218 = vadd.f32 %v3156, %v3158
        %3219 = vadd.xlane.f32.xlu0 %v3218
        %v3220 = vpop.xlane.xlu0 %3219
        %v3221 = vadd.f32 %v3160, %v3162
        %3222 = vadd.xlane.f32.xlu0 %v3221
        %v3223 = vpop.xlane.xlu0 %3222
        %v3224 = vadd.f32 %v3164, %v3166
        %3225 = vadd.xlane.f32.xlu0 %v3224
        %v3226 = vpop.xlane.xlu0 %3225
        %v3227 = vadd.f32 %v3168, %v3170
        %3228 = vadd.xlane.f32.xlu0 %v3227
        %v3229 = vpop.xlane.xlu0 %3228
        %v3230 = vadd.f32 %v3172, %v3174
        %3231 = vadd.xlane.f32.xlu0 %v3230
        %v3232 = vpop.xlane.xlu0 %3231
        %v3233 = vadd.f32 %v3176, %v3178
        %3234 = vadd.xlane.f32.xlu0 %v3233
        %v3235 = vpop.xlane.xlu0 %3234
        %v3236 = vadd.f32 %v3180, %v3182
        %3237 = vadd.xlane.f32.xlu0 %v3236
        %v3238 = vpop.xlane.xlu0 %3237
        %v3239 = vadd.f32 %v3184, %v3186
        %3240 = vadd.xlane.f32.xlu0 %v3239
        %v3241 = vpop.xlane.xlu0 %3240
        %v3242 = vadd.f32 %v3188, %v3190
        %3243 = vadd.xlane.f32.xlu0 %v3242
        %v3244 = vpop.xlane.xlu0 %3243
        %v3245 = vadd.f32 %v3192, %v3194
        %3246 = vadd.xlane.f32.xlu0 %v3245
        %v3247 = vpop.xlane.xlu0 %3246
        %v3248 = vadd.f32 %v3196, %v3198
        %3249 = vadd.xlane.f32.xlu0 %v3248
        %v3250 = vpop.xlane.xlu0 %3249
        %v3251 = vadd.f32 %v3200, %v3202
        %3252 = vadd.xlane.f32.xlu0 %v3251
        %v3253 = vpop.xlane.xlu0 %3252
        %v3254 = vadd.f32 %v3204, %v3206
        %3255 = vadd.xlane.f32.xlu0 %v3254
        %v3256 = vpop.xlane.xlu0 %3255
        %v3257 = vadd.f32 %v3208, %v3210
        %3258 = vadd.xlane.f32.xlu0 %v3257
        %v3259 = vpop.xlane.xlu0 %3258
        %v3260 = vadd.f32 %v3212, %v3214
        %3261 = vadd.xlane.f32.xlu0 %v3260
        %v3262 = vpop.xlane.xlu0 %3261
        %v3263 = vrcp.pop %v3217
        %v3264 = vmul.f32 %v3217, %v3263
        %v3265 = vsub.f32 1.0, %v3264
        %v3266 = vmul.f32 %v3263, %v3265
        %v3267 = vadd.f32 %v3263, %v3266
        %vm3268 = vweird.f32 %v3217
        %vm3269 = vweird.f32 %v3263
        %vm3270 = vmor %vm3268, %vm3269
        %v3271 = vsel %vm3270, %v3263, %v3267
        %v3272 = vand.u32 2147483647, %v3217
        %vm3273 = vcmp.eq.f32.partialorder %v3272, 8.507059e+37
        %v3274 = vand.u32 %v3217, 2147483648
        %v3275 = vor.u32 1.1754944e-38, %v3274
        %v3276 = vsel %vm3273, %v3275, %v3271
        %v3277 = vmul.f32 %v3152, %v3276
        %v3278 = vmul.f32 %v3154, %v3276
        %v3279 = vrcp.pop %v3220
        %v3280 = vmul.f32 %v3220, %v3279
        %v3281 = vsub.f32 1.0, %v3280
        %v3282 = vmul.f32 %v3279, %v3281
        %v3283 = vadd.f32 %v3279, %v3282
        %vm3284 = vweird.f32 %v3220
        %vm3285 = vweird.f32 %v3279
        %vm3286 = vmor %vm3284, %vm3285
        %v3287 = vsel %vm3286, %v3279, %v3283
        %v3288 = vand.u32 2147483647, %v3220
        %vm3289 = vcmp.eq.f32.partialorder %v3288, 8.507059e+37
        %v3290 = vand.u32 %v3220, 2147483648
        %v3291 = vor.u32 1.1754944e-38, %v3290
        %v3292 = vsel %vm3289, %v3291, %v3287
        %v3293 = vmul.f32 %v3156, %v3292
        %v3294 = vmul.f32 %v3158, %v3292
        %v3295 = vrcp.pop %v3223
        %v3296 = vmul.f32 %v3223, %v3295
        %v3297 = vsub.f32 1.0, %v3296
        %v3298 = vmul.f32 %v3295, %v3297
        %v3299 = vadd.f32 %v3295, %v3298
        %vm3300 = vweird.f32 %v3223
        %vm3301 = vweird.f32 %v3295
        %vm3302 = vmor %vm3300, %vm3301
        %v3303 = vsel %vm3302, %v3295, %v3299
        %v3304 = vand.u32 2147483647, %v3223
        %vm3305 = vcmp.eq.f32.partialorder %v3304, 8.507059e+37
        %v3306 = vand.u32 %v3223, 2147483648
        %v3307 = vor.u32 1.1754944e-38, %v3306
        %v3308 = vsel %vm3305, %v3307, %v3303
        %v3309 = vmul.f32 %v3160, %v3308
        %v3310 = vmul.f32 %v3162, %v3308
        %v3311 = vrcp.pop %v3226
        %v3312 = vmul.f32 %v3226, %v3311
        %v3313 = vsub.f32 1.0, %v3312
        %v3314 = vmul.f32 %v3311, %v3313
        %v3315 = vadd.f32 %v3311, %v3314
        %vm3316 = vweird.f32 %v3226
        %vm3317 = vweird.f32 %v3311
        %vm3318 = vmor %vm3316, %vm3317
        %v3319 = vsel %vm3318, %v3311, %v3315
        %v3320 = vand.u32 2147483647, %v3226
        %vm3321 = vcmp.eq.f32.partialorder %v3320, 8.507059e+37
        %v3322 = vand.u32 %v3226, 2147483648
        %v3323 = vor.u32 1.1754944e-38, %v3322
        %v3324 = vsel %vm3321, %v3323, %v3319
        %v3325 = vmul.f32 %v3164, %v3324
        %v3326 = vmul.f32 %v3166, %v3324
        %v3327 = vrcp.pop %v3229
        %v3328 = vmul.f32 %v3229, %v3327
        %v3329 = vsub.f32 1.0, %v3328
        %v3330 = vmul.f32 %v3327, %v3329
        %v3331 = vadd.f32 %v3327, %v3330
        %vm3332 = vweird.f32 %v3229
        %vm3333 = vweird.f32 %v3327
        %vm3334 = vmor %vm3332, %vm3333
        %v3335 = vsel %vm3334, %v3327, %v3331
        %v3336 = vand.u32 2147483647, %v3229
        %vm3337 = vcmp.eq.f32.partialorder %v3336, 8.507059e+37
        %v3338 = vand.u32 %v3229, 2147483648
        %v3339 = vor.u32 1.1754944e-38, %v3338
        %v3340 = vsel %vm3337, %v3339, %v3335
        %v3341 = vmul.f32 %v3168, %v3340
        %v3342 = vmul.f32 %v3170, %v3340
        %v3343 = vrcp.pop %v3232
        %v3344 = vmul.f32 %v3232, %v3343
        %v3345 = vsub.f32 1.0, %v3344
        %v3346 = vmul.f32 %v3343, %v3345
        %v3347 = vadd.f32 %v3343, %v3346
        %vm3348 = vweird.f32 %v3232
        %vm3349 = vweird.f32 %v3343
        %vm3350 = vmor %vm3348, %vm3349
        %v3351 = vsel %vm3350, %v3343, %v3347
        %v3352 = vand.u32 2147483647, %v3232
        %vm3353 = vcmp.eq.f32.partialorder %v3352, 8.507059e+37
        %v3354 = vand.u32 %v3232, 2147483648
        %v3355 = vor.u32 1.1754944e-38, %v3354
        %v3356 = vsel %vm3353, %v3355, %v3351
        %v3357 = vmul.f32 %v3172, %v3356
        %v3358 = vmul.f32 %v3174, %v3356
        %v3359 = vrcp.pop %v3235
        %v3360 = vmul.f32 %v3235, %v3359
        %v3361 = vsub.f32 1.0, %v3360
        %v3362 = vmul.f32 %v3359, %v3361
        %v3363 = vadd.f32 %v3359, %v3362
        %vm3364 = vweird.f32 %v3235
        %vm3365 = vweird.f32 %v3359
        %vm3366 = vmor %vm3364, %vm3365
        %v3367 = vsel %vm3366, %v3359, %v3363
        %v3368 = vand.u32 2147483647, %v3235
        %vm3369 = vcmp.eq.f32.partialorder %v3368, 8.507059e+37
        %v3370 = vand.u32 %v3235, 2147483648
        %v3371 = vor.u32 1.1754944e-38, %v3370
        %v3372 = vsel %vm3369, %v3371, %v3367
        %v3373 = vmul.f32 %v3176, %v3372
        %v3374 = vmul.f32 %v3178, %v3372
        %v3375 = vrcp.pop %v3238
        %v3376 = vmul.f32 %v3238, %v3375
        %v3377 = vsub.f32 1.0, %v3376
        %v3378 = vmul.f32 %v3375, %v3377
        %v3379 = vadd.f32 %v3375, %v3378
        %vm3380 = vweird.f32 %v3238
        %vm3381 = vweird.f32 %v3375
        %vm3382 = vmor %vm3380, %vm3381
        %v3383 = vsel %vm3382, %v3375, %v3379
        %v3384 = vand.u32 2147483647, %v3238
        %vm3385 = vcmp.eq.f32.partialorder %v3384, 8.507059e+37
        %v3386 = vand.u32 %v3238, 2147483648
        %v3387 = vor.u32 1.1754944e-38, %v3386
        %v3388 = vsel %vm3385, %v3387, %v3383
        %v3389 = vmul.f32 %v3180, %v3388
        %v3390 = vmul.f32 %v3182, %v3388
        %v3391 = vrcp.pop %v3241
        %v3392 = vmul.f32 %v3241, %v3391
        %v3393 = vsub.f32 1.0, %v3392
        %v3394 = vmul.f32 %v3391, %v3393
        %v3395 = vadd.f32 %v3391, %v3394
        %vm3396 = vweird.f32 %v3241
        %vm3397 = vweird.f32 %v3391
        %vm3398 = vmor %vm3396, %vm3397
        %v3399 = vsel %vm3398, %v3391, %v3395
        %v3400 = vand.u32 2147483647, %v3241
        %vm3401 = vcmp.eq.f32.partialorder %v3400, 8.507059e+37
        %v3402 = vand.u32 %v3241, 2147483648
        %v3403 = vor.u32 1.1754944e-38, %v3402
        %v3404 = vsel %vm3401, %v3403, %v3399
        %v3405 = vmul.f32 %v3184, %v3404
        %v3406 = vmul.f32 %v3186, %v3404
        %v3407 = vrcp.pop %v3244
        %v3408 = vmul.f32 %v3244, %v3407
        %v3409 = vsub.f32 1.0, %v3408
        %v3410 = vmul.f32 %v3407, %v3409
        %v3411 = vadd.f32 %v3407, %v3410
        %vm3412 = vweird.f32 %v3244
        %vm3413 = vweird.f32 %v3407
        %vm3414 = vmor %vm3412, %vm3413
        %v3415 = vsel %vm3414, %v3407, %v3411
        %v3416 = vand.u32 2147483647, %v3244
        %vm3417 = vcmp.eq.f32.partialorder %v3416, 8.507059e+37
        %v3418 = vand.u32 %v3244, 2147483648
        %v3419 = vor.u32 1.1754944e-38, %v3418
        %v3420 = vsel %vm3417, %v3419, %v3415
        %v3421 = vmul.f32 %v3188, %v3420
        %v3422 = vmul.f32 %v3190, %v3420
        %v3423 = vrcp.pop %v3247
        %v3424 = vmul.f32 %v3247, %v3423
        %v3425 = vsub.f32 1.0, %v3424
        %v3426 = vmul.f32 %v3423, %v3425
        %v3427 = vadd.f32 %v3423, %v3426
        %vm3428 = vweird.f32 %v3247
        %vm3429 = vweird.f32 %v3423
        %vm3430 = vmor %vm3428, %vm3429
        %v3431 = vsel %vm3430, %v3423, %v3427
        %v3432 = vand.u32 2147483647, %v3247
        %vm3433 = vcmp.eq.f32.partialorder %v3432, 8.507059e+37
        %v3434 = vand.u32 %v3247, 2147483648
        %v3435 = vor.u32 1.1754944e-38, %v3434
        %v3436 = vsel %vm3433, %v3435, %v3431
        %v3437 = vmul.f32 %v3192, %v3436
        %v3438 = vmul.f32 %v3194, %v3436
        %v3439 = vrcp.pop %v3250
        %v3440 = vmul.f32 %v3250, %v3439
        %v3441 = vsub.f32 1.0, %v3440
        %v3442 = vmul.f32 %v3439, %v3441
        %v3443 = vadd.f32 %v3439, %v3442
        %vm3444 = vweird.f32 %v3250
        %vm3445 = vweird.f32 %v3439
        %vm3446 = vmor %vm3444, %vm3445
        %v3447 = vsel %vm3446, %v3439, %v3443
        %v3448 = vand.u32 2147483647, %v3250
        %vm3449 = vcmp.eq.f32.partialorder %v3448, 8.507059e+37
        %v3450 = vand.u32 %v3250, 2147483648
        %v3451 = vor.u32 1.1754944e-38, %v3450
        %v3452 = vsel %vm3449, %v3451, %v3447
        %v3453 = vmul.f32 %v3196, %v3452
        %v3454 = vmul.f32 %v3198, %v3452
        %v3455 = vrcp.pop %v3253
        %v3456 = vmul.f32 %v3253, %v3455
        %v3457 = vsub.f32 1.0, %v3456
        %v3458 = vmul.f32 %v3455, %v3457
        %v3459 = vadd.f32 %v3455, %v3458
        %vm3460 = vweird.f32 %v3253
        %vm3461 = vweird.f32 %v3455
        %vm3462 = vmor %vm3460, %vm3461
        %v3463 = vsel %vm3462, %v3455, %v3459
        %v3464 = vand.u32 2147483647, %v3253
        %vm3465 = vcmp.eq.f32.partialorder %v3464, 8.507059e+37
        %v3466 = vand.u32 %v3253, 2147483648
        %v3467 = vor.u32 1.1754944e-38, %v3466
        %v3468 = vsel %vm3465, %v3467, %v3463
        %v3469 = vmul.f32 %v3200, %v3468
        %v3470 = vmul.f32 %v3202, %v3468
        %v3471 = vrcp.pop %v3256
        %v3472 = vmul.f32 %v3256, %v3471
        %v3473 = vsub.f32 1.0, %v3472
        %v3474 = vmul.f32 %v3471, %v3473
        %v3475 = vadd.f32 %v3471, %v3474
        %vm3476 = vweird.f32 %v3256
        %vm3477 = vweird.f32 %v3471
        %vm3478 = vmor %vm3476, %vm3477
        %v3479 = vsel %vm3478, %v3471, %v3475
        %v3480 = vand.u32 2147483647, %v3256
        %vm3481 = vcmp.eq.f32.partialorder %v3480, 8.507059e+37
        %v3482 = vand.u32 %v3256, 2147483648
        %v3483 = vor.u32 1.1754944e-38, %v3482
        %v3484 = vsel %vm3481, %v3483, %v3479
        %v3485 = vmul.f32 %v3204, %v3484
        %v3486 = vmul.f32 %v3206, %v3484
        %v3487 = vrcp.pop %v3259
        %v3488 = vmul.f32 %v3259, %v3487
        %v3489 = vsub.f32 1.0, %v3488
        %v3490 = vmul.f32 %v3487, %v3489
        %v3491 = vadd.f32 %v3487, %v3490
        %vm3492 = vweird.f32 %v3259
        %vm3493 = vweird.f32 %v3487
        %vm3494 = vmor %vm3492, %vm3493
        %v3495 = vsel %vm3494, %v3487, %v3491
        %v3496 = vand.u32 2147483647, %v3259
        %vm3497 = vcmp.eq.f32.partialorder %v3496, 8.507059e+37
        %v3498 = vand.u32 %v3259, 2147483648
        %v3499 = vor.u32 1.1754944e-38, %v3498
        %v3500 = vsel %vm3497, %v3499, %v3495
        %v3501 = vmul.f32 %v3208, %v3500
        %v3502 = vmul.f32 %v3210, %v3500
        %v3503 = vrcp.pop %v3262
        %v3504 = vmul.f32 %v3262, %v3503
        %v3505 = vsub.f32 1.0, %v3504
        %v3506 = vmul.f32 %v3503, %v3505
        %v3507 = vadd.f32 %v3503, %v3506
        %vm3508 = vweird.f32 %v3262
        %vm3509 = vweird.f32 %v3503
        %vm3510 = vmor %vm3508, %vm3509
        %v3511 = vsel %vm3510, %v3503, %v3507
        %v3512 = vand.u32 2147483647, %v3262
        %vm3513 = vcmp.eq.f32.partialorder %v3512, 8.507059e+37
        %v3514 = vand.u32 %v3262, 2147483648
        %v3515 = vor.u32 1.1754944e-38, %v3514
        %v3516 = vsel %vm3513, %v3515, %v3511
        %v3517 = vmul.f32 %v3212, %v3516
        %v3518 = vmul.f32 %v3214, %v3516
        %v3519 = vpack.c.bf16 %v3278, %v3277
        %v3520 = vpack.c.bf16 %v3294, %v3293
        %v3521 = vpack.c.bf16 %v3310, %v3309
        %v3522 = vpack.c.bf16 %v3326, %v3325
        %v3523 = vpack.c.bf16 %v3342, %v3341
        %v3524 = vpack.c.bf16 %v3358, %v3357
        %v3525 = vpack.c.bf16 %v3374, %v3373
        %v3526 = vpack.c.bf16 %v3390, %v3389
        %v3527 = vpack.c.bf16 %v3406, %v3405
        %v3528 = vpack.c.bf16 %v3422, %v3421
        %v3529 = vpack.c.bf16 %v3438, %v3437
        %v3530 = vpack.c.bf16 %v3454, %v3453
        %v3531 = vpack.c.bf16 %v3470, %v3469
        %v3532 = vpack.c.bf16 %v3486, %v3485
        %v3533 = vpack.c.bf16 %v3502, %v3501
        %v3534 = vpack.c.bf16 %v3518, %v3517
        %v3535 = vpack.c.bf16 %v995, %v866
        %v3536 = vpack.c.bf16 %v997, %v868
        %v3537 = vpack.c.bf16 %v1000, %v871
        %v3538 = vpack.c.bf16 %v1002, %v873
        %v3539 = vpack.c.bf16 %v1005, %v876
        %v3540 = vpack.c.bf16 %v1007, %v878
        %v3541 = vpack.c.bf16 %v1010, %v881
        %v3542 = vpack.c.bf16 %v1012, %v883
        %v3543 = vpack.c.bf16 %v1015, %v886
        %v3544 = vpack.c.bf16 %v1017, %v888
        %v3545 = vpack.c.bf16 %v1020, %v891
        %v3546 = vpack.c.bf16 %v1022, %v893
        %v3547 = vpack.c.bf16 %v1025, %v896
        %v3548 = vpack.c.bf16 %v1027, %v898
        %v3549 = vpack.c.bf16 %v1030, %v901
        %v3550 = vpack.c.bf16 %v1032, %v903
        %v3555 = vunpack.c.l.b16 %v3535
        %v3556 = vunpack.c.h.b16 %v3535
        %v3557 = vunpack.c.l.b16 %v3536
        %v3558 = vunpack.c.h.b16 %v3536
        %v3559 = vunpack.c.l.b16 %v3537
        %v3560 = vunpack.c.h.b16 %v3537
        %v3561 = vunpack.c.l.b16 %v3538
        %v3562 = vunpack.c.h.b16 %v3538
        %v3563 = vpack.c.b16 %v3557, %v3555
        %v3564 = vpack.c.b16 %v3558, %v3556
        %v3565 = vpack.c.b16 %v3561, %v3559
        %v3566 = vpack.c.b16 %v3562, %v3560
        %v3575 = vunpack.c.l.b16 %v3519
        %v3576 = vunpack.c.h.b16 %v3519
        %v3577 = vunpack.c.l.b16 %v3520
        %v3578 = vunpack.c.h.b16 %v3520
        %v3579 = vunpack.c.l.b16 %v3521
        %v3580 = vunpack.c.h.b16 %v3521
        %v3581 = vunpack.c.l.b16 %v3522
        %v3582 = vunpack.c.h.b16 %v3522
        %v3583 = vpack.c.b16 %v3577, %v3575
        %v3584 = vpack.c.b16 %v3578, %v3576
        %v3585 = vpack.c.b16 %v3581, %v3579
        %v3586 = vpack.c.b16 %v3582, %v3580
        %3591 = vmatpush.bf16.xpose.msra.mxu0 0
        %3592 = vmatpush.bf16.xpose.msra.mxu0 0
        %3593 = vmatpush.bf16.xpose.msra.mxu0 0
        %3594 = vmatpush.bf16.xpose.msra.mxu0 0
        %3595 = vmatpush.bf16.xpose.msra.mxu0 0
        %3596 = vmatpush.bf16.xpose.msra.mxu0 0
        %3597 = vmatpush.bf16.xpose.msra.mxu0 %v3585
        %3598 = vmatpush.bf16.xpose.msra.mxu0 %v3583
        %3599 = vmatmul.bf16.gmra.mxu0 %v3563
        %v3600 = vpop.f32.mrf.mxu0
        %v3601 = vadd.f32 0.0, %v3600
        %v3602 = vpop.f32.mrf.mxu0
        %v3603 = vadd.f32 0.0, %v3602
        %3604 = vmatmul.bf16.gmra.mxu0 %v3565
        %v3605 = vpop.f32.mrf.mxu0
        %v3606 = vadd.f32 0.0, %v3605
        %v3607 = vpop.f32.mrf.mxu0
        %v3608 = vadd.f32 0.0, %v3607
        %3609 = vdwg.mxu0
        %3610 = vmatpush.bf16.xpose.msra.mxu0 0
        %3611 = vmatpush.bf16.xpose.msra.mxu0 0
        %3612 = vmatpush.bf16.xpose.msra.mxu0 0
        %3613 = vmatpush.bf16.xpose.msra.mxu0 0
        %3614 = vmatpush.bf16.xpose.msra.mxu0 0
        %3615 = vmatpush.bf16.xpose.msra.mxu0 0
        %3616 = vmatpush.bf16.xpose.msra.mxu0 %v3586
        %3617 = vmatpush.bf16.xpose.msra.mxu0 %v3584
        %3618 = vmatmul.bf16.gmra.mxu0 %v3564
        %v3619 = vpop.f32.mrf.mxu0
        %v3620 = vadd.f32 %v3601, %v3619
        %v3621 = vpop.f32.mrf.mxu0
        %v3622 = vadd.f32 %v3603, %v3621
        %3623 = vmatmul.bf16.gmra.mxu0 %v3566
        %v3624 = vpop.f32.mrf.mxu0
        %v3625 = vadd.f32 %v3606, %v3624
        %v3626 = vpop.f32.mrf.mxu0
        %v3627 = vadd.f32 %v3608, %v3626
        %3628 = vdwg.mxu0
        %v3629 = vld [vmem:[%s2] sm:$0xf]
        %v3630 = vld [vmem:[%s2 + $0x4] sm:$0xf]
        %v3631 = vld [vmem:[%s2 + $0x8] sm:$0xf]
        %v3632 = vld [vmem:[%s2 + $0xc] sm:$0xf]
        %v3633 = vpack.c.bf16 %v3622, %v3620
        %v3634 = vpack.c.bf16 %v3627, %v3625
        %v3639 = vunpack.c.l.b16 %v3629
        %v3640 = vunpack.c.l.b16 %v3630
        %v3641 = vunpack.c.l.b16 %v3631
        %v3642 = vunpack.c.l.b16 %v3632
        %v3643 = vpack.c.b16 %v3640, %v3639
        %v3644 = vpack.c.b16 %v3642, %v3641
        %v3646 = vsel %vm445, %v3643, 0
        %v3649 = vsel %vm445, %v3644, 0
        %3651 = vmatpush.bf16.msra.mxu0 0
        %3652 = vmatpush.bf16.msra.mxu0 0
        %3653 = vmatpush.bf16.msra.mxu0 0
        %3654 = vmatpush.bf16.msra.mxu0 0
        %3655 = vmatpush.bf16.msra.mxu0 0
        %3656 = vmatpush.bf16.msra.mxu0 0
        %3657 = vmatpush.bf16.msra.mxu0 %v3634
        %3658 = vmatpush.bf16.msra.mxu0 %v3633
        %3659 = vmatmul.bf16.gmra.mxu0 %v3646
        %v3660 = vpop.f32.mrf.mxu0
        %v3661 = vadd.f32 0.0, %v3660
        %v3662 = vpop.f32.mrf.mxu0
        %v3663 = vadd.f32 0.0, %v3662
        %3664 = vmatmul.bf16.gmra.mxu0 %v3649
        %v3665 = vpop.f32.mrf.mxu0
        %v3666 = vadd.f32 0.0, %v3665
        %v3667 = vpop.f32.mrf.mxu0
        %v3668 = vadd.f32 0.0, %v3667
        %3669 = vdwg.mxu0
        %v3674 = vunpack.c.l.b16 %v3539
        %v3675 = vunpack.c.h.b16 %v3539
        %v3676 = vunpack.c.l.b16 %v3540
        %v3677 = vunpack.c.h.b16 %v3540
        %v3678 = vunpack.c.l.b16 %v3541
        %v3679 = vunpack.c.h.b16 %v3541
        %v3680 = vunpack.c.l.b16 %v3542
        %v3681 = vunpack.c.h.b16 %v3542
        %v3682 = vpack.c.b16 %v3676, %v3674
        %v3683 = vpack.c.b16 %v3677, %v3675
        %v3684 = vpack.c.b16 %v3680, %v3678
        %v3685 = vpack.c.b16 %v3681, %v3679
        %v3694 = vunpack.c.l.b16 %v3523
        %v3695 = vunpack.c.h.b16 %v3523
        %v3696 = vunpack.c.l.b16 %v3524
        %v3697 = vunpack.c.h.b16 %v3524
        %v3698 = vunpack.c.l.b16 %v3525
        %v3699 = vunpack.c.h.b16 %v3525
        %v3700 = vunpack.c.l.b16 %v3526
        %v3701 = vunpack.c.h.b16 %v3526
        %v3702 = vpack.c.b16 %v3696, %v3694
        %v3703 = vpack.c.b16 %v3697, %v3695
        %v3704 = vpack.c.b16 %v3700, %v3698
        %v3705 = vpack.c.b16 %v3701, %v3699
        %3710 = vmatpush.bf16.xpose.msra.mxu0 0
        %3711 = vmatpush.bf16.xpose.msra.mxu0 0
        %3712 = vmatpush.bf16.xpose.msra.mxu0 0
        %3713 = vmatpush.bf16.xpose.msra.mxu0 0
        %3714 = vmatpush.bf16.xpose.msra.mxu0 0
        %3715 = vmatpush.bf16.xpose.msra.mxu0 0
        %3716 = vmatpush.bf16.xpose.msra.mxu0 %v3704
        %3717 = vmatpush.bf16.xpose.msra.mxu0 %v3702
        %3718 = vmatmul.bf16.gmra.mxu0 %v3682
        %v3719 = vpop.f32.mrf.mxu0
        %v3720 = vadd.f32 0.0, %v3719
        %v3721 = vpop.f32.mrf.mxu0
        %v3722 = vadd.f32 0.0, %v3721
        %3723 = vmatmul.bf16.gmra.mxu0 %v3684
        %v3724 = vpop.f32.mrf.mxu0
        %v3725 = vadd.f32 0.0, %v3724
        %v3726 = vpop.f32.mrf.mxu0
        %v3727 = vadd.f32 0.0, %v3726
        %3728 = vdwg.mxu0
        %3729 = vmatpush.bf16.xpose.msra.mxu0 0
        %3730 = vmatpush.bf16.xpose.msra.mxu0 0
        %3731 = vmatpush.bf16.xpose.msra.mxu0 0
        %3732 = vmatpush.bf16.xpose.msra.mxu0 0
        %3733 = vmatpush.bf16.xpose.msra.mxu0 0
        %3734 = vmatpush.bf16.xpose.msra.mxu0 0
        %3735 = vmatpush.bf16.xpose.msra.mxu0 %v3705
        %3736 = vmatpush.bf16.xpose.msra.mxu0 %v3703
        %3737 = vmatmul.bf16.gmra.mxu0 %v3683
        %v3738 = vpop.f32.mrf.mxu0
        %v3739 = vadd.f32 %v3720, %v3738
        %v3740 = vpop.f32.mrf.mxu0
        %v3741 = vadd.f32 %v3722, %v3740
        %3742 = vmatmul.bf16.gmra.mxu0 %v3685
        %v3743 = vpop.f32.mrf.mxu0
        %v3744 = vadd.f32 %v3725, %v3743
        %v3745 = vpop.f32.mrf.mxu0
        %v3746 = vadd.f32 %v3727, %v3745
        %3747 = vdwg.mxu0
        %v3748 = vld [vmem:[%s2599] sm:$0xf]
        %v3749 = vld [vmem:[%s2599 + $0x4] sm:$0xf]
        %v3750 = vld [vmem:[%s2599 + $0x8] sm:$0xf]
        %v3751 = vld [vmem:[%s2599 + $0xc] sm:$0xf]
        %v3752 = vpack.c.bf16 %v3741, %v3739
        %v3753 = vpack.c.bf16 %v3746, %v3744
        %v3758 = vunpack.c.l.b16 %v3748
        %v3759 = vunpack.c.l.b16 %v3749
        %v3760 = vunpack.c.l.b16 %v3750
        %v3761 = vunpack.c.l.b16 %v3751
        %v3762 = vpack.c.b16 %v3759, %v3758
        %v3763 = vpack.c.b16 %v3761, %v3760
        %v3765 = vsel %vm445, %v3762, 0
        %v3768 = vsel %vm445, %v3763, 0
        %3770 = vmatpush.bf16.msra.mxu0 0
        %3771 = vmatpush.bf16.msra.mxu0 0
        %3772 = vmatpush.bf16.msra.mxu0 0
        %3773 = vmatpush.bf16.msra.mxu0 0
        %3774 = vmatpush.bf16.msra.mxu0 0
        %3775 = vmatpush.bf16.msra.mxu0 0
        %3776 = vmatpush.bf16.msra.mxu0 %v3753
        %3777 = vmatpush.bf16.msra.mxu0 %v3752
        %3778 = vmatmul.bf16.gmra.mxu0 %v3765
        %v3779 = vpop.f32.mrf.mxu0
        %v3780 = vadd.f32 0.0, %v3779
        %v3781 = vpop.f32.mrf.mxu0
        %v3782 = vadd.f32 0.0, %v3781
        %3783 = vmatmul.bf16.gmra.mxu0 %v3768
        %v3784 = vpop.f32.mrf.mxu0
        %v3785 = vadd.f32 0.0, %v3784
        %v3786 = vpop.f32.mrf.mxu0
        %v3787 = vadd.f32 0.0, %v3786
        %3788 = vdwg.mxu0
        %v3793 = vunpack.c.l.b16 %v3543
        %v3794 = vunpack.c.h.b16 %v3543
        %v3795 = vunpack.c.l.b16 %v3544
        %v3796 = vunpack.c.h.b16 %v3544
        %v3797 = vunpack.c.l.b16 %v3545
        %v3798 = vunpack.c.h.b16 %v3545
        %v3799 = vunpack.c.l.b16 %v3546
        %v3800 = vunpack.c.h.b16 %v3546
        %v3801 = vpack.c.b16 %v3795, %v3793
        %v3802 = vpack.c.b16 %v3796, %v3794
        %v3803 = vpack.c.b16 %v3799, %v3797
        %v3804 = vpack.c.b16 %v3800, %v3798
        %v3813 = vunpack.c.l.b16 %v3527
        %v3814 = vunpack.c.h.b16 %v3527
        %v3815 = vunpack.c.l.b16 %v3528
        %v3816 = vunpack.c.h.b16 %v3528
        %v3817 = vunpack.c.l.b16 %v3529
        %v3818 = vunpack.c.h.b16 %v3529
        %v3819 = vunpack.c.l.b16 %v3530
        %v3820 = vunpack.c.h.b16 %v3530
        %v3821 = vpack.c.b16 %v3815, %v3813
        %v3822 = vpack.c.b16 %v3816, %v3814
        %v3823 = vpack.c.b16 %v3819, %v3817
        %v3824 = vpack.c.b16 %v3820, %v3818
        %3829 = vmatpush.bf16.xpose.msra.mxu0 0
        %3830 = vmatpush.bf16.xpose.msra.mxu0 0
        %3831 = vmatpush.bf16.xpose.msra.mxu0 0
        %3832 = vmatpush.bf16.xpose.msra.mxu0 0
        %3833 = vmatpush.bf16.xpose.msra.mxu0 0
        %3834 = vmatpush.bf16.xpose.msra.mxu0 0
        %3835 = vmatpush.bf16.xpose.msra.mxu0 %v3823
        %3836 = vmatpush.bf16.xpose.msra.mxu0 %v3821
        %3837 = vmatmul.bf16.gmra.mxu0 %v3801
        %v3838 = vpop.f32.mrf.mxu0
        %v3839 = vadd.f32 0.0, %v3838
        %v3840 = vpop.f32.mrf.mxu0
        %v3841 = vadd.f32 0.0, %v3840
        %3842 = vmatmul.bf16.gmra.mxu0 %v3803
        %v3843 = vpop.f32.mrf.mxu0
        %v3844 = vadd.f32 0.0, %v3843
        %v3845 = vpop.f32.mrf.mxu0
        %v3846 = vadd.f32 0.0, %v3845
        %3847 = vdwg.mxu0
        %3848 = vmatpush.bf16.xpose.msra.mxu0 0
        %3849 = vmatpush.bf16.xpose.msra.mxu0 0
        %3850 = vmatpush.bf16.xpose.msra.mxu0 0
        %3851 = vmatpush.bf16.xpose.msra.mxu0 0
        %3852 = vmatpush.bf16.xpose.msra.mxu0 0
        %3853 = vmatpush.bf16.xpose.msra.mxu0 0
        %3854 = vmatpush.bf16.xpose.msra.mxu0 %v3824
        %3855 = vmatpush.bf16.xpose.msra.mxu0 %v3822
        %3856 = vmatmul.bf16.gmra.mxu0 %v3802
        %v3857 = vpop.f32.mrf.mxu0
        %v3858 = vadd.f32 %v3839, %v3857
        %v3859 = vpop.f32.mrf.mxu0
        %v3860 = vadd.f32 %v3841, %v3859
        %3861 = vmatmul.bf16.gmra.mxu0 %v3804
        %v3862 = vpop.f32.mrf.mxu0
        %v3863 = vadd.f32 %v3844, %v3862
        %v3864 = vpop.f32.mrf.mxu0
        %v3865 = vadd.f32 %v3846, %v3864
        %3866 = vdwg.mxu0
        %v3867 = vld [vmem:[%s2719] sm:$0xf]
        %v3868 = vld [vmem:[%s2719 + $0x4] sm:$0xf]
        %v3869 = vld [vmem:[%s2719 + $0x8] sm:$0xf]
        %v3870 = vld [vmem:[%s2719 + $0xc] sm:$0xf]
        %v3871 = vpack.c.bf16 %v3860, %v3858
        %v3872 = vpack.c.bf16 %v3865, %v3863
        %v3877 = vunpack.c.l.b16 %v3867
        %v3878 = vunpack.c.l.b16 %v3868
        %v3879 = vunpack.c.l.b16 %v3869
        %v3880 = vunpack.c.l.b16 %v3870
        %v3881 = vpack.c.b16 %v3878, %v3877
        %v3882 = vpack.c.b16 %v3880, %v3879
        %v3884 = vsel %vm445, %v3881, 0
        %v3887 = vsel %vm445, %v3882, 0
        %3889 = vmatpush.bf16.msra.mxu0 0
        %3890 = vmatpush.bf16.msra.mxu0 0
        %3891 = vmatpush.bf16.msra.mxu0 0
        %3892 = vmatpush.bf16.msra.mxu0 0
        %3893 = vmatpush.bf16.msra.mxu0 0
        %3894 = vmatpush.bf16.msra.mxu0 0
        %3895 = vmatpush.bf16.msra.mxu0 %v3872
        %3896 = vmatpush.bf16.msra.mxu0 %v3871
        %3897 = vmatmul.bf16.gmra.mxu0 %v3884
        %v3898 = vpop.f32.mrf.mxu0
        %v3899 = vadd.f32 0.0, %v3898
        %v3900 = vpop.f32.mrf.mxu0
        %v3901 = vadd.f32 0.0, %v3900
        %3902 = vmatmul.bf16.gmra.mxu0 %v3887
        %v3903 = vpop.f32.mrf.mxu0
        %v3904 = vadd.f32 0.0, %v3903
        %v3905 = vpop.f32.mrf.mxu0
        %v3906 = vadd.f32 0.0, %v3905
        %3907 = vdwg.mxu0
        %v3912 = vunpack.c.l.b16 %v3547
        %v3913 = vunpack.c.h.b16 %v3547
        %v3914 = vunpack.c.l.b16 %v3548
        %v3915 = vunpack.c.h.b16 %v3548
        %v3916 = vunpack.c.l.b16 %v3549
        %v3917 = vunpack.c.h.b16 %v3549
        %v3918 = vunpack.c.l.b16 %v3550
        %v3919 = vunpack.c.h.b16 %v3550
        %v3920 = vpack.c.b16 %v3914, %v3912
        %v3921 = vpack.c.b16 %v3915, %v3913
        %v3922 = vpack.c.b16 %v3918, %v3916
        %v3923 = vpack.c.b16 %v3919, %v3917
        %v3932 = vunpack.c.l.b16 %v3531
        %v3933 = vunpack.c.h.b16 %v3531
        %v3934 = vunpack.c.l.b16 %v3532
        %v3935 = vunpack.c.h.b16 %v3532
        %v3936 = vunpack.c.l.b16 %v3533
        %v3937 = vunpack.c.h.b16 %v3533
        %v3938 = vunpack.c.l.b16 %v3534
        %v3939 = vunpack.c.h.b16 %v3534
        %v3940 = vpack.c.b16 %v3934, %v3932
        %v3941 = vpack.c.b16 %v3935, %v3933
        %v3942 = vpack.c.b16 %v3938, %v3936
        %v3943 = vpack.c.b16 %v3939, %v3937
        %3948 = vmatpush.bf16.xpose.msra.mxu0 0
        %3949 = vmatpush.bf16.xpose.msra.mxu0 0
        %3950 = vmatpush.bf16.xpose.msra.mxu0 0
        %3951 = vmatpush.bf16.xpose.msra.mxu0 0
        %3952 = vmatpush.bf16.xpose.msra.mxu0 0
        %3953 = vmatpush.bf16.xpose.msra.mxu0 0
        %3954 = vmatpush.bf16.xpose.msra.mxu0 %v3942
        %3955 = vmatpush.bf16.xpose.msra.mxu0 %v3940
        %3956 = vmatmul.bf16.gmra.mxu0 %v3920
        %v3957 = vpop.f32.mrf.mxu0
        %v3958 = vadd.f32 0.0, %v3957
        %v3959 = vpop.f32.mrf.mxu0
        %v3960 = vadd.f32 0.0, %v3959
        %3961 = vmatmul.bf16.gmra.mxu0 %v3922
        %v3962 = vpop.f32.mrf.mxu0
        %v3963 = vadd.f32 0.0, %v3962
        %v3964 = vpop.f32.mrf.mxu0
        %v3965 = vadd.f32 0.0, %v3964
        %3966 = vdwg.mxu0
        %3967 = vmatpush.bf16.xpose.msra.mxu0 0
        %3968 = vmatpush.bf16.xpose.msra.mxu0 0
        %3969 = vmatpush.bf16.xpose.msra.mxu0 0
        %3970 = vmatpush.bf16.xpose.msra.mxu0 0
        %3971 = vmatpush.bf16.xpose.msra.mxu0 0
        %3972 = vmatpush.bf16.xpose.msra.mxu0 0
        %3973 = vmatpush.bf16.xpose.msra.mxu0 %v3943
        %3974 = vmatpush.bf16.xpose.msra.mxu0 %v3941
        %3975 = vmatmul.bf16.gmra.mxu0 %v3921
        %v3976 = vpop.f32.mrf.mxu0
        %v3977 = vadd.f32 %v3958, %v3976
        %v3978 = vpop.f32.mrf.mxu0
        %v3979 = vadd.f32 %v3960, %v3978
        %3980 = vmatmul.bf16.gmra.mxu0 %v3923
        %v3981 = vpop.f32.mrf.mxu0
        %v3982 = vadd.f32 %v3963, %v3981
        %v3983 = vpop.f32.mrf.mxu0
        %v3984 = vadd.f32 %v3965, %v3983
        %3985 = vdwg.mxu0
        %v3986 = vld [vmem:[%s2839] sm:$0xf]
        %v3987 = vld [vmem:[%s2839 + $0x4] sm:$0xf]
        %v3988 = vld [vmem:[%s2839 + $0x8] sm:$0xf]
        %v3989 = vld [vmem:[%s2839 + $0xc] sm:$0xf]
        %v3990 = vpack.c.bf16 %v3979, %v3977
        %v3991 = vpack.c.bf16 %v3984, %v3982
        %v3996 = vunpack.c.l.b16 %v3986
        %v3997 = vunpack.c.l.b16 %v3987
        %v3998 = vunpack.c.l.b16 %v3988
        %v3999 = vunpack.c.l.b16 %v3989
        %v4000 = vpack.c.b16 %v3997, %v3996
        %v4001 = vpack.c.b16 %v3999, %v3998
        %v4003 = vsel %vm445, %v4000, 0
        %v4006 = vsel %vm445, %v4001, 0
        %4008 = vmatpush.bf16.msra.mxu0 0
        %4009 = vmatpush.bf16.msra.mxu0 0
        %4010 = vmatpush.bf16.msra.mxu0 0
        %4011 = vmatpush.bf16.msra.mxu0 0
        %4012 = vmatpush.bf16.msra.mxu0 0
        %4013 = vmatpush.bf16.msra.mxu0 0
        %4014 = vmatpush.bf16.msra.mxu0 %v3991
        %4015 = vmatpush.bf16.msra.mxu0 %v3990
        %4016 = vmatmul.bf16.gmra.mxu0 %v4003
        %v4017 = vpop.f32.mrf.mxu0
        %v4018 = vadd.f32 0.0, %v4017
        %v4019 = vpop.f32.mrf.mxu0
        %v4020 = vadd.f32 0.0, %v4019
        %4021 = vmatmul.bf16.gmra.mxu0 %v4006
        %v4022 = vpop.f32.mrf.mxu0
        %v4023 = vadd.f32 0.0, %v4022
        %v4024 = vpop.f32.mrf.mxu0
        %v4025 = vadd.f32 0.0, %v4024
        %4026 = vdwg.mxu0
        %4031 = vrot.lane.b32.xlu0 %v3780, 32
        %v4032 = vpop.permute.xlu0 %4031
        %4033 = vrot.lane.b32.xlu0 %v3782, 32
        %v4034 = vpop.permute.xlu0 %4033
        %4035 = vrot.lane.b32.xlu0 %v3785, 32
        %v4036 = vpop.permute.xlu0 %4035
        %4037 = vrot.lane.b32.xlu0 %v3787, 32
        %v4038 = vpop.permute.xlu0 %4037
        %4047 = vrot.lane.b32.xlu0 %v3899, 64
        %v4048 = vpop.permute.xlu0 %4047
        %4049 = vrot.lane.b32.xlu0 %v3901, 64
        %v4050 = vpop.permute.xlu0 %4049
        %4051 = vrot.lane.b32.xlu0 %v3904, 64
        %v4052 = vpop.permute.xlu0 %4051
        %4053 = vrot.lane.b32.xlu0 %v3906, 64
        %v4054 = vpop.permute.xlu0 %4053
        %4063 = vrot.lane.b32.xlu0 %v4018, 96
        %v4064 = vpop.permute.xlu0 %4063
        %4065 = vrot.lane.b32.xlu0 %v4020, 96
        %v4066 = vpop.permute.xlu0 %4065
        %4067 = vrot.lane.b32.xlu0 %v4023, 96
        %v4068 = vpop.permute.xlu0 %4067
        %4069 = vrot.lane.b32.xlu0 %v4025, 96
        %v4070 = vpop.permute.xlu0 %4069
        %v4075 = vsel %vm445, %v3661, %v4032
        %v4076 = vsel %vm445, %v3663, %v4034
        %v4077 = vsel %vm445, %v3666, %v4036
        %v4078 = vsel %vm445, %v3668, %v4038
        %v4079 = vsel %vm2933, %v4075, %v4048
        %v4080 = vsel %vm2933, %v4076, %v4050
        %v4081 = vsel %vm2933, %v4077, %v4052
        %v4082 = vsel %vm2933, %v4078, %v4054
        %v4083 = vsel %vm2938, %v4079, %v4064
        %v4084 = vsel %vm2938, %v4080, %v4066
        %v4085 = vsel %vm2938, %v4081, %v4068
        %v4086 = vsel %vm2938, %v4082, %v4070
        %v4087 = vpack.c.bf16 %v4084, %v4083
        %v4088 = vpack.c.bf16 %v4086, %v4085
        %v4105 = vunpack.c.l.b16 %v1867
        %v4106 = vunpack.c.h.b16 %v1867
        %v4107 = vunpack.c.l.b16 %v1869
        %v4108 = vunpack.c.h.b16 %v1869
        %v4109 = vunpack.c.l.b16 %v1871
        %v4110 = vunpack.c.h.b16 %v1871
        %v4111 = vunpack.c.l.b16 %v1873
        %v4112 = vunpack.c.h.b16 %v1873
        %v4113 = vunpack.c.l.b16 %v1875
        %v4114 = vunpack.c.h.b16 %v1875
        %v4115 = vunpack.c.l.b16 %v1877
        %v4116 = vunpack.c.h.b16 %v1877
        %v4117 = vunpack.c.l.b16 %v1879
        %v4118 = vunpack.c.h.b16 %v1879
        %v4119 = vunpack.c.l.b16 %v1881
        %v4120 = vunpack.c.h.b16 %v1881
        %v4121 = vunpack.c.l.b16 %v1883
        %v4122 = vunpack.c.h.b16 %v1883
        %v4123 = vunpack.c.l.b16 %v1885
        %v4124 = vunpack.c.h.b16 %v1885
        %v4125 = vunpack.c.l.b16 %v1887
        %v4126 = vunpack.c.h.b16 %v1887
        %v4127 = vunpack.c.l.b16 %v1889
        %v4128 = vunpack.c.h.b16 %v1889
        %v4129 = vunpack.c.l.b16 %v1891
        %v4130 = vunpack.c.h.b16 %v1891
        %v4131 = vunpack.c.l.b16 %v1893
        %v4132 = vunpack.c.h.b16 %v1893
        %v4133 = vunpack.c.l.b16 %v1895
        %v4134 = vunpack.c.h.b16 %v1895
        %v4135 = vunpack.c.l.b16 %v1897
        %v4136 = vunpack.c.h.b16 %v1897
        %v4137 = vpack.c.b16 %v4107, %v4105
        %v4138 = vpack.c.b16 %v4108, %v4106
        %v4139 = vpack.c.b16 %v4111, %v4109
        %v4140 = vpack.c.b16 %v4112, %v4110
        %v4141 = vpack.c.b16 %v4115, %v4113
        %v4142 = vpack.c.b16 %v4116, %v4114
        %v4143 = vpack.c.b16 %v4119, %v4117
        %v4144 = vpack.c.b16 %v4120, %v4118
        %v4145 = vpack.c.b16 %v4123, %v4121
        %v4146 = vpack.c.b16 %v4124, %v4122
        %v4147 = vpack.c.b16 %v4127, %v4125
        %v4148 = vpack.c.b16 %v4128, %v4126
        %v4149 = vpack.c.b16 %v4131, %v4129
        %v4150 = vpack.c.b16 %v4132, %v4130
        %v4151 = vpack.c.b16 %v4135, %v4133
        %v4152 = vpack.c.b16 %v4136, %v4134
        %4169 = vmatpush.bf16.msra.mxu0 %v4151
        %4170 = vmatpush.bf16.msra.mxu0 %v4149
        %4171 = vmatpush.bf16.msra.mxu0 %v4147
        %4172 = vmatpush.bf16.msra.mxu0 %v4145
        %4173 = vmatpush.bf16.msra.mxu0 %v4143
        %4174 = vmatpush.bf16.msra.mxu0 %v4141
        %4175 = vmatpush.bf16.msra.mxu0 %v4139
        %4176 = vmatpush.bf16.msra.mxu0 %v4137
        %4177 = vmatmul.bf16.gmra.mxu0 %v4087
        %v4178 = vpop.f32.mrf.mxu0
        %v4179 = vadd.f32 %v1905, %v4178
        %v4180 = vpop.f32.mrf.mxu0
        %v4181 = vadd.f32 %v1910, %v4180
        %4182 = vmatmul.bf16.gmra.mxu0 %v4088
        %v4183 = vpop.f32.mrf.mxu0
        %v4184 = vadd.f32 %v1915, %v4183
        %v4185 = vpop.f32.mrf.mxu0
        %v4186 = vadd.f32 %v1920, %v4185
        %4187 = vdwg.mxu0
        %4188 = vmatpush.bf16.msra.mxu0 %v4152
        %4189 = vmatpush.bf16.msra.mxu0 %v4150
        %4190 = vmatpush.bf16.msra.mxu0 %v4148
        %4191 = vmatpush.bf16.msra.mxu0 %v4146
        %4192 = vmatpush.bf16.msra.mxu0 %v4144
        %4193 = vmatpush.bf16.msra.mxu0 %v4142
        %4194 = vmatpush.bf16.msra.mxu0 %v4140
        %4195 = vmatpush.bf16.msra.mxu0 %v4138
        %4196 = vmatmul.bf16.gmra.mxu0 %v4087
        %v4197 = vpop.f32.mrf.mxu0
        %v4198 = vadd.f32 %v1905, %v4197
        %v4199 = vpop.f32.mrf.mxu0
        %v4200 = vadd.f32 %v1910, %v4199
        %4201 = vmatmul.bf16.gmra.mxu0 %v4088
        %v4202 = vpop.f32.mrf.mxu0
        %v4203 = vadd.f32 %v1915, %v4202
        %v4204 = vpop.f32.mrf.mxu0
        %v4205 = vadd.f32 %v1920, %v4204
        %4206 = vdwg.mxu0
        %4207 = vst [vmem:[%s225 + $0x10] sm:$0xff] %v4179
        %4208 = vst [vmem:[%s225 + $0x18] sm:$0xff] %v4198
        %4209 = vst [vmem:[%s225 + $0x30] sm:$0xff] %v4181
        %4210 = vst [vmem:[%s225 + $0x38] sm:$0xff] %v4200
        %4211 = vst [vmem:[%s225 + $0x50] sm:$0xff] %v4184
        %4212 = vst [vmem:[%s225 + $0x58] sm:$0xff] %v4203
        %4213 = vst [vmem:[%s225 + $0x70] sm:$0xff] %v4186
        %4214 = vst [vmem:[%s225 + $0x78] sm:$0xff] %v4205
        %s4215 = sand.u32 %s112, 1
        %s4216 = sand.u32 %s112, 1
        %s4217 = smul.addr %s4216, 128
        %s4218 = scalar_lea.vmem [#allocation3], %s4217
        // Predicated region
        $region60: #{spatial_linear_attention.1} parent=54 // pred_check
          %p4219 = pneg %p122
        $region61: #{spatial_linear_attention.1} parent=54 // pred_check_branch
          %4221 = sbr.rel (%p4219) target = $region63
        $region62: #{spatial_linear_attention.1} parent=54 // pred_region
          %s4222 = smul.u32 4, %s15
          %s4223 = smul.addr %s4222, 8
          %s4224 = scalar_lea.vmem %s4, %s4223
          // Predicated region
          $region64: #{spatial_linear_attention.1} parent=62 // pred_check
            _
          $region65: #{spatial_linear_attention.1} parent=62 // pred_check_branch
            %4226 = sbr.rel (0) target = $region67
          $region66: #{spatial_linear_attention.1} parent=62 // pred_region
            // Predicated region
            $region68: #{spatial_linear_attention.1} parent=66 // pred_check
              _
            $region69: #{spatial_linear_attention.1} parent=66 // pred_check_branch
              %4228 = sbr.rel (0) target = $region71
            $region70: #{spatial_linear_attention.1} parent=66 // pred_region
              loop: start=0, step=1, limit=1
              $region72: #{spatial_linear_attention.1} parent=70 // loop_pre_header
                _
              $region73: #{spatial_linear_attention.1} parent=70 // loop_header
                %s4230 = sphi 0, %s4234
                %p4231 = scmp.ge.s32.totalorder %s4230, 1
                %s4235 = sphi %s4218, %s4218
                %s4236 = sphi %s4224, %s4224
              $region74: #{spatial_linear_attention.1} parent=70 // loop_header_branch
                %4233 = sbr.rel (%p4231) target = $region78
              $region75: #{spatial_linear_attention.1} parent=70 // loop_body
                %v4237 = vld [vmem:[%s4235] sm:$0xff]
                %4238 = vst [vmem:[%s4236] sm:$0xff] %v4237
                %v4239 = vld [vmem:[%s4235 + $0x8] sm:$0xff]
                %4240 = vst [vmem:[%s4236 + $0x8] sm:$0xff] %v4239
                %v4241 = vld [vmem:[%s4235 + $0x10] sm:$0xff]
                %4242 = vst [vmem:[%s4236 + $0x10] sm:$0xff] %v4241
                %v4243 = vld [vmem:[%s4235 + $0x18] sm:$0xff]
                %4244 = vst [vmem:[%s4236 + $0x18] sm:$0xff] %v4243
                %v4245 = vld [vmem:[%s4235 + $0x20] sm:$0xff]
                %4246 = vst [vmem:[%s4236 + $0x80] sm:$0xff] %v4245
                %v4247 = vld [vmem:[%s4235 + $0x28] sm:$0xff]
                %4248 = vst [vmem:[%s4236 + $0x88] sm:$0xff] %v4247
                %v4249 = vld [vmem:[%s4235 + $0x30] sm:$0xff]
                %4250 = vst [vmem:[%s4236 + $0x90] sm:$0xff] %v4249
                %v4251 = vld [vmem:[%s4235 + $0x38] sm:$0xff]
                %4252 = vst [vmem:[%s4236 + $0x98] sm:$0xff] %v4251
                %v4253 = vld [vmem:[%s4235 + $0x40] sm:$0xff]
                %4254 = vst [vmem:[%s4236 + $0x100] sm:$0xff] %v4253
                %v4255 = vld [vmem:[%s4235 + $0x48] sm:$0xff]
                %4256 = vst [vmem:[%s4236 + $0x108] sm:$0xff] %v4255
                %v4257 = vld [vmem:[%s4235 + $0x50] sm:$0xff]
                %4258 = vst [vmem:[%s4236 + $0x110] sm:$0xff] %v4257
                %v4259 = vld [vmem:[%s4235 + $0x58] sm:$0xff]
                %4260 = vst [vmem:[%s4236 + $0x118] sm:$0xff] %v4259
                %v4261 = vld [vmem:[%s4235 + $0x60] sm:$0xff]
                %4262 = vst [vmem:[%s4236 + $0x180] sm:$0xff] %v4261
                %v4263 = vld [vmem:[%s4235 + $0x68] sm:$0xff]
                %4264 = vst [vmem:[%s4236 + $0x188] sm:$0xff] %v4263
                %v4265 = vld [vmem:[%s4235 + $0x70] sm:$0xff]
                %4266 = vst [vmem:[%s4236 + $0x190] sm:$0xff] %v4265
                %v4267 = vld [vmem:[%s4235 + $0x78] sm:$0xff]
                %4268 = vst [vmem:[%s4236 + $0x198] sm:$0xff] %v4267
              $region76: #{spatial_linear_attention.1} parent=70 // loop_footer
                %s4234 = sadd.s32 1, %s4230
              $region77: #{spatial_linear_attention.1} parent=70 // loop_footer_branch
                %4229 = sbr.rel target = $region73
              $region78: #{spatial_linear_attention.1} parent=70 // loop_exit
                _
            $region71: #{spatial_linear_attention.1} parent=66 // pred_fallthru
              _
            // Predicated region
            $region79: #{spatial_linear_attention.1} parent=66 // pred_check
              _
            $region80: #{spatial_linear_attention.1} parent=66 // pred_check_branch
              %4270 = sbr.rel target = $region82
            $region81: #{spatial_linear_attention.1} parent=66 // pred_region
              _
            $region82: #{spatial_linear_attention.1} parent=66 // pred_fallthru
              _
          $region67: #{spatial_linear_attention.1} parent=62 // pred_fallthru
            _
          %4271 = vnop
        $region63: #{spatial_linear_attention.1} parent=54 // pred_fallthru
          _
      $region55: #{spatial_linear_attention.1} parent=5 // pred_fallthru
        _
      %p4272 = scmp.le.s32.totalorder 2, %s10
      // Predicated region
      $region83: #{spatial_linear_attention.1} parent=5 // pred_check
        %p4273 = pneg %p4272
      $region84: #{spatial_linear_attention.1} parent=5 // pred_check_branch
        %4275 = sbr.rel (%p4273) target = $region86
      $region85: #{spatial_linear_attention.1} parent=5 // pred_region
        %s4276 = ssub.s32 %s10, 2
        // Predicated region
        $region87: #{spatial_linear_attention.1} parent=85 // pred_check
          %p4277 = pneg %p128
        $region88: #{spatial_linear_attention.1} parent=85 // pred_check_branch
          %4279 = sbr.rel (%p4277) target = $region90
        $region89: #{spatial_linear_attention.1} parent=85 // pred_region
          %s4280 = sand.u32 %s113, 1
          %s4281 = sand.u32 %s113, 1
          %s4282 = smul.addr %s4281, 128
          %s4283 = scalar_lea.vmem [#allocation3], %s4282
        $region90: #{spatial_linear_attention.1} parent=85 // pred_fallthru
          _
      $region86: #{spatial_linear_attention.1} parent=5 // pred_fallthru
        _
    $region6: #{spatial_linear_attention.1} parent=1 // loop_footer
      %s14 = sadd.s32 1, %s10
    $region7: #{spatial_linear_attention.1} parent=1 // loop_footer_branch
      %9 = sbr.rel target = $region3
    $region8: #{spatial_linear_attention.1} parent=1 // loop_exit
      _

</llo_original>
